<compile_context>
chip_gen: v7x
topology: tpu7x:2x2x1
jax: 0.10.0
libtpu: 0.0.40
codegen_flags: <defaults>
</compile_context>

<pallas_src>
import numpy as np
import jax
import jax.numpy as jnp
from jax import lax
from jax.experimental import pallas as pl
from jax.experimental.pallas import tpu as pltpu

EPS = 1e-5
P = 8        # SO3 group size; module hard-codes reshape [..., 8, 3]
KNEI = 3     # neighbors per point == conv kernel width

IN_CH = 32        # network input / output channels
CONV_IN_CH = 256  # Conv_in output / RCC in & out channels
MID_CH = 512      # RCC middle channels
OUT_CH = 32       # Conv_out output channels


# ------------------------------ Pallas kernel ------------------------------ #
def make_part1_kernel(shifts):
    """shifts[k] is a static roll so roll(a, shifts[k], axis=1)[:, p, :] == a[:, nei[p,k], :]."""
    sh = tuple(int(s) for s in shifts)

    def rollp(a, s):
        # Static ring-shift along the P (sublane) axis of a [Bt, 8, C] f32 tensor.
        return a if s == 0 else jnp.roll(a, s, axis=1)

    def bn_relu(a, s_ref, t_ref):
        c = s_ref.shape[-1]
        return jnp.maximum(a * s_ref[...].reshape(1, 1, c)
                           + t_ref[...].reshape(1, 1, c), 0.0)

    def kernel(x_ref,
               w0_ref,                              # Conv_in   [3*32, 256] bf16 (K-concat)
               s1_ref, t1_ref, w1_ref,              # RCC in    BN(256) fold + [3,256,512] bf16
               s2_ref, t2_ref, w2_ref,              # RCC out   BN(512) fold + [3,512,256] bf16
               s3_ref, t3_ref, w3_ref, b3_ref,      # Conv_out  BN(256) fold + [256,3*32] bf16 + b3
               eqv_ref, inv_ref):
        x = x_ref[...]                               # [Bt, 8, 32] f32
        bt = x.shape[0]
        m = bt * P

        # ---- Conv_in (32 -> 256): 3 taps fused along K -> one [M,96]@[96,256] GEMM.
        xcat = jnp.concatenate([rollp(x, s) for s in sh], axis=-1)         # [Bt,8,96]
        h = jnp.dot(xcat.reshape(m, KNEI * IN_CH).astype(jnp.bfloat16),
                    w0_ref[...],
                    preferred_element_type=jnp.float32).reshape(bt, P, CONV_IN_CH)
        res = h                                      # identity shortcut (bias b0 folded into t1/t3)

        # ---- RCC comb_layer_in (256 -> 512): cast once, roll the f32 GEMM outputs.
        a = bn_relu(h, s1_ref, t1_ref).astype(jnp.bfloat16).reshape(m, CONV_IN_CH)
        h = None
        for k, s in enumerate(sh):
            y = jnp.dot(a, w1_ref[k], preferred_element_type=jnp.float32)
            y = rollp(y.reshape(bt, P, MID_CH), s)
            h = y if h is None else h + y

        # ---- RCC comb_layer_out (512 -> 256): accumulator seeded with the shortcut.
        a = bn_relu(h, s2_ref, t2_ref).astype(jnp.bfloat16).reshape(m, MID_CH)
        h = res
        for k, s in enumerate(sh):
            y = jnp.dot(a, w2_ref[k], preferred_element_type=jnp.float32)
            h = h + rollp(y.reshape(bt, P, CONV_IN_CH), s)

        # ---- Conv_out (256 -> 32): 3 taps fused along N -> one [M,256]@[256,96] GEMM.
        a = bn_relu(h, s3_ref, t3_ref).astype(jnp.bfloat16).reshape(m, CONV_IN_CH)
        y = jnp.dot(a, w3_ref[...], preferred_element_type=jnp.float32)
        y = y.reshape(bt, P, KNEI * OUT_CH)
        h = b3_ref[...].reshape(1, 1, OUT_CH)
        for k, s in enumerate(sh):
            h = h + rollp(y[:, :, k * OUT_CH:(k + 1) * OUT_CH], s)

        # ---- eqv/inv + L2 normalization (rsqrt on EUP; min-clamp == max(norm, 1e-4)).
        eqv = h + x                                  # outer residual
        inv = jnp.mean(eqv, axis=1)                  # mean over P -> [Bt, 32]
        eqv_ref[...] = eqv * jnp.minimum(
            lax.rsqrt(jnp.sum(eqv * eqv, axis=-1, keepdims=True)), 1e4)
        inv_ref[...] = inv * jnp.minimum(
            lax.rsqrt(jnp.sum(inv * inv, axis=-1, keepdims=True)), 1e4)

    return kernel


# ------------------------------ host helpers -------------------------------- #
def roll_shifts_from_nei(nei_np):
    """Detect the per-tap uniform ring offset of the Nei_in_SO3 table."""
    nei2 = np.asarray(nei_np).reshape(P, KNEI)
    shifts = []
    for k in range(KNEI):
        d = (nei2[:, k] - np.arange(P)) % P
        # TODO(synk): a general (non-uniform) Nei_in_SO3 table would need an
        # in-kernel gather instead of this uniform-roll fast path.
        assert np.all(d == d[0]), "Nei_in_SO3 must be a uniform per-tap ring offset"
        shifts.append(int((-int(d[0])) % P))
    return tuple(shifts)


def _vmem_cap_bytes():
    try:
        cap = getattr(pltpu.get_tpu_info(), "vmem_capacity_bytes", None)
        if cap:
            return int(cap)
    except Exception:
        pass
    return 64 * 1024 * 1024      # conservative (v7x-sized) default


def _pick_btile(B, vmem_cap):
    # Bigger M per grid step, but keep v7x (64 MiB VMEM) blocks modest, and keep
    # >= 2 "parallel" grid steps so both v7x TensorCores get work.
    cap = 512 if vmem_cap > (64 << 20) else 256
    if B < 16:
        return B
    target = min(cap, B // 2)
    d = (target // 8) * 8
    while d >= 8:
        if B % d == 0:
            return d
        d -= 8
    return B


# ------------------------------ host wrapper -------------------------------- #
def part1_forward(feats, params, shifts, *, btile=None):
    """feats: [B, 32, 8] f32  ->  {'inv': [B, 32], 'eqv': [B, 32, 8]}."""
    B, C0, Pp = feats.shape
    assert Pp == P and C0 == IN_CH
    x = jnp.transpose(feats, (0, 2, 1))            # [B, P, 32]  (channels on lanes)

    vmem_cap = _vmem_cap_bytes()
    if btile is None:
        btile = _pick_btile(B, vmem_cap)
    assert B % btile == 0 and (btile == B or btile % 8 == 0)
    grid = (B // btile,)
    vmem_limit = min(int(vmem_cap * 3 // 4), 100 * 1024 * 1024)

    p = params
    args = [x, p["w0"], p["s1"], p["t1"], p["w1"], p["s2"], p["t2"], p["w2"],
            p["s3"], p["t3"], p["w3"], p["b3"]]

    def bcast(shape):
        nd = len(shape)
        return pl.BlockSpec(shape, lambda i, nd=nd: (0,) * nd)

    in_specs = [pl.BlockSpec((btile, P, C0), lambda i: (i, 0, 0))]
    in_specs += [bcast(a.shape) for a in args[1:]]

    eqv_bpc, inv = pl.pallas_call(
        make_part1_kernel(shifts),
        grid=grid,
        in_specs=in_specs,
        out_specs=(pl.BlockSpec((btile, P, C0), lambda i: (i, 0, 0)),
                   pl.BlockSpec((btile, C0), lambda i: (i, 0))),
        out_shape=(jax.ShapeDtypeStruct((B, P, C0), jnp.float32),
                   jax.ShapeDtypeStruct((B, C0), jnp.float32)),
        compiler_params=pltpu.CompilerParams(
            dimension_semantics=("parallel",),
            vmem_limit_bytes=vmem_limit),
    )(*args)

    return {"inv": inv, "eqv": jnp.transpose(eqv_bpc, (0, 2, 1))}


# ------------------------------- parameters --------------------------------- #
def init_raw_layer(key, cin, cout, with_bn):
    """Deterministic params for [BatchNorm2d(cin)+ReLU+] Conv2d(cin, cout, (1,3))."""
    ks = jax.random.split(key, 6)
    bound = 1.0 / np.sqrt(cin * KNEI)
    p = dict(
        w=jax.random.uniform(ks[0], (cout, cin, 1, KNEI), jnp.float32, -bound, bound),
        bias=jax.random.uniform(ks[1], (cout,), jnp.float32, -bound, bound))
    if with_bn:
        p["gamma"] = jax.random.uniform(ks[2], (cin,), jnp.float32, 0.5, 1.5)
        p["beta"] = jax.random.uniform(ks[3], (cin,), jnp.float32, -0.5, 0.5)
        p["rmean"] = jax.random.uniform(ks[4], (cin,), jnp.float32, -0.5, 0.5)
        p["rvar"] = jax.random.uniform(ks[5], (cin,), jnp.float32, 0.5, 1.5)
    return p


def _taps(w4):   # [cout, cin, 1, 3] -> list of 3 x [cin, cout]
    return [jnp.transpose(w4[:, :, 0, k], (1, 0)) for k in range(KNEI)]


def _bn_fold(p):
    scale = p["gamma"] / jnp.sqrt(p["rvar"] + EPS)
    shift = p["beta"] - p["rmean"] * scale
    return scale, shift


def fold_params(raw):
    """Pre-folded kernel parameters (bf16 weights; BN+bias folds in f32)."""
    b0 = raw["conv_in"]["bias"]      # (256,)
    b1 = raw["rcc_in"]["bias"]       # (512,)
    b2 = raw["rcc_out"]["bias"]      # (256,)
    b3 = raw["conv_out"]["bias"]     # (32,)
    s1, t1 = _bn_fold(raw["rcc_in"])     # BN over 256
    s2, t2 = _bn_fold(raw["rcc_out"])    # BN over 512
    s3, t3 = _bn_fold(raw["conv_out"])   # BN over 256
    # Fold the preceding conv biases into the BN shifts (incl. the identity shortcut).
    t1 = t1 + s1 * b0
    t2 = t2 + s2 * b1
    t3 = t3 + s3 * (b2 + b0)
    return dict(
        w0=jnp.concatenate(_taps(raw["conv_in"]["w"]), axis=0).astype(jnp.bfloat16),   # [96,256]
        w1=jnp.stack(_taps(raw["rcc_in"]["w"]), axis=0).astype(jnp.bfloat16),          # [3,256,512]
        w2=jnp.stack(_taps(raw["rcc_out"]["w"]), axis=0).astype(jnp.bfloat16),         # [3,512,256]
        w3=jnp.concatenate(_taps(raw["conv_out"]["w"]), axis=1).astype(jnp.bfloat16),  # [256,96]
        s1=s1[None, :], t1=t1[None, :],
        s2=s2[None, :], t2=t2[None, :],
        s3=s3[None, :], t3=t3[None, :],
        b3=b3[None, :].astype(jnp.float32))


# ------------------------- pure-JAX reference (f32) ------------------------- #
def _ref_layer(x_bcp, lp, nei, with_bn):
    B, C, _ = x_bcp.shape
    g = x_bcp[:, :, nei].reshape(B, C, P, KNEI)                      # data_process
    if with_bn:
        scale = lp["gamma"] / jnp.sqrt(lp["rvar"] + EPS)
        shift = lp["beta"] - lp["rmean"] * scale
        g = jnp.maximum(g * scale[None, :, None, None]
                        + shift[None, :, None, None], 0.0)
    return (jnp.einsum("bcpk,ock->bop", g, lp["w"][:, :, 0, :])
            + lp["bias"][None, :, None])                             # [B, cout, 8]


def ref_forward(feats, raw, nei):
    h = _ref_layer(feats, raw["conv_in"], nei, with_bn=False)        # Conv_in
    res = h
    h = _ref_layer(h, raw["rcc_in"], nei, with_bn=True)              # RCC comb_in
    h = _ref_layer(h, raw["rcc_out"], nei, with_bn=True) + res       # RCC comb_out + id
    h = _ref_layer(h, raw["conv_out"], nei, with_bn=True)            # Conv_out
    eqv = h + feats
    inv = jnp.mean(eqv, axis=-1)
    eqv = eqv / jnp.maximum(jnp.linalg.norm(eqv, axis=1, keepdims=True), 1e-4)
    inv = inv / jnp.maximum(jnp.linalg.norm(inv, axis=1, keepdims=True), 1e-4)
    return {"inv": inv, "eqv": eqv}


# ----------------------------------- main ------------------------------------ #
if __name__ == "__main__":
    B = 16   # small demo batch; >= 16 so the auto-tiler produces a 2-step parallel grid

    # Deterministic stand-in for Nei_Index_in_SO3_ordered_3.npy:
    # neighbors of point p are (p, p+1, p-1) mod 8.
    nei_np = np.stack([np.arange(P), (np.arange(P) + 1) % P, (np.arange(P) + 7) % P],
                      axis=1).reshape(-1).astype(np.int32)
    nei = jnp.asarray(nei_np)
    shifts = roll_shifts_from_nei(nei_np)

    key = jax.random.PRNGKey(0)
    kx, k0, k1, k2, k3 = jax.random.split(key, 5)
    feats = jax.random.normal(kx, (B, IN_CH, P), jnp.float32)         # [16, 32, 8]

    raw = {
        "conv_in": init_raw_layer(k0, IN_CH, CONV_IN_CH, with_bn=False),
        "rcc_in": init_raw_layer(k1, CONV_IN_CH, MID_CH, with_bn=True),
        "rcc_out": init_raw_layer(k2, MID_CH, CONV_IN_CH, with_bn=True),
        "conv_out": init_raw_layer(k3, CONV_IN_CH, OUT_CH, with_bn=True),
    }
    params = fold_params(raw)

    out = part1_forward(feats, params, shifts)
    out = jax.block_until_ready(out)

    ref = jax.block_until_ready(ref_forward(feats, raw, nei))
    assert out["eqv"].shape == (B, IN_CH, P), out["eqv"].shape
    assert out["inv"].shape == (B, IN_CH), out["inv"].shape
    # bf16 MXU operands (f32 accumulation) vs the f32 reference -> relaxed tolerance.
    np.testing.assert_allclose(np.asarray(out["eqv"]), np.asarray(ref["eqv"]),
                               rtol=2e-2, atol=2e-2)
    np.testing.assert_allclose(np.asarray(out["inv"]), np.asarray(ref["inv"]),
                               rtol=2e-2, atol=2e-2)

    print("KERNEL_OK")
</pallas_src>

<mosaic_0001>
module attributes {stable_mosaic.version = 11 : i64} {
  func.func @kernel(%arg0: i32, %arg1: memref<8x8x32xf32, #tpu.memory_space<vmem>>, %arg2: memref<96x256xbf16, #tpu.memory_space<vmem>>, %arg3: memref<1x256xf32, #tpu.memory_space<vmem>>, %arg4: memref<1x256xf32, #tpu.memory_space<vmem>>, %arg5: memref<3x256x512xbf16, #tpu.memory_space<vmem>>, %arg6: memref<1x512xf32, #tpu.memory_space<vmem>>, %arg7: memref<1x512xf32, #tpu.memory_space<vmem>>, %arg8: memref<3x512x256xbf16, #tpu.memory_space<vmem>>, %arg9: memref<1x256xf32, #tpu.memory_space<vmem>>, %arg10: memref<1x256xf32, #tpu.memory_space<vmem>>, %arg11: memref<256x96xbf16, #tpu.memory_space<vmem>>, %arg12: memref<1x32xf32, #tpu.memory_space<vmem>>, %arg13: memref<8x8x32xf32, #tpu.memory_space<vmem>>, %arg14: memref<8x32xf32, #tpu.memory_space<vmem>>) attributes {dimension_semantics = [#tpu.dimension_semantics<parallel>], iteration_bounds = array<i64: 2>, scalar_prefetch = 0 : i64, scratch_operands = 0 : i64, tpu.core_type = #tpu.core_type<tc>, window_params = [{transform_indices = @transform_0, window_bounds = array<i64: 8, 8, 32>}, {pipeline_mode = #tpu.pipeline_mode<synchronous>, transform_indices = @transform_1, window_bounds = array<i64: 96, 256>}, {pipeline_mode = #tpu.pipeline_mode<synchronous>, transform_indices = @transform_2, window_bounds = array<i64: 1, 256>}, {pipeline_mode = #tpu.pipeline_mode<synchronous>, transform_indices = @transform_3, window_bounds = array<i64: 1, 256>}, {pipeline_mode = #tpu.pipeline_mode<synchronous>, transform_indices = @transform_4, window_bounds = array<i64: 3, 256, 512>}, {pipeline_mode = #tpu.pipeline_mode<synchronous>, transform_indices = @transform_5, window_bounds = array<i64: 1, 512>}, {pipeline_mode = #tpu.pipeline_mode<synchronous>, transform_indices = @transform_6, window_bounds = array<i64: 1, 512>}, {pipeline_mode = #tpu.pipeline_mode<synchronous>, transform_indices = @transform_7, window_bounds = array<i64: 3, 512, 256>}, {pipeline_mode = #tpu.pipeline_mode<synchronous>, transform_indices = @transform_8, window_bounds = array<i64: 1, 256>}, {pipeline_mode = #tpu.pipeline_mode<synchronous>, transform_indices = @transform_9, window_bounds = array<i64: 1, 256>}, {pipeline_mode = #tpu.pipeline_mode<synchronous>, transform_indices = @transform_10, window_bounds = array<i64: 256, 96>}, {pipeline_mode = #tpu.pipeline_mode<synchronous>, transform_indices = @transform_11, window_bounds = array<i64: 1, 32>}, {transform_indices = @transform_12, window_bounds = array<i64: 8, 8, 32>}, {transform_indices = @transform_13, window_bounds = array<i64: 8, 32>}]} {
    %c0 = arith.constant 0 : index
    %c0_0 = arith.constant 0 : index
    %c0_1 = arith.constant 0 : index
    %0 = vector.load %arg1[%c0, %c0_0, %c0_1] : memref<8x8x32xf32, #tpu.memory_space<vmem>>, vector<8x8x32xf32>
    %1 = vector.extract_strided_slice %0 {offsets = [0, 1, 0], sizes = [8, 7, 32], strides = [1, 1, 1]} : vector<8x8x32xf32> to vector<8x7x32xf32>
    %2 = vector.extract_strided_slice %0 {offsets = [0, 0, 0], sizes = [8, 1, 32], strides = [1, 1, 1]} : vector<8x8x32xf32> to vector<8x1x32xf32>
    %3 = tpu.concatenate %1, %2 in 1 : vector<8x7x32xf32>, vector<8x1x32xf32> -> vector<8x8x32xf32>
    %4 = vector.extract_strided_slice %0 {offsets = [0, 7, 0], sizes = [8, 1, 32], strides = [1, 1, 1]} : vector<8x8x32xf32> to vector<8x1x32xf32>
    %5 = vector.extract_strided_slice %0 {offsets = [0, 0, 0], sizes = [8, 7, 32], strides = [1, 1, 1]} : vector<8x8x32xf32> to vector<8x7x32xf32>
    %6 = tpu.concatenate %4, %5 in 1 : vector<8x1x32xf32>, vector<8x7x32xf32> -> vector<8x8x32xf32>
    %7 = tpu.concatenate %0, %3, %6 in 2 : vector<8x8x32xf32>, vector<8x8x32xf32>, vector<8x8x32xf32> -> vector<8x8x96xf32>
    %8 = vector.shape_cast %7 : vector<8x8x96xf32> to vector<64x96xf32>
    %9 = arith.truncf %8 : vector<64x96xf32> to vector<64x96xbf16>
    %c0_2 = arith.constant 0 : index
    %c0_3 = arith.constant 0 : index
    %10 = vector.load %arg2[%c0_2, %c0_3] : memref<96x256xbf16, #tpu.memory_space<vmem>>, vector<96x256xbf16>
    %cst = arith.constant dense<0.000000e+00> : vector<64x256xf32>
    %11 = tpu.matmul %9, %10, %cst {dimension_numbers = #tpu.dot_dimension_numbers<[1], [0], [0], [1], [0, 0, 1, 1], [], []>} : vector<64x96xbf16>, vector<96x256xbf16>, vector<64x256xf32> -> vector<64x256xf32>
    %12 = vector.shape_cast %11 : vector<64x256xf32> to vector<8x8x256xf32>
    %c0_4 = arith.constant 0 : index
    %c0_5 = arith.constant 0 : index
    %13 = vector.load %arg3[%c0_4, %c0_5] : memref<1x256xf32, #tpu.memory_space<vmem>>, vector<1x256xf32>
    %14 = vector.shape_cast %13 : vector<1x256xf32> to vector<1x1x256xf32>
    %15 = vector.broadcast %14 : vector<1x1x256xf32> to vector<8x8x256xf32>
    %16 = arith.mulf %12, %15 : vector<8x8x256xf32>
    %c0_6 = arith.constant 0 : index
    %c0_7 = arith.constant 0 : index
    %17 = vector.load %arg4[%c0_6, %c0_7] : memref<1x256xf32, #tpu.memory_space<vmem>>, vector<1x256xf32>
    %18 = vector.shape_cast %17 : vector<1x256xf32> to vector<1x1x256xf32>
    %19 = vector.broadcast %18 : vector<1x1x256xf32> to vector<8x8x256xf32>
    %20 = arith.addf %16, %19 : vector<8x8x256xf32>
    %cst_8 = arith.constant 0.000000e+00 : f32
    %21 = vector.broadcast %cst_8 : f32 to vector<8x8x256xf32>
    %22 = arith.maximumf %20, %21 : vector<8x8x256xf32>
    %23 = arith.truncf %22 : vector<8x8x256xf32> to vector<8x8x256xbf16>
    %24 = vector.shape_cast %23 : vector<8x8x256xbf16> to vector<64x256xbf16>
    %c0_9 = arith.constant 0 : index
    %c0_10 = arith.constant 0 : index
    %c0_11 = arith.constant 0 : index
    %25 = vector.load %arg5[%c0_9, %c0_10, %c0_11] : memref<3x256x512xbf16, #tpu.memory_space<vmem>>, vector<1x256x512xbf16>
    %26 = vector.shape_cast %25 : vector<1x256x512xbf16> to vector<256x512xbf16>
    %cst_12 = arith.constant dense<0.000000e+00> : vector<64x512xf32>
    %27 = tpu.matmul %24, %26, %cst_12 {dimension_numbers = #tpu.dot_dimension_numbers<[1], [0], [0], [1], [0, 0, 1, 1], [], []>} : vector<64x256xbf16>, vector<256x512xbf16>, vector<64x512xf32> -> vector<64x512xf32>
    %28 = vector.shape_cast %27 : vector<64x512xf32> to vector<8x8x512xf32>
    %c1 = arith.constant 1 : index
    %c0_13 = arith.constant 0 : index
    %c0_14 = arith.constant 0 : index
    %29 = vector.load %arg5[%c1, %c0_13, %c0_14] : memref<3x256x512xbf16, #tpu.memory_space<vmem>>, vector<1x256x512xbf16>
    %30 = vector.shape_cast %29 : vector<1x256x512xbf16> to vector<256x512xbf16>
    %cst_15 = arith.constant dense<0.000000e+00> : vector<64x512xf32>
    %31 = tpu.matmul %24, %30, %cst_15 {dimension_numbers = #tpu.dot_dimension_numbers<[1], [0], [0], [1], [0, 0, 1, 1], [], []>} : vector<64x256xbf16>, vector<256x512xbf16>, vector<64x512xf32> -> vector<64x512xf32>
    %32 = vector.shape_cast %31 : vector<64x512xf32> to vector<8x8x512xf32>
    %33 = vector.extract_strided_slice %32 {offsets = [0, 1, 0], sizes = [8, 7, 512], strides = [1, 1, 1]} : vector<8x8x512xf32> to vector<8x7x512xf32>
    %34 = vector.extract_strided_slice %32 {offsets = [0, 0, 0], sizes = [8, 1, 512], strides = [1, 1, 1]} : vector<8x8x512xf32> to vector<8x1x512xf32>
    %35 = tpu.concatenate %33, %34 in 1 : vector<8x7x512xf32>, vector<8x1x512xf32> -> vector<8x8x512xf32>
    %36 = arith.addf %28, %35 : vector<8x8x512xf32>
    %c2 = arith.constant 2 : index
    %c0_16 = arith.constant 0 : index
    %c0_17 = arith.constant 0 : index
    %37 = vector.load %arg5[%c2, %c0_16, %c0_17] : memref<3x256x512xbf16, #tpu.memory_space<vmem>>, vector<1x256x512xbf16>
    %38 = vector.shape_cast %37 : vector<1x256x512xbf16> to vector<256x512xbf16>
    %cst_18 = arith.constant dense<0.000000e+00> : vector<64x512xf32>
    %39 = tpu.matmul %24, %38, %cst_18 {dimension_numbers = #tpu.dot_dimension_numbers<[1], [0], [0], [1], [0, 0, 1, 1], [], []>} : vector<64x256xbf16>, vector<256x512xbf16>, vector<64x512xf32> -> vector<64x512xf32>
    %40 = vector.shape_cast %39 : vector<64x512xf32> to vector<8x8x512xf32>
    %41 = vector.extract_strided_slice %40 {offsets = [0, 7, 0], sizes = [8, 1, 512], strides = [1, 1, 1]} : vector<8x8x512xf32> to vector<8x1x512xf32>
    %42 = vector.extract_strided_slice %40 {offsets = [0, 0, 0], sizes = [8, 7, 512], strides = [1, 1, 1]} : vector<8x8x512xf32> to vector<8x7x512xf32>
    %43 = tpu.concatenate %41, %42 in 1 : vector<8x1x512xf32>, vector<8x7x512xf32> -> vector<8x8x512xf32>
    %44 = arith.addf %36, %43 : vector<8x8x512xf32>
    %c0_19 = arith.constant 0 : index
    %c0_20 = arith.constant 0 : index
    %45 = vector.load %arg6[%c0_19, %c0_20] : memref<1x512xf32, #tpu.memory_space<vmem>>, vector<1x512xf32>
    %46 = vector.shape_cast %45 : vector<1x512xf32> to vector<1x1x512xf32>
    %47 = vector.broadcast %46 : vector<1x1x512xf32> to vector<8x8x512xf32>
    %48 = arith.mulf %44, %47 : vector<8x8x512xf32>
    %c0_21 = arith.constant 0 : index
    %c0_22 = arith.constant 0 : index
    %49 = vector.load %arg7[%c0_21, %c0_22] : memref<1x512xf32, #tpu.memory_space<vmem>>, vector<1x512xf32>
    %50 = vector.shape_cast %49 : vector<1x512xf32> to vector<1x1x512xf32>
    %51 = vector.broadcast %50 : vector<1x1x512xf32> to vector<8x8x512xf32>
    %52 = arith.addf %48, %51 : vector<8x8x512xf32>
    %cst_23 = arith.constant 0.000000e+00 : f32
    %53 = vector.broadcast %cst_23 : f32 to vector<8x8x512xf32>
    %54 = arith.maximumf %52, %53 : vector<8x8x512xf32>
    %55 = arith.truncf %54 : vector<8x8x512xf32> to vector<8x8x512xbf16>
    %56 = vector.shape_cast %55 : vector<8x8x512xbf16> to vector<64x512xbf16>
    %c0_24 = arith.constant 0 : index
    %c0_25 = arith.constant 0 : index
    %c0_26 = arith.constant 0 : index
    %57 = vector.load %arg8[%c0_24, %c0_25, %c0_26] : memref<3x512x256xbf16, #tpu.memory_space<vmem>>, vector<1x512x256xbf16>
    %58 = vector.shape_cast %57 : vector<1x512x256xbf16> to vector<512x256xbf16>
    %cst_27 = arith.constant dense<0.000000e+00> : vector<64x256xf32>
    %59 = tpu.matmul %56, %58, %cst_27 {dimension_numbers = #tpu.dot_dimension_numbers<[1], [0], [0], [1], [0, 0, 1, 1], [], []>} : vector<64x512xbf16>, vector<512x256xbf16>, vector<64x256xf32> -> vector<64x256xf32>
    %60 = vector.shape_cast %59 : vector<64x256xf32> to vector<8x8x256xf32>
    %61 = arith.addf %12, %60 : vector<8x8x256xf32>
    %c1_28 = arith.constant 1 : index
    %c0_29 = arith.constant 0 : index
    %c0_30 = arith.constant 0 : index
    %62 = vector.load %arg8[%c1_28, %c0_29, %c0_30] : memref<3x512x256xbf16, #tpu.memory_space<vmem>>, vector<1x512x256xbf16>
    %63 = vector.shape_cast %62 : vector<1x512x256xbf16> to vector<512x256xbf16>
    %cst_31 = arith.constant dense<0.000000e+00> : vector<64x256xf32>
    %64 = tpu.matmul %56, %63, %cst_31 {dimension_numbers = #tpu.dot_dimension_numbers<[1], [0], [0], [1], [0, 0, 1, 1], [], []>} : vector<64x512xbf16>, vector<512x256xbf16>, vector<64x256xf32> -> vector<64x256xf32>
    %65 = vector.shape_cast %64 : vector<64x256xf32> to vector<8x8x256xf32>
    %66 = vector.extract_strided_slice %65 {offsets = [0, 1, 0], sizes = [8, 7, 256], strides = [1, 1, 1]} : vector<8x8x256xf32> to vector<8x7x256xf32>
    %67 = vector.extract_strided_slice %65 {offsets = [0, 0, 0], sizes = [8, 1, 256], strides = [1, 1, 1]} : vector<8x8x256xf32> to vector<8x1x256xf32>
    %68 = tpu.concatenate %66, %67 in 1 : vector<8x7x256xf32>, vector<8x1x256xf32> -> vector<8x8x256xf32>
    %69 = arith.addf %61, %68 : vector<8x8x256xf32>
    %c2_32 = arith.constant 2 : index
    %c0_33 = arith.constant 0 : index
    %c0_34 = arith.constant 0 : index
    %70 = vector.load %arg8[%c2_32, %c0_33, %c0_34] : memref<3x512x256xbf16, #tpu.memory_space<vmem>>, vector<1x512x256xbf16>
    %71 = vector.shape_cast %70 : vector<1x512x256xbf16> to vector<512x256xbf16>
    %cst_35 = arith.constant dense<0.000000e+00> : vector<64x256xf32>
    %72 = tpu.matmul %56, %71, %cst_35 {dimension_numbers = #tpu.dot_dimension_numbers<[1], [0], [0], [1], [0, 0, 1, 1], [], []>} : vector<64x512xbf16>, vector<512x256xbf16>, vector<64x256xf32> -> vector<64x256xf32>
    %73 = vector.shape_cast %72 : vector<64x256xf32> to vector<8x8x256xf32>
    %74 = vector.extract_strided_slice %73 {offsets = [0, 7, 0], sizes = [8, 1, 256], strides = [1, 1, 1]} : vector<8x8x256xf32> to vector<8x1x256xf32>
    %75 = vector.extract_strided_slice %73 {offsets = [0, 0, 0], sizes = [8, 7, 256], strides = [1, 1, 1]} : vector<8x8x256xf32> to vector<8x7x256xf32>
    %76 = tpu.concatenate %74, %75 in 1 : vector<8x1x256xf32>, vector<8x7x256xf32> -> vector<8x8x256xf32>
    %77 = arith.addf %69, %76 : vector<8x8x256xf32>
    %c0_36 = arith.constant 0 : index
    %c0_37 = arith.constant 0 : index
    %78 = vector.load %arg9[%c0_36, %c0_37] : memref<1x256xf32, #tpu.memory_space<vmem>>, vector<1x256xf32>
    %79 = vector.shape_cast %78 : vector<1x256xf32> to vector<1x1x256xf32>
    %80 = vector.broadcast %79 : vector<1x1x256xf32> to vector<8x8x256xf32>
    %81 = arith.mulf %77, %80 : vector<8x8x256xf32>
    %c0_38 = arith.constant 0 : index
    %c0_39 = arith.constant 0 : index
    %82 = vector.load %arg10[%c0_38, %c0_39] : memref<1x256xf32, #tpu.memory_space<vmem>>, vector<1x256xf32>
    %83 = vector.shape_cast %82 : vector<1x256xf32> to vector<1x1x256xf32>
    %84 = vector.broadcast %83 : vector<1x1x256xf32> to vector<8x8x256xf32>
    %85 = arith.addf %81, %84 : vector<8x8x256xf32>
    %cst_40 = arith.constant 0.000000e+00 : f32
    %86 = vector.broadcast %cst_40 : f32 to vector<8x8x256xf32>
    %87 = arith.maximumf %85, %86 : vector<8x8x256xf32>
    %88 = arith.truncf %87 : vector<8x8x256xf32> to vector<8x8x256xbf16>
    %89 = vector.shape_cast %88 : vector<8x8x256xbf16> to vector<64x256xbf16>
    %c0_41 = arith.constant 0 : index
    %c0_42 = arith.constant 0 : index
    %90 = vector.load %arg11[%c0_41, %c0_42] : memref<256x96xbf16, #tpu.memory_space<vmem>>, vector<256x96xbf16>
    %cst_43 = arith.constant dense<0.000000e+00> : vector<64x96xf32>
    %91 = tpu.matmul %89, %90, %cst_43 {dimension_numbers = #tpu.dot_dimension_numbers<[1], [0], [0], [1], [0, 0, 1, 1], [], []>} : vector<64x256xbf16>, vector<256x96xbf16>, vector<64x96xf32> -> vector<64x96xf32>
    %92 = vector.shape_cast %91 : vector<64x96xf32> to vector<8x8x96xf32>
    %c0_44 = arith.constant 0 : index
    %c0_45 = arith.constant 0 : index
    %93 = vector.load %arg12[%c0_44, %c0_45] : memref<1x32xf32, #tpu.memory_space<vmem>>, vector<1x32xf32>
    %94 = vector.shape_cast %93 : vector<1x32xf32> to vector<1x1x32xf32>
    %95 = vector.extract_strided_slice %92 {offsets = [0, 0, 0], sizes = [8, 8, 32], strides = [1, 1, 1]} : vector<8x8x96xf32> to vector<8x8x32xf32>
    %96 = vector.broadcast %94 : vector<1x1x32xf32> to vector<8x8x32xf32>
    %97 = arith.addf %96, %95 : vector<8x8x32xf32>
    %98 = vector.extract_strided_slice %92 {offsets = [0, 0, 32], sizes = [8, 8, 32], strides = [1, 1, 1]} : vector<8x8x96xf32> to vector<8x8x32xf32>
    %99 = vector.extract_strided_slice %98 {offsets = [0, 1, 0], sizes = [8, 7, 32], strides = [1, 1, 1]} : vector<8x8x32xf32> to vector<8x7x32xf32>
    %100 = vector.extract_strided_slice %98 {offsets = [0, 0, 0], sizes = [8, 1, 32], strides = [1, 1, 1]} : vector<8x8x32xf32> to vector<8x1x32xf32>
    %101 = tpu.concatenate %99, %100 in 1 : vector<8x7x32xf32>, vector<8x1x32xf32> -> vector<8x8x32xf32>
    %102 = arith.addf %97, %101 : vector<8x8x32xf32>
    %103 = vector.extract_strided_slice %92 {offsets = [0, 0, 64], sizes = [8, 8, 32], strides = [1, 1, 1]} : vector<8x8x96xf32> to vector<8x8x32xf32>
    %104 = vector.extract_strided_slice %103 {offsets = [0, 7, 0], sizes = [8, 1, 32], strides = [1, 1, 1]} : vector<8x8x32xf32> to vector<8x1x32xf32>
    %105 = vector.extract_strided_slice %103 {offsets = [0, 0, 0], sizes = [8, 7, 32], strides = [1, 1, 1]} : vector<8x8x32xf32> to vector<8x7x32xf32>
    %106 = tpu.concatenate %104, %105 in 1 : vector<8x1x32xf32>, vector<8x7x32xf32> -> vector<8x8x32xf32>
    %107 = arith.addf %102, %106 : vector<8x8x32xf32>
    %108 = arith.addf %107, %0 : vector<8x8x32xf32>
    %cst_46 = arith.constant dense<0.000000e+00> : vector<8x32xf32>
    %109 = vector.multi_reduction <add>, %108, %cst_46 [1] : vector<8x8x32xf32> to vector<8x32xf32>
    %cst_47 = arith.constant 8.000000e+00 : f32
    %110 = vector.broadcast %cst_47 : f32 to vector<8x32xf32>
    %111 = arith.divf %109, %110 : vector<8x32xf32>
    %112 = arith.mulf %108, %108 : vector<8x8x32xf32>
    %cst_48 = arith.constant dense<0.000000e+00> : vector<8x8xf32>
    %113 = vector.multi_reduction <add>, %112, %cst_48 [2] : vector<8x8x32xf32> to vector<8x8xf32>
    %114 = vector.shape_cast %113 : vector<8x8xf32> to vector<8x8x1xf32>
    %115 = math.rsqrt %114 : vector<8x8x1xf32>
    %cst_49 = arith.constant 1.000000e+04 : f32
    %116 = vector.broadcast %cst_49 : f32 to vector<8x8x1xf32>
    %117 = arith.minimumf %115, %116 : vector<8x8x1xf32>
    %118 = vector.broadcast %117 : vector<8x8x1xf32> to vector<8x8x32xf32>
    %119 = arith.mulf %108, %118 : vector<8x8x32xf32>
    %c0_50 = arith.constant 0 : index
    %c0_51 = arith.constant 0 : index
    %c0_52 = arith.constant 0 : index
    %120 = vector.load %arg13[%c0_50, %c0_51, %c0_52] : memref<8x8x32xf32, #tpu.memory_space<vmem>>, vector<8x8x32xf32>
    tpu.vector_store %arg13[%c0_50, %c0_51, %c0_52], %119 {strides = array<i32>} : memref<8x8x32xf32, #tpu.memory_space<vmem>>, vector<8x8x32xf32>,
    %121 = arith.mulf %111, %111 : vector<8x32xf32>
    %cst_53 = arith.constant dense<0.000000e+00> : vector<8xf32>
    %122 = vector.multi_reduction <add>, %121, %cst_53 [1] : vector<8x32xf32> to vector<8xf32>
    %123 = vector.shape_cast %122 : vector<8xf32> to vector<8x1xf32>
    %124 = math.rsqrt %123 : vector<8x1xf32>
    %cst_54 = arith.constant 1.000000e+04 : f32
    %125 = vector.broadcast %cst_54 : f32 to vector<8x1xf32>
    %126 = arith.minimumf %124, %125 : vector<8x1xf32>
    %127 = vector.broadcast %126 : vector<8x1xf32> to vector<8x32xf32>
    %128 = arith.mulf %111, %127 : vector<8x32xf32>
    %c0_55 = arith.constant 0 : index
    %c0_56 = arith.constant 0 : index
    %129 = vector.load %arg14[%c0_55, %c0_56] : memref<8x32xf32, #tpu.memory_space<vmem>>, vector<8x32xf32>
    tpu.vector_store %arg14[%c0_55, %c0_56], %128 {strides = array<i32>} : memref<8x32xf32, #tpu.memory_space<vmem>>, vector<8x32xf32>,
    return
  }
  func.func @transform_0(%arg0: i32) -> (i32, i32, i32) {
    %c0_i32 = arith.constant 0 : i32
    %c0_i32_0 = arith.constant 0 : i32
    %c0_i32_1 = arith.constant 0 : i32
    return %arg0, %c0_i32, %c0_i32_0 : i32, i32, i32
  }
  func.func @transform_1(%arg0: i32) -> (i32, i32) {
    %c0_i32 = arith.constant 0 : i32
    %c0_i32_0 = arith.constant 0 : i32
    %c0_i32_1 = arith.constant 0 : i32
    return %c0_i32, %c0_i32_0 : i32, i32
  }
  func.func @transform_2(%arg0: i32) -> (i32, i32) {
    %c0_i32 = arith.constant 0 : i32
    %c0_i32_0 = arith.constant 0 : i32
    %c0_i32_1 = arith.constant 0 : i32
    return %c0_i32, %c0_i32_0 : i32, i32
  }
  func.func @transform_3(%arg0: i32) -> (i32, i32) {
    %c0_i32 = arith.constant 0 : i32
    %c0_i32_0 = arith.constant 0 : i32
    %c0_i32_1 = arith.constant 0 : i32
    return %c0_i32, %c0_i32_0 : i32, i32
  }
  func.func @transform_4(%arg0: i32) -> (i32, i32, i32) {
    %c0_i32 = arith.constant 0 : i32
    %c0_i32_0 = arith.constant 0 : i32
    %c0_i32_1 = arith.constant 0 : i32
    %c0_i32_2 = arith.constant 0 : i32
    return %c0_i32, %c0_i32_0, %c0_i32_1 : i32, i32, i32
  }
  func.func @transform_5(%arg0: i32) -> (i32, i32) {
    %c0_i32 = arith.constant 0 : i32
    %c0_i32_0 = arith.constant 0 : i32
    %c0_i32_1 = arith.constant 0 : i32
    return %c0_i32, %c0_i32_0 : i32, i32
  }
  func.func @transform_6(%arg0: i32) -> (i32, i32) {
    %c0_i32 = arith.constant 0 : i32
    %c0_i32_0 = arith.constant 0 : i32
    %c0_i32_1 = arith.constant 0 : i32
    return %c0_i32, %c0_i32_0 : i32, i32
  }
  func.func @transform_7(%arg0: i32) -> (i32, i32, i32) {
    %c0_i32 = arith.constant 0 : i32
    %c0_i32_0 = arith.constant 0 : i32
    %c0_i32_1 = arith.constant 0 : i32
    %c0_i32_2 = arith.constant 0 : i32
    return %c0_i32, %c0_i32_0, %c0_i32_1 : i32, i32, i32
  }
  func.func @transform_8(%arg0: i32) -> (i32, i32) {
    %c0_i32 = arith.constant 0 : i32
    %c0_i32_0 = arith.constant 0 : i32
    %c0_i32_1 = arith.constant 0 : i32
    return %c0_i32, %c0_i32_0 : i32, i32
  }
  func.func @transform_9(%arg0: i32) -> (i32, i32) {
    %c0_i32 = arith.constant 0 : i32
    %c0_i32_0 = arith.constant 0 : i32
    %c0_i32_1 = arith.constant 0 : i32
    return %c0_i32, %c0_i32_0 : i32, i32
  }
  func.func @transform_10(%arg0: i32) -> (i32, i32) {
    %c0_i32 = arith.constant 0 : i32
    %c0_i32_0 = arith.constant 0 : i32
    %c0_i32_1 = arith.constant 0 : i32
    return %c0_i32, %c0_i32_0 : i32, i32
  }
  func.func @transform_11(%arg0: i32) -> (i32, i32) {
    %c0_i32 = arith.constant 0 : i32
    %c0_i32_0 = arith.constant 0 : i32
    %c0_i32_1 = arith.constant 0 : i32
    return %c0_i32, %c0_i32_0 : i32, i32
  }
  func.func @transform_12(%arg0: i32) -> (i32, i32, i32) {
    %c0_i32 = arith.constant 0 : i32
    %c0_i32_0 = arith.constant 0 : i32
    %c0_i32_1 = arith.constant 0 : i32
    return %arg0, %c0_i32, %c0_i32_0 : i32, i32, i32
  }
  func.func @transform_13(%arg0: i32) -> (i32, i32) {
    %c0_i32 = arith.constant 0 : i32
    %c0_i32_0 = arith.constant 0 : i32
    return %arg0, %c0_i32 : i32, i32
  }
}

</mosaic_0001>

<llo_original>
// kernel: tpu_custom_call.1
$region0: #{tpu_custom_call.1}
  #allocation0 [shape = 'u32[]', space=smem, size = 0x4, offset = 0x4, fixed_abs, tag = 'smem constant byte address 0x4 - core index']
  #allocation1 [shape = 'u32[144,128]{1,0:T(1,128)}', space=vmem, size = 0x12000, scoped, tag = 'internal scratch']
  %s0 = inlined_call_operand.vmem [shape: f32[16,8,32], index: 0, kind: input, shape index: {}]
  %s1 = inlined_call_operand.vmem [shape: bf16[96,256], index: 1, kind: input, shape index: {}]
  %s2 = inlined_call_operand.vmem [shape: f32[1,256], index: 2, kind: input, shape index: {}]
  %s3 = inlined_call_operand.hbm [shape: f32[1,256], index: 3, kind: input, shape index: {}]
  %s4 = inlined_call_operand.hbm [shape: bf16[3,256,512], index: 4, kind: input, shape index: {}]
  %s5 = inlined_call_operand.vmem [shape: f32[1,512], index: 5, kind: input, shape index: {}]
  %s6 = inlined_call_operand.vmem [shape: f32[1,512], index: 6, kind: input, shape index: {}]
  %s7 = inlined_call_operand.hbm [shape: bf16[3,512,256], index: 7, kind: input, shape index: {}]
  %s8 = inlined_call_operand.vmem [shape: f32[1,256], index: 8, kind: input, shape index: {}]
  %s9 = inlined_call_operand.vmem [shape: f32[1,256], index: 9, kind: input, shape index: {}]
  %s10 = inlined_call_operand.vmem [shape: bf16[256,96], index: 10, kind: input, shape index: {}]
  %s11 = inlined_call_operand.vmem [shape: f32[1,32], index: 11, kind: input, shape index: {}]
  %s12 = inlined_call_operand.hbm [shape: f32[16,8,32], index: 12, kind: output, shape index: {0}]
  %s13 = inlined_call_operand.hbm [shape: f32[16,32], index: 13, kind: output, shape index: {1}]
  %14 = xla_tuple %s12, %s13
  %s15 = sld [smem:[#allocation0]]
  $region101: #{tpu_custom_call.1} parent=0
    _
  %s17 = ssub.s32 1, %s15
  %s18 = scalar_select 0, %s17, %s15
  $region1: #{tpu_custom_call.1} parent=0
    #allocation2 [shape = 'u8[1024]{0}', space=vmem, size = 0x400, scoped, tag = 'input window, operand 3, single buffered']
    #allocation3 [shape = 's32[2]{0}', space=sflag, size = 0x8, scoped, tag = 'scoped memory for tpu_custom_call.1']
    #allocation4 [shape = 's32[2]{0}', space=sflag, size = 0x8, scoped, tag = 'scoped memory for tpu_custom_call.1']
    #allocation5 [shape = 'u8[786432]{0}', space=vmem, size = 0xc0000, scoped, tag = 'input window, operand 4, single buffered']
    #allocation6 [shape = 's32[1]{0}', space=sflag, size = 0x4, scoped, tag = 'scoped memory for tpu_custom_call.1']
    #allocation7 [shape = 'u8[786432]{0}', space=vmem, size = 0xc0000, scoped, tag = 'input window, operand 7, single buffered']
    #allocation8 [shape = 'u8[65536]{0}', space=vmem, size = 0x10000, scoped, tag = 'output window, operand 0']
    #allocation9 [shape = 'u8[8192]{0}', space=vmem, size = 0x2000, scoped, tag = 'output window, operand 1']
    #allocation10 [shape = 's32[2]{0}', space=sflag, size = 0x8, scoped, tag = 'scoped memory for tpu_custom_call.1']
    %19 = vsyncpa [#allocation3], 0
    %20 = vsyncpa [#allocation6], 0
    %21 = vsyncpa [#allocation4], 0
    %s22 = scalar_lea.sflag [#allocation4], 1
    %23 = vsyncpa %s22, 0
    %24 = vsyncpa [#allocation10], 0
    %s25 = scalar_lea.sflag [#allocation10], 1
    %26 = vsyncpa %s25, 0
    loop: start=0, step=1, limit=4
    $region2: #{tpu_custom_call.1} parent=1 // loop_pre_header
      _
    $region3: #{tpu_custom_call.1} parent=1 // loop_header
      %s28 = sphi 0, %s32
      %p29 = scmp.ge.s32.totalorder %s28, 4
      %s38 = sphi 0, %s40
      %s41 = sphi 0, %s38
      %s42 = sphi 0, %s41
      %s58 = sphi 0, %s42
      %s62 = sphi 0, %s62
      %s64 = sphi 0, %s62
      %s65 = sphi 0, %s64
      %s79 = sphi 0, %s65
      %s83 = sphi 0, %s83
      %s85 = sphi 0, %s83
      %s86 = sphi 0, %s85
      %s100 = sphi 0, %s86
      %s104 = sphi 0, %s104
      %s106 = sphi 0, %s104
      %s107 = sphi 0, %s106
      %s121 = sphi 0, %s107
      %s125 = sphi 0, %s125
      %s127 = sphi 0, %s125
      %s128 = sphi 0, %s127
      %s142 = sphi 0, %s128
      %s146 = sphi 0, %s146
      %s148 = sphi 0, %s146
      %s149 = sphi 0, %s148
      %s163 = sphi 0, %s149
      %s167 = sphi 0, %s167
      %s169 = sphi 0, %s167
      %s170 = sphi 0, %s169
      %s184 = sphi 0, %s170
      %s188 = sphi 0, %s188
      %s190 = sphi 0, %s188
      %s191 = sphi 0, %s190
      %s205 = sphi 0, %s191
      %s209 = sphi 0, %s209
      %s211 = sphi 0, %s209
      %s212 = sphi 0, %s211
      %s226 = sphi 0, %s212
      %s230 = sphi 0, %s230
      %s232 = sphi 0, %s230
      %s233 = sphi 0, %s232
      %s247 = sphi 0, %s233
      %s251 = sphi 0, %s251
      %s253 = sphi 0, %s251
      %s254 = sphi 0, %s253
      %s268 = sphi 0, %s254
      %s272 = sphi 0, %s272
      %s274 = sphi 0, %s272
      %s275 = sphi 0, %s274
      %s289 = sphi 0, %s275
      %s295 = sphi 0, %s297
      %s298 = sphi 0, %s295
      %s299 = sphi 0, %s298
      %s315 = sphi 0, %s299
      %s321 = sphi 0, %s323
      %s324 = sphi 0, %s321
      %s325 = sphi 0, %s324
      %s341 = sphi 0, %s325
    $region4: #{tpu_custom_call.1} parent=1 // loop_header_branch
      %31 = sbr.rel (%p29) target = $region8
    $region5: #{tpu_custom_call.1} parent=1 // loop_body
      %s33 = ssub.s32 %s28, 1
      %s34 = ssub.s32 %s28, 2
      %s35 = sadd.s32 %s28, 1
      %s36 = ssub.s32 %s28, %s35
      %p37 = scmp.eq.s32.totalorder %s36, 0
      %s39 = sadd.s32 %s38, 1
      %s40 = scalar_select %p37, %s38, %s39
      %p43 = pneg %p37
      %p44 = scmp.eq.s32.totalorder %s28, 1
      %p45 = por %p43, %p44
      %p46 = scmp.ne.s32.totalorder %s38, %s41
      %p47 = scmp.eq.s32.totalorder %s28, 0
      %p48 = por %p46, %p47
      %p49 = scmp.ne.s32.totalorder %s38, %s41
      %p50 = scmp.eq.s32.totalorder %s33, 1
      %p51 = por %p49, %p50
      %p52 = scmp.ne.s32.totalorder %s41, %s42
      %p53 = scmp.eq.s32.totalorder %s33, 0
      %p54 = por %p52, %p53
      %p55 = scmp.ne.s32.totalorder %s41, %s42
      %p56 = scmp.eq.s32.totalorder %s34, 1
      %p57 = por %p55, %p56
      %p59 = scmp.ne.s32.totalorder %s42, %s58
      %p60 = scmp.eq.s32.totalorder %s34, 0
      %p61 = por %p59, %p60
      %s63 = sadd.s32 %s62, 1
      %p66 = scmp.eq.s32.totalorder %s28, 1
      %p67 = scmp.ne.s32.totalorder %s62, %s64
      %p68 = scmp.eq.s32.totalorder %s28, 0
      %p69 = por %p67, %p68
      %p70 = scmp.ne.s32.totalorder %s62, %s64
      %p71 = scmp.eq.s32.totalorder %s33, 1
      %p72 = por %p70, %p71
      %p73 = scmp.ne.s32.totalorder %s64, %s65
      %p74 = scmp.eq.s32.totalorder %s33, 0
      %p75 = por %p73, %p74
      %p76 = scmp.ne.s32.totalorder %s64, %s65
      %p77 = scmp.eq.s32.totalorder %s34, 1
      %p78 = por %p76, %p77
      %p80 = scmp.ne.s32.totalorder %s65, %s79
      %p81 = scmp.eq.s32.totalorder %s34, 0
      %p82 = por %p80, %p81
      %s84 = sadd.s32 %s83, 1
      %p87 = scmp.eq.s32.totalorder %s28, 1
      %p88 = scmp.ne.s32.totalorder %s83, %s85
      %p89 = scmp.eq.s32.totalorder %s28, 0
      %p90 = por %p88, %p89
      %p91 = scmp.ne.s32.totalorder %s83, %s85
      %p92 = scmp.eq.s32.totalorder %s33, 1
      %p93 = por %p91, %p92
      %p94 = scmp.ne.s32.totalorder %s85, %s86
      %p95 = scmp.eq.s32.totalorder %s33, 0
      %p96 = por %p94, %p95
      %p97 = scmp.ne.s32.totalorder %s85, %s86
      %p98 = scmp.eq.s32.totalorder %s34, 1
      %p99 = por %p97, %p98
      %p101 = scmp.ne.s32.totalorder %s86, %s100
      %p102 = scmp.eq.s32.totalorder %s34, 0
      %p103 = por %p101, %p102
      %s105 = sadd.s32 %s104, 1
      %p108 = scmp.eq.s32.totalorder %s28, 1
      %p109 = scmp.ne.s32.totalorder %s104, %s106
      %p110 = scmp.eq.s32.totalorder %s28, 0
      %p111 = por %p109, %p110
      %p112 = scmp.ne.s32.totalorder %s104, %s106
      %p113 = scmp.eq.s32.totalorder %s33, 1
      %p114 = por %p112, %p113
      %p115 = scmp.ne.s32.totalorder %s106, %s107
      %p116 = scmp.eq.s32.totalorder %s33, 0
      %p117 = por %p115, %p116
      %p118 = scmp.ne.s32.totalorder %s106, %s107
      %p119 = scmp.eq.s32.totalorder %s34, 1
      %p120 = por %p118, %p119
      %p122 = scmp.ne.s32.totalorder %s107, %s121
      %p123 = scmp.eq.s32.totalorder %s34, 0
      %p124 = por %p122, %p123
      %s126 = sadd.s32 %s125, 1
      %p129 = scmp.eq.s32.totalorder %s28, 1
      %p130 = scmp.ne.s32.totalorder %s125, %s127
      %p131 = scmp.eq.s32.totalorder %s28, 0
      %p132 = por %p130, %p131
      %p133 = scmp.ne.s32.totalorder %s125, %s127
      %p134 = scmp.eq.s32.totalorder %s33, 1
      %p135 = por %p133, %p134
      %p136 = scmp.ne.s32.totalorder %s127, %s128
      %p137 = scmp.eq.s32.totalorder %s33, 0
      %p138 = por %p136, %p137
      %p139 = scmp.ne.s32.totalorder %s127, %s128
      %p140 = scmp.eq.s32.totalorder %s34, 1
      %p141 = por %p139, %p140
      %p143 = scmp.ne.s32.totalorder %s128, %s142
      %p144 = scmp.eq.s32.totalorder %s34, 0
      %p145 = por %p143, %p144
      %s147 = sadd.s32 %s146, 1
      %p150 = scmp.eq.s32.totalorder %s28, 1
      %p151 = scmp.ne.s32.totalorder %s146, %s148
      %p152 = scmp.eq.s32.totalorder %s28, 0
      %p153 = por %p151, %p152
      %p154 = scmp.ne.s32.totalorder %s146, %s148
      %p155 = scmp.eq.s32.totalorder %s33, 1
      %p156 = por %p154, %p155
      %p157 = scmp.ne.s32.totalorder %s148, %s149
      %p158 = scmp.eq.s32.totalorder %s33, 0
      %p159 = por %p157, %p158
      %p160 = scmp.ne.s32.totalorder %s148, %s149
      %p161 = scmp.eq.s32.totalorder %s34, 1
      %p162 = por %p160, %p161
      %p164 = scmp.ne.s32.totalorder %s149, %s163
      %p165 = scmp.eq.s32.totalorder %s34, 0
      %p166 = por %p164, %p165
      %s168 = sadd.s32 %s167, 1
      %p171 = scmp.eq.s32.totalorder %s28, 1
      %p172 = scmp.ne.s32.totalorder %s167, %s169
      %p173 = scmp.eq.s32.totalorder %s28, 0
      %p174 = por %p172, %p173
      %p175 = scmp.ne.s32.totalorder %s167, %s169
      %p176 = scmp.eq.s32.totalorder %s33, 1
      %p177 = por %p175, %p176
      %p178 = scmp.ne.s32.totalorder %s169, %s170
      %p179 = scmp.eq.s32.totalorder %s33, 0
      %p180 = por %p178, %p179
      %p181 = scmp.ne.s32.totalorder %s169, %s170
      %p182 = scmp.eq.s32.totalorder %s34, 1
      %p183 = por %p181, %p182
      %p185 = scmp.ne.s32.totalorder %s170, %s184
      %p186 = scmp.eq.s32.totalorder %s34, 0
      %p187 = por %p185, %p186
      %s189 = sadd.s32 %s188, 1
      %p192 = scmp.eq.s32.totalorder %s28, 1
      %p193 = scmp.ne.s32.totalorder %s188, %s190
      %p194 = scmp.eq.s32.totalorder %s28, 0
      %p195 = por %p193, %p194
      %p196 = scmp.ne.s32.totalorder %s188, %s190
      %p197 = scmp.eq.s32.totalorder %s33, 1
      %p198 = por %p196, %p197
      %p199 = scmp.ne.s32.totalorder %s190, %s191
      %p200 = scmp.eq.s32.totalorder %s33, 0
      %p201 = por %p199, %p200
      %p202 = scmp.ne.s32.totalorder %s190, %s191
      %p203 = scmp.eq.s32.totalorder %s34, 1
      %p204 = por %p202, %p203
      %p206 = scmp.ne.s32.totalorder %s191, %s205
      %p207 = scmp.eq.s32.totalorder %s34, 0
      %p208 = por %p206, %p207
      %s210 = sadd.s32 %s209, 1
      %p213 = scmp.eq.s32.totalorder %s28, 1
      %p214 = scmp.ne.s32.totalorder %s209, %s211
      %p215 = scmp.eq.s32.totalorder %s28, 0
      %p216 = por %p214, %p215
      %p217 = scmp.ne.s32.totalorder %s209, %s211
      %p218 = scmp.eq.s32.totalorder %s33, 1
      %p219 = por %p217, %p218
      %p220 = scmp.ne.s32.totalorder %s211, %s212
      %p221 = scmp.eq.s32.totalorder %s33, 0
      %p222 = por %p220, %p221
      %p223 = scmp.ne.s32.totalorder %s211, %s212
      %p224 = scmp.eq.s32.totalorder %s34, 1
      %p225 = por %p223, %p224
      %p227 = scmp.ne.s32.totalorder %s212, %s226
      %p228 = scmp.eq.s32.totalorder %s34, 0
      %p229 = por %p227, %p228
      %s231 = sadd.s32 %s230, 1
      %p234 = scmp.eq.s32.totalorder %s28, 1
      %p235 = scmp.ne.s32.totalorder %s230, %s232
      %p236 = scmp.eq.s32.totalorder %s28, 0
      %p237 = por %p235, %p236
      %p238 = scmp.ne.s32.totalorder %s230, %s232
      %p239 = scmp.eq.s32.totalorder %s33, 1
      %p240 = por %p238, %p239
      %p241 = scmp.ne.s32.totalorder %s232, %s233
      %p242 = scmp.eq.s32.totalorder %s33, 0
      %p243 = por %p241, %p242
      %p244 = scmp.ne.s32.totalorder %s232, %s233
      %p245 = scmp.eq.s32.totalorder %s34, 1
      %p246 = por %p244, %p245
      %p248 = scmp.ne.s32.totalorder %s233, %s247
      %p249 = scmp.eq.s32.totalorder %s34, 0
      %p250 = por %p248, %p249
      %s252 = sadd.s32 %s251, 1
      %p255 = scmp.eq.s32.totalorder %s28, 1
      %p256 = scmp.ne.s32.totalorder %s251, %s253
      %p257 = scmp.eq.s32.totalorder %s28, 0
      %p258 = por %p256, %p257
      %p259 = scmp.ne.s32.totalorder %s251, %s253
      %p260 = scmp.eq.s32.totalorder %s33, 1
      %p261 = por %p259, %p260
      %p262 = scmp.ne.s32.totalorder %s253, %s254
      %p263 = scmp.eq.s32.totalorder %s33, 0
      %p264 = por %p262, %p263
      %p265 = scmp.ne.s32.totalorder %s253, %s254
      %p266 = scmp.eq.s32.totalorder %s34, 1
      %p267 = por %p265, %p266
      %p269 = scmp.ne.s32.totalorder %s254, %s268
      %p270 = scmp.eq.s32.totalorder %s34, 0
      %p271 = por %p269, %p270
      %s273 = sadd.s32 %s272, 1
      %p276 = scmp.eq.s32.totalorder %s28, 1
      %p277 = scmp.ne.s32.totalorder %s272, %s274
      %p278 = scmp.eq.s32.totalorder %s28, 0
      %p279 = por %p277, %p278
      %p280 = scmp.ne.s32.totalorder %s272, %s274
      %p281 = scmp.eq.s32.totalorder %s33, 1
      %p282 = por %p280, %p281
      %p283 = scmp.ne.s32.totalorder %s274, %s275
      %p284 = scmp.eq.s32.totalorder %s33, 0
      %p285 = por %p283, %p284
      %p286 = scmp.ne.s32.totalorder %s274, %s275
      %p287 = scmp.eq.s32.totalorder %s34, 1
      %p288 = por %p286, %p287
      %p290 = scmp.ne.s32.totalorder %s275, %s289
      %p291 = scmp.eq.s32.totalorder %s34, 0
      %p292 = por %p290, %p291
      %s293 = ssub.s32 %s28, %s35
      %p294 = scmp.eq.s32.totalorder %s293, 0
      %s296 = sadd.s32 %s295, 1
      %s297 = scalar_select %p294, %s295, %s296
      %p300 = pneg %p294
      %p301 = scmp.eq.s32.totalorder %s28, 1
      %p302 = por %p300, %p301
      %p303 = scmp.ne.s32.totalorder %s295, %s298
      %p304 = scmp.eq.s32.totalorder %s28, 0
      %p305 = por %p303, %p304
      %p306 = scmp.ne.s32.totalorder %s295, %s298
      %p307 = scmp.eq.s32.totalorder %s33, 1
      %p308 = por %p306, %p307
      %p309 = scmp.ne.s32.totalorder %s298, %s299
      %p310 = scmp.eq.s32.totalorder %s33, 0
      %p311 = por %p309, %p310
      %p312 = scmp.ne.s32.totalorder %s298, %s299
      %p313 = scmp.eq.s32.totalorder %s34, 1
      %p314 = por %p312, %p313
      %p316 = scmp.ne.s32.totalorder %s299, %s315
      %p317 = scmp.eq.s32.totalorder %s34, 0
      %p318 = por %p316, %p317
      %s319 = ssub.s32 %s28, %s35
      %p320 = scmp.eq.s32.totalorder %s319, 0
      %s322 = sadd.s32 %s321, 1
      %s323 = scalar_select %p320, %s321, %s322
      %p326 = pneg %p320
      %p327 = scmp.eq.s32.totalorder %s28, 1
      %p328 = por %p326, %p327
      %p329 = scmp.ne.s32.totalorder %s321, %s324
      %p330 = scmp.eq.s32.totalorder %s28, 0
      %p331 = por %p329, %p330
      %p332 = scmp.ne.s32.totalorder %s321, %s324
      %p333 = scmp.eq.s32.totalorder %s33, 1
      %p334 = por %p332, %p333
      %p335 = scmp.ne.s32.totalorder %s324, %s325
      %p336 = scmp.eq.s32.totalorder %s33, 0
      %p337 = por %p335, %p336
      %p338 = scmp.ne.s32.totalorder %s324, %s325
      %p339 = scmp.eq.s32.totalorder %s34, 1
      %p340 = por %p338, %p339
      %p342 = scmp.ne.s32.totalorder %s325, %s341
      %p343 = scmp.eq.s32.totalorder %s34, 0
      %p344 = por %p342, %p343
      %p345 = scmp.le.s32.totalorder 1, %s28
      %p346 = scmp.lt.s32.totalorder %s28, 3
      %p347 = pnand %p345, %p346
      %p348 = pneg %p347
      // Predicated region
      $region9: #{tpu_custom_call.1} parent=5 // pred_check
        _
      $region10: #{tpu_custom_call.1} parent=5 // pred_check_branch
        %350 = sbr.rel (%p347) target = $region12
      $region11: #{tpu_custom_call.1} parent=5 // pred_region
        %s351 = ssub.s32 %s28, 1
        // Predicated region
        $region13: #{tpu_custom_call.1} parent=11 // pred_check
          %p352 = pneg %p75
        $region14: #{tpu_custom_call.1} parent=11 // pred_check_branch
          %354 = sbr.rel (%p352) target = $region16
        $region15: #{tpu_custom_call.1} parent=11 // pred_region
          _
        $region16: #{tpu_custom_call.1} parent=11 // pred_fallthru
          _
        // Predicated region
        $region17: #{tpu_custom_call.1} parent=11 // pred_check
          %p355 = pneg %p96
        $region18: #{tpu_custom_call.1} parent=11 // pred_check_branch
          %357 = sbr.rel (%p355) target = $region20
        $region19: #{tpu_custom_call.1} parent=11 // pred_region
          _
        $region20: #{tpu_custom_call.1} parent=11 // pred_fallthru
          _
        // Predicated region
        $region21: #{tpu_custom_call.1} parent=11 // pred_check
          %p358 = pneg %p117
        $region22: #{tpu_custom_call.1} parent=11 // pred_check_branch
          %360 = sbr.rel (%p358) target = $region24
        $region23: #{tpu_custom_call.1} parent=11 // pred_region
          %s362 = ssub.s32 32, 32
          %363 = vsyncadd [#allocation3], %s362
          %s365 = sshll.u32 [#allocation2], 4
          %s366 = int_to_ptr.vmem [resolvable:$true] %s365
          %368 = dma.hbm_to_vmem [thread:$0]  %s3, 32, %s366, [#allocation3]
        $region24: #{tpu_custom_call.1} parent=11 // pred_fallthru
          _
        // Predicated region
        $region25: #{tpu_custom_call.1} parent=11 // pred_check
          %p369 = pneg %p138
        $region26: #{tpu_custom_call.1} parent=11 // pred_check_branch
          %371 = sbr.rel (%p369) target = $region28
        $region27: #{tpu_custom_call.1} parent=11 // pred_region
          %s373 = ssub.s32 24576, 24576
          %374 = vsyncadd [#allocation6], %s373
          %s375 = sshll.u32 [#allocation5], 4
          %s376 = int_to_ptr.vmem [resolvable:$true] %s375
          %381 = dma.hbm_to_vmem [thread:$0]  %s4, 24576, %s376, [#allocation6], 256, 256, 16
        $region28: #{tpu_custom_call.1} parent=11 // pred_fallthru
          _
        // Predicated region
        $region29: #{tpu_custom_call.1} parent=11 // pred_check
          %p382 = pneg %p159
        $region30: #{tpu_custom_call.1} parent=11 // pred_check_branch
          %384 = sbr.rel (%p382) target = $region32
        $region31: #{tpu_custom_call.1} parent=11 // pred_region
          _
        $region32: #{tpu_custom_call.1} parent=11 // pred_fallthru
          _
        // Predicated region
        $region33: #{tpu_custom_call.1} parent=11 // pred_check
          %p385 = pneg %p180
        $region34: #{tpu_custom_call.1} parent=11 // pred_check_branch
          %387 = sbr.rel (%p385) target = $region36
        $region35: #{tpu_custom_call.1} parent=11 // pred_region
          _
        $region36: #{tpu_custom_call.1} parent=11 // pred_fallthru
          _
        // Predicated region
        $region37: #{tpu_custom_call.1} parent=11 // pred_check
          %p388 = pneg %p201
        $region38: #{tpu_custom_call.1} parent=11 // pred_check_branch
          %390 = sbr.rel (%p388) target = $region40
        $region39: #{tpu_custom_call.1} parent=11 // pred_region
          %s392 = ssub.s32 24576, 24576
          %393 = vsyncadd [#allocation6], %s392
          %s394 = sshll.u32 [#allocation7], 4
          %s395 = int_to_ptr.vmem [resolvable:$true] %s394
          %400 = dma.hbm_to_vmem [thread:$0]  %s7, 24576, %s395, [#allocation6], 128, 128, 8
        $region40: #{tpu_custom_call.1} parent=11 // pred_fallthru
          _
        // Predicated region
        $region41: #{tpu_custom_call.1} parent=11 // pred_check
          %p401 = pneg %p222
        $region42: #{tpu_custom_call.1} parent=11 // pred_check_branch
          %403 = sbr.rel (%p401) target = $region44
        $region43: #{tpu_custom_call.1} parent=11 // pred_region
          _
        $region44: #{tpu_custom_call.1} parent=11 // pred_fallthru
          _
        // Predicated region
        $region45: #{tpu_custom_call.1} parent=11 // pred_check
          %p404 = pneg %p243
        $region46: #{tpu_custom_call.1} parent=11 // pred_check_branch
          %406 = sbr.rel (%p404) target = $region48
        $region47: #{tpu_custom_call.1} parent=11 // pred_region
          _
        $region48: #{tpu_custom_call.1} parent=11 // pred_fallthru
          _
        // Predicated region
        $region49: #{tpu_custom_call.1} parent=11 // pred_check
          %p407 = pneg %p264
        $region50: #{tpu_custom_call.1} parent=11 // pred_check_branch
          %409 = sbr.rel (%p407) target = $region52
        $region51: #{tpu_custom_call.1} parent=11 // pred_region
          _
        $region52: #{tpu_custom_call.1} parent=11 // pred_fallthru
          _
        // Predicated region
        $region53: #{tpu_custom_call.1} parent=11 // pred_check
          %p410 = pneg %p285
        $region54: #{tpu_custom_call.1} parent=11 // pred_check_branch
          %412 = sbr.rel (%p410) target = $region56
        $region55: #{tpu_custom_call.1} parent=11 // pred_region
          _
        $region56: #{tpu_custom_call.1} parent=11 // pred_fallthru
          _
      $region12: #{tpu_custom_call.1} parent=5 // pred_fallthru
        _
      %p413 = scmp.lt.s32.totalorder %s28, 2
      // Predicated region
      $region57: #{tpu_custom_call.1} parent=5 // pred_check
        %p414 = pneg %p413
      $region58: #{tpu_custom_call.1} parent=5 // pred_check_branch
        %416 = sbr.rel (%p414) target = $region60
      $region59: #{tpu_custom_call.1} parent=5 // pred_region
        // Predicated region
        $region61: #{tpu_custom_call.1} parent=59 // pred_check
          %p417 = pneg %p48
        $region62: #{tpu_custom_call.1} parent=59 // pred_check_branch
          %419 = sbr.rel (%p417) target = $region64
        $region63: #{tpu_custom_call.1} parent=59 // pred_region
          %s420 = smul.u32 8, %s28
          %p421 = scmp.lt.s32.totalorder %s420, 15
          %s422 = scalar_select %p421, %s420, 15
          %s423 = smul.addr %s422, 8
          %s424 = scalar_lea.vmem %s0, %s423
          %s425 = smul.u32 8, %s28
        $region64: #{tpu_custom_call.1} parent=59 // pred_fallthru
          _
      $region60: #{tpu_custom_call.1} parent=5 // pred_fallthru
        _
      %p426 = scmp.le.s32.totalorder 1, %s28
      %p427 = scmp.lt.s32.totalorder %s28, 3
      %p428 = pnand %p426, %p427
      %p429 = pneg %p428
      // Predicated region
      $region65: #{tpu_custom_call.1} parent=5 // pred_check
        _
      $region66: #{tpu_custom_call.1} parent=5 // pred_check_branch
        %431 = sbr.rel (%p428) target = $region68
      $region67: #{tpu_custom_call.1} parent=5 // pred_region
        %s432 = ssub.s32 %s28, 1
        // Predicated region
        $region69: #{tpu_custom_call.1} parent=67 // pred_check
          %p433 = pneg %p117
        $region70: #{tpu_custom_call.1} parent=67 // pred_check_branch
          %435 = sbr.rel (%p433) target = $region72
        $region71: #{tpu_custom_call.1} parent=67 // pred_region
          %436 = dma.done [#allocation3], 32
        $region72: #{tpu_custom_call.1} parent=67 // pred_fallthru
          _
        // Predicated region
        $region73: #{tpu_custom_call.1} parent=67 // pred_check
          %p437 = pneg %p138
        $region74: #{tpu_custom_call.1} parent=67 // pred_check_branch
          %439 = sbr.rel (%p437) target = $region76
        $region75: #{tpu_custom_call.1} parent=67 // pred_region
          %440 = dma.done [#allocation6], 24576
        $region76: #{tpu_custom_call.1} parent=67 // pred_fallthru
          _
        // Predicated region
        $region77: #{tpu_custom_call.1} parent=67 // pred_check
          %p441 = pneg %p201
        $region78: #{tpu_custom_call.1} parent=67 // pred_check_branch
          %443 = sbr.rel (%p441) target = $region80
        $region79: #{tpu_custom_call.1} parent=67 // pred_region
          %444 = dma.done [#allocation6], 24576
        $region80: #{tpu_custom_call.1} parent=67 // pred_fallthru
          _
        %s445 = smul.u32 8, %s33
        %p446 = scmp.lt.s32.totalorder %s445, 15
        %s447 = scalar_select %p446, %s445, 15
        %s448 = smul.addr %s447, 8
        %s449 = scalar_lea.vmem %s0, %s448
        %p450 = pneg %p54
        %p451 = pneg %p51
        %p452 = pneg %p75
        %p453 = pneg %p72
        %p454 = pneg %p96
        %p455 = pneg %p93
        %p456 = pneg %p117
        %p457 = pneg %p114
        %p458 = pneg %p138
        %p459 = pneg %p135
        %p460 = pneg %p159
        %p461 = pneg %p156
        %p462 = pneg %p180
        %p463 = pneg %p177
        %p464 = pneg %p201
        %p465 = pneg %p198
        %p466 = pneg %p222
        %p467 = pneg %p219
        %p468 = pneg %p243
        %p469 = pneg %p240
        %p470 = pneg %p264
        %p471 = pneg %p261
        %p472 = pneg %p285
        %p473 = pneg %p282
        %p474 = pneg %p311
        %p475 = pneg %p308
        %s476 = sand.u32 %s298, 1
        %s477 = scalar_lea.sflag [#allocation4], %s476
        %s478 = sand.u32 %s298, 1
        %s479 = smul.addr %s478, 64
        %s480 = scalar_lea.vmem [#allocation8], %s479
        %p481 = pneg %p337
        %p482 = pneg %p334
        %s483 = sand.u32 %s324, 1
        %s484 = scalar_lea.sflag [#allocation10], %s483
        %s485 = sand.u32 %s324, 1
        %s486 = smul.addr %s485, 8
        %s487 = scalar_lea.vmem [#allocation9], %s486
        %s488 = smul.u32 8, %s33
        %p489 = scmp.lt.s32.totalorder %s488, 15
        %s490 = scalar_select %p489, %s488, 15
        %s491 = smul.addr %s490, 8
        %s492 = scalar_lea.vmem %s0, %s491
        %s493 = smul.u32 8, %s33
        %s494 = smul.u32 8, %s33
        %v496 = vld [vmem:[%s492] sm:$0xff]
        %v497 = vld [vmem:[%s492 + $0x8] sm:$0xff]
        %v498 = vld [vmem:[%s492 + $0x10] sm:$0xff]
        %v499 = vld [vmem:[%s492 + $0x18] sm:$0xff]
        %v500 = vld [vmem:[%s492 + $0x20] sm:$0xff]
        %v501 = vld [vmem:[%s492 + $0x28] sm:$0xff]
        %v502 = vld [vmem:[%s492 + $0x30] sm:$0xff]
        %v503 = vld [vmem:[%s492 + $0x38] sm:$0xff]
        %v512 = vrot.slane %v496, 1
        %v513 = vrot.slane %v497, 1
        %v514 = vrot.slane %v498, 1
        %v515 = vrot.slane %v499, 1
        %v516 = vrot.slane %v500, 1
        %v517 = vrot.slane %v501, 1
        %v518 = vrot.slane %v502, 1
        %v519 = vrot.slane %v503, 1
        %vm528 = vcmask 1046528
        %v529 = vsel %vm528, %v512, %v512
        %v530 = vsel %vm528, %v513, %v513
        %v531 = vsel %vm528, %v514, %v514
        %v532 = vsel %vm528, %v515, %v515
        %v533 = vsel %vm528, %v516, %v516
        %v534 = vsel %vm528, %v517, %v517
        %v535 = vsel %vm528, %v518, %v518
        %v536 = vsel %vm528, %v519, %v519
        %v537 = vrot.slane %v496, 7
        %v538 = vrot.slane %v497, 7
        %v539 = vrot.slane %v498, 7
        %v540 = vrot.slane %v499, 7
        %v541 = vrot.slane %v500, 7
        %v542 = vrot.slane %v501, 7
        %v543 = vrot.slane %v502, 7
        %v544 = vrot.slane %v503, 7
        %vm553 = vcmask 1040384
        %v554 = vsel %vm553, %v537, %v537
        %v555 = vsel %vm553, %v538, %v538
        %v556 = vsel %vm553, %v539, %v539
        %v557 = vsel %vm553, %v540, %v540
        %v558 = vsel %vm553, %v541, %v541
        %v559 = vsel %vm553, %v542, %v542
        %v560 = vsel %vm553, %v543, %v543
        %v561 = vsel %vm553, %v544, %v544
        %570 = vrot.lane.b32.xlu0 %v529, 32
        %v571 = vpop.permute.xlu0 %570
        %572 = vrot.lane.b32.xlu0 %v530, 32
        %v573 = vpop.permute.xlu0 %572
        %574 = vrot.lane.b32.xlu0 %v531, 32
        %v575 = vpop.permute.xlu0 %574
        %576 = vrot.lane.b32.xlu0 %v532, 32
        %v577 = vpop.permute.xlu0 %576
        %578 = vrot.lane.b32.xlu0 %v533, 32
        %v579 = vpop.permute.xlu0 %578
        %580 = vrot.lane.b32.xlu0 %v534, 32
        %v581 = vpop.permute.xlu0 %580
        %582 = vrot.lane.b32.xlu0 %v535, 32
        %v583 = vpop.permute.xlu0 %582
        %584 = vrot.lane.b32.xlu0 %v536, 32
        %v585 = vpop.permute.xlu0 %584
        %602 = vrot.lane.b32.xlu0 %v554, 64
        %v603 = vpop.permute.xlu0 %602
        %604 = vrot.lane.b32.xlu0 %v555, 64
        %v605 = vpop.permute.xlu0 %604
        %606 = vrot.lane.b32.xlu0 %v556, 64
        %v607 = vpop.permute.xlu0 %606
        %608 = vrot.lane.b32.xlu0 %v557, 64
        %v609 = vpop.permute.xlu0 %608
        %610 = vrot.lane.b32.xlu0 %v558, 64
        %v611 = vpop.permute.xlu0 %610
        %612 = vrot.lane.b32.xlu0 %v559, 64
        %v613 = vpop.permute.xlu0 %612
        %614 = vrot.lane.b32.xlu0 %v560, 64
        %v615 = vpop.permute.xlu0 %614
        %616 = vrot.lane.b32.xlu0 %v561, 64
        %v617 = vpop.permute.xlu0 %616
        %vm626 = vcmask 261120
        %v627 = vsel %vm626, %v496, %v571
        %v628 = vsel %vm626, %v497, %v573
        %v629 = vsel %vm626, %v498, %v575
        %v630 = vsel %vm626, %v499, %v577
        %v631 = vsel %vm626, %v500, %v579
        %v632 = vsel %vm626, %v501, %v581
        %v633 = vsel %vm626, %v502, %v583
        %v634 = vsel %vm626, %v503, %v585
        %vm635 = vcmask 523264
        %v636 = vsel %vm635, %v627, %v603
        %v637 = vsel %vm635, %v628, %v605
        %v638 = vsel %vm635, %v629, %v607
        %v639 = vsel %vm635, %v630, %v609
        %v640 = vsel %vm635, %v631, %v611
        %v641 = vsel %vm635, %v632, %v613
        %v642 = vsel %vm635, %v633, %v615
        %v643 = vsel %vm635, %v634, %v617
        %v644 = vpack.c.bf16 %v637, %v636
        %v645 = vpack.c.bf16 %v639, %v638
        %v646 = vpack.c.bf16 %v641, %v640
        %v647 = vpack.c.bf16 %v643, %v642
        %v648 = vld [vmem:[%s1] sm:$0xff]
        %v649 = vld [vmem:[%s1 + $0x8] sm:$0xff]
        %v650 = vld [vmem:[%s1 + $0x10] sm:$0xff]
        %v651 = vld [vmem:[%s1 + $0x18] sm:$0xff]
        %v652 = vld [vmem:[%s1 + $0x20] sm:$0xff]
        %v653 = vld [vmem:[%s1 + $0x28] sm:$0xff]
        %v654 = vld [vmem:[%s1 + $0x30] sm:$0xff]
        %v655 = vld [vmem:[%s1 + $0x38] sm:$0xff]
        %v656 = vld [vmem:[%s1 + $0x40] sm:$0xff]
        %v657 = vld [vmem:[%s1 + $0x48] sm:$0xff]
        %v658 = vld [vmem:[%s1 + $0x50] sm:$0xff]
        %v659 = vld [vmem:[%s1 + $0x58] sm:$0xff]
        %v672 = vunpack.c.l.b16 %v648
        %v673 = vunpack.c.h.b16 %v648
        %v674 = vunpack.c.l.b16 %v649
        %v675 = vunpack.c.h.b16 %v649
        %v676 = vunpack.c.l.b16 %v650
        %v677 = vunpack.c.h.b16 %v650
        %v678 = vunpack.c.l.b16 %v651
        %v679 = vunpack.c.h.b16 %v651
        %v680 = vunpack.c.l.b16 %v652
        %v681 = vunpack.c.h.b16 %v652
        %v682 = vunpack.c.l.b16 %v653
        %v683 = vunpack.c.h.b16 %v653
        %v684 = vunpack.c.l.b16 %v654
        %v685 = vunpack.c.h.b16 %v654
        %v686 = vunpack.c.l.b16 %v655
        %v687 = vunpack.c.h.b16 %v655
        %v688 = vunpack.c.l.b16 %v656
        %v689 = vunpack.c.h.b16 %v656
        %v690 = vunpack.c.l.b16 %v657
        %v691 = vunpack.c.h.b16 %v657
        %v692 = vunpack.c.l.b16 %v658
        %v693 = vunpack.c.h.b16 %v658
        %v694 = vunpack.c.l.b16 %v659
        %v695 = vunpack.c.h.b16 %v659
        %v696 = vpack.c.b16 %v674, %v672
        %v697 = vpack.c.b16 %v675, %v673
        %v698 = vpack.c.b16 %v678, %v676
        %v699 = vpack.c.b16 %v679, %v677
        %v700 = vpack.c.b16 %v682, %v680
        %v701 = vpack.c.b16 %v683, %v681
        %v702 = vpack.c.b16 %v686, %v684
        %v703 = vpack.c.b16 %v687, %v685
        %v704 = vpack.c.b16 %v690, %v688
        %v705 = vpack.c.b16 %v691, %v689
        %v706 = vpack.c.b16 %v694, %v692
        %v707 = vpack.c.b16 %v695, %v693
        %vm720 = vcmask 785408
        %v722 = vsel %vm720, %v644, 0
        %v725 = vsel %vm720, %v645, 0
        %v728 = vsel %vm720, %v646, 0
        %v731 = vsel %vm720, %v647, 0
        %733 = vmatprep.subr.bf16.mxu0 %v697
        %734 = vmatpush1.bf16.msra.mxu0 %v696
        %735 = vmatprep.subr.bf16.mxu0 %v699
        %736 = vmatpush1.bf16.msra.mxu0 %v698
        %737 = vmatprep.subr.bf16.mxu0 %v701
        %738 = vmatpush1.bf16.msra.mxu0 %v700
        %739 = vmatprep.subr.bf16.mxu0 %v703
        %740 = vmatpush1.bf16.msra.mxu0 %v702
        %741 = vmatprep.subr.bf16.mxu0 %v705
        %742 = vmatpush1.bf16.msra.mxu0 %v704
        %743 = vmatprep.subr.bf16.mxu0 %v707
        %744 = vmatpush1.bf16.msra.mxu0 %v706
        %745 = vmatprep.subr.bf16.mxu0 0
        %746 = vmatpush1.bf16.msra.mxu0 0
        %747 = vmatprep.subr.bf16.mxu0 0
        %748 = vmatpush1.bf16.msra.mxu0 0
        %749 = vmatprep.subr.bf16.mxu0 0
        %750 = vmatpush1.bf16.msra.mxu0 0
        %751 = vmatprep.subr.bf16.mxu0 0
        %752 = vmatpush1.bf16.msra.mxu0 0
        %753 = vmatprep.subr.bf16.mxu0 0
        %754 = vmatpush1.bf16.msra.mxu0 0
        %755 = vmatprep.subr.bf16.mxu0 0
        %756 = vmatpush1.bf16.msra.mxu0 0
        %757 = vmatprep.subr.bf16.mxu0 0
        %758 = vmatpush1.bf16.msra.mxu0 0
        %759 = vmatprep.subr.bf16.mxu0 0
        %760 = vmatpush1.bf16.msra.mxu0 0
        %761 = vmatprep.subr.bf16.mxu0 0
        %762 = vmatpush1.bf16.msra.mxu0 0
        %763 = vmatprep.subr.bf16.mxu0 0
        %764 = vmatpush1.bf16.msra.mxu0 0
        %765 = vmatprep.mubr.bf16.mxu0 0
        %766 = vmatmul.mubr.bf16.gmra.mrb[0].mxu0 %v722
        %v767 = vpop.f32.mrb[0].mxu0
        %v768 = vadd.f32 0.0, %v767
        %v769 = vpop.f32.mrb[0].mxu0
        %v770 = vadd.f32 0.0, %v769
        %v771 = vpop.f32.mrb[0].mxu0
        %v772 = vadd.f32 0.0, %v771
        %v773 = vpop.f32.mrb[0].mxu0
        %v774 = vadd.f32 0.0, %v773
        %775 = vmatprep.mubr.bf16.mxu0 0
        %776 = vmatmul.mubr.bf16.gmra.mrb[0].mxu0 %v725
        %v777 = vpop.f32.mrb[0].mxu0
        %v778 = vadd.f32 0.0, %v777
        %v779 = vpop.f32.mrb[0].mxu0
        %v780 = vadd.f32 0.0, %v779
        %v781 = vpop.f32.mrb[0].mxu0
        %v782 = vadd.f32 0.0, %v781
        %v783 = vpop.f32.mrb[0].mxu0
        %v784 = vadd.f32 0.0, %v783
        %785 = vmatprep.mubr.bf16.mxu0 0
        %786 = vmatmul.mubr.bf16.gmra.mrb[0].mxu0 %v728
        %v787 = vpop.f32.mrb[0].mxu0
        %v788 = vadd.f32 0.0, %v787
        %v789 = vpop.f32.mrb[0].mxu0
        %v790 = vadd.f32 0.0, %v789
        %v791 = vpop.f32.mrb[0].mxu0
        %v792 = vadd.f32 0.0, %v791
        %v793 = vpop.f32.mrb[0].mxu0
        %v794 = vadd.f32 0.0, %v793
        %795 = vmatprep.mubr.bf16.mxu0 0
        %796 = vmatmul.mubr.bf16.gmra.mrb[0].mxu0 %v731
        %v797 = vpop.f32.mrb[0].mxu0
        %v798 = vadd.f32 0.0, %v797
        %v799 = vpop.f32.mrb[0].mxu0
        %v800 = vadd.f32 0.0, %v799
        %v801 = vpop.f32.mrb[0].mxu0
        %v802 = vadd.f32 0.0, %v801
        %v803 = vpop.f32.mrb[0].mxu0
        %v804 = vadd.f32 0.0, %v803
        %805 = vdwg.mxu0
        %v806 = vld [vmem:[%s2] sm:$0x3]
        %v808 = vlaneseq
        %v809 = vshrl.u32 %v808, 7
        %v810 = vsub.s32 0, %v809
        %v811 = vrot.slane %v806, %v810
        %v812 = vlaneseq
        %v813 = vshrl.u32 %v812, 7
        %v814 = vsub.s32 1, %v813
        %v815 = vrot.slane %v806, %v814
        %v818 = vmul.f32 %v768, %v811
        %v819 = vmul.f32 %v770, %v815
        %v820 = vmul.f32 %v772, %v811
        %v821 = vmul.f32 %v774, %v815
        %v822 = vmul.f32 %v778, %v811
        %v823 = vmul.f32 %v780, %v815
        %v824 = vmul.f32 %v782, %v811
        %v825 = vmul.f32 %v784, %v815
        %v826 = vmul.f32 %v788, %v811
        %v827 = vmul.f32 %v790, %v815
        %v828 = vmul.f32 %v792, %v811
        %v829 = vmul.f32 %v794, %v815
        %v830 = vmul.f32 %v798, %v811
        %v831 = vmul.f32 %v800, %v815
        %v832 = vmul.f32 %v802, %v811
        %v833 = vmul.f32 %v804, %v815
        %v834 = vld [vmem:[#allocation2] sm:$0x3]
        %v836 = vlaneseq
        %v837 = vshrl.u32 %v836, 7
        %v838 = vsub.s32 0, %v837
        %v839 = vrot.slane %v834, %v838
        %v840 = vlaneseq
        %v841 = vshrl.u32 %v840, 7
        %v842 = vsub.s32 1, %v841
        %v843 = vrot.slane %v834, %v842
        %v846 = vadd.f32 %v818, %v839
        %v847 = vadd.f32 %v819, %v843
        %v848 = vadd.f32 %v820, %v839
        %v849 = vadd.f32 %v821, %v843
        %v850 = vadd.f32 %v822, %v839
        %v851 = vadd.f32 %v823, %v843
        %v852 = vadd.f32 %v824, %v839
        %v853 = vadd.f32 %v825, %v843
        %v854 = vadd.f32 %v826, %v839
        %v855 = vadd.f32 %v827, %v843
        %v856 = vadd.f32 %v828, %v839
        %v857 = vadd.f32 %v829, %v843
        %v858 = vadd.f32 %v830, %v839
        %v859 = vadd.f32 %v831, %v843
        %v860 = vadd.f32 %v832, %v839
        %v861 = vadd.f32 %v833, %v843
        %v862 = vmax.f32 %v846, 0.0
        %v863 = vmax.f32 %v847, 0.0
        %v864 = vmax.f32 %v848, 0.0
        %v865 = vmax.f32 %v849, 0.0
        %v866 = vmax.f32 %v850, 0.0
        %v867 = vmax.f32 %v851, 0.0
        %v868 = vmax.f32 %v852, 0.0
        %v869 = vmax.f32 %v853, 0.0
        %v870 = vmax.f32 %v854, 0.0
        %v871 = vmax.f32 %v855, 0.0
        %v872 = vmax.f32 %v856, 0.0
        %v873 = vmax.f32 %v857, 0.0
        %v874 = vmax.f32 %v858, 0.0
        %v875 = vmax.f32 %v859, 0.0
        %v876 = vmax.f32 %v860, 0.0
        %v877 = vmax.f32 %v861, 0.0
        %v878 = vpack.c.bf16 %v862, %v862
        %v879 = vpack.c.bf16 %v863, %v863
        %v880 = vpack.c.bf16 %v864, %v864
        %v881 = vpack.c.bf16 %v865, %v865
        %v882 = vpack.c.bf16 %v866, %v866
        %v883 = vpack.c.bf16 %v867, %v867
        %v884 = vpack.c.bf16 %v868, %v868
        %v885 = vpack.c.bf16 %v869, %v869
        %v886 = vpack.c.bf16 %v870, %v870
        %v887 = vpack.c.bf16 %v871, %v871
        %v888 = vpack.c.bf16 %v872, %v872
        %v889 = vpack.c.bf16 %v873, %v873
        %v890 = vpack.c.bf16 %v874, %v874
        %v891 = vpack.c.bf16 %v875, %v875
        %v892 = vpack.c.bf16 %v876, %v876
        %v893 = vpack.c.bf16 %v877, %v877
        %v910 = vunpack.c.l.b16 %v878
        %v911 = vunpack.c.l.b16 %v879
        %v912 = vunpack.c.l.b16 %v880
        %v913 = vunpack.c.l.b16 %v881
        %v914 = vunpack.c.l.b16 %v882
        %v915 = vunpack.c.l.b16 %v883
        %v916 = vunpack.c.l.b16 %v884
        %v917 = vunpack.c.l.b16 %v885
        %v918 = vunpack.c.l.b16 %v886
        %v919 = vunpack.c.l.b16 %v887
        %v920 = vunpack.c.l.b16 %v888
        %v921 = vunpack.c.l.b16 %v889
        %v922 = vunpack.c.l.b16 %v890
        %v923 = vunpack.c.l.b16 %v891
        %v924 = vunpack.c.l.b16 %v892
        %v925 = vunpack.c.l.b16 %v893
        %v926 = vld [vmem:[#allocation5] sm:$0xff]
        %v927 = vld [vmem:[#allocation5 + $0x8] sm:$0xff]
        %v928 = vld [vmem:[#allocation5 + $0x10] sm:$0xff]
        %v929 = vld [vmem:[#allocation5 + $0x18] sm:$0xff]
        %v930 = vld [vmem:[#allocation5 + $0x20] sm:$0xff]
        %v931 = vld [vmem:[#allocation5 + $0x28] sm:$0xff]
        %v932 = vld [vmem:[#allocation5 + $0x30] sm:$0xff]
        %v933 = vld [vmem:[#allocation5 + $0x38] sm:$0xff]
        %v934 = vld [vmem:[#allocation5 + $0x40] sm:$0xff]
        %v935 = vld [vmem:[#allocation5 + $0x48] sm:$0xff]
        %v936 = vld [vmem:[#allocation5 + $0x50] sm:$0xff]
        %v937 = vld [vmem:[#allocation5 + $0x58] sm:$0xff]
        %v938 = vld [vmem:[#allocation5 + $0x60] sm:$0xff]
        %v939 = vld [vmem:[#allocation5 + $0x68] sm:$0xff]
        %v940 = vld [vmem:[#allocation5 + $0x70] sm:$0xff]
        %v941 = vld [vmem:[#allocation5 + $0x78] sm:$0xff]
        %v942 = vld [vmem:[#allocation5 + $0x80] sm:$0xff]
        %v943 = vld [vmem:[#allocation5 + $0x88] sm:$0xff]
        %v944 = vld [vmem:[#allocation5 + $0x90] sm:$0xff]
        %v945 = vld [vmem:[#allocation5 + $0x98] sm:$0xff]
        %v946 = vld [vmem:[#allocation5 + $0xa0] sm:$0xff]
        %v947 = vld [vmem:[#allocation5 + $0xa8] sm:$0xff]
        %v948 = vld [vmem:[#allocation5 + $0xb0] sm:$0xff]
        %v949 = vld [vmem:[#allocation5 + $0xb8] sm:$0xff]
        %v950 = vld [vmem:[#allocation5 + $0xc0] sm:$0xff]
        %v951 = vld [vmem:[#allocation5 + $0xc8] sm:$0xff]
        %v952 = vld [vmem:[#allocation5 + $0xd0] sm:$0xff]
        %v953 = vld [vmem:[#allocation5 + $0xd8] sm:$0xff]
        %v954 = vld [vmem:[#allocation5 + $0xe0] sm:$0xff]
        %v955 = vld [vmem:[#allocation5 + $0xe8] sm:$0xff]
        %v956 = vld [vmem:[#allocation5 + $0xf0] sm:$0xff]
        %v957 = vld [vmem:[#allocation5 + $0xf8] sm:$0xff]
        %v958 = vld [vmem:[#allocation5 + $0x100] sm:$0xff]
        %v959 = vld [vmem:[#allocation5 + $0x108] sm:$0xff]
        %v960 = vld [vmem:[#allocation5 + $0x110] sm:$0xff]
        %v961 = vld [vmem:[#allocation5 + $0x118] sm:$0xff]
        %v962 = vld [vmem:[#allocation5 + $0x120] sm:$0xff]
        %v963 = vld [vmem:[#allocation5 + $0x128] sm:$0xff]
        %v964 = vld [vmem:[#allocation5 + $0x130] sm:$0xff]
        %v965 = vld [vmem:[#allocation5 + $0x138] sm:$0xff]
        %v966 = vld [vmem:[#allocation5 + $0x140] sm:$0xff]
        %v967 = vld [vmem:[#allocation5 + $0x148] sm:$0xff]
        %v968 = vld [vmem:[#allocation5 + $0x150] sm:$0xff]
        %v969 = vld [vmem:[#allocation5 + $0x158] sm:$0xff]
        %v970 = vld [vmem:[#allocation5 + $0x160] sm:$0xff]
        %v971 = vld [vmem:[#allocation5 + $0x168] sm:$0xff]
        %v972 = vld [vmem:[#allocation5 + $0x170] sm:$0xff]
        %v973 = vld [vmem:[#allocation5 + $0x178] sm:$0xff]
        %v974 = vld [vmem:[#allocation5 + $0x180] sm:$0xff]
        %v975 = vld [vmem:[#allocation5 + $0x188] sm:$0xff]
        %v976 = vld [vmem:[#allocation5 + $0x190] sm:$0xff]
        %v977 = vld [vmem:[#allocation5 + $0x198] sm:$0xff]
        %v978 = vld [vmem:[#allocation5 + $0x1a0] sm:$0xff]
        %v979 = vld [vmem:[#allocation5 + $0x1a8] sm:$0xff]
        %v980 = vld [vmem:[#allocation5 + $0x1b0] sm:$0xff]
        %v981 = vld [vmem:[#allocation5 + $0x1b8] sm:$0xff]
        %v982 = vld [vmem:[#allocation5 + $0x1c0] sm:$0xff]
        %v983 = vld [vmem:[#allocation5 + $0x1c8] sm:$0xff]
        %v984 = vld [vmem:[#allocation5 + $0x1d0] sm:$0xff]
        %v985 = vld [vmem:[#allocation5 + $0x1d8] sm:$0xff]
        %v986 = vld [vmem:[#allocation5 + $0x1e0] sm:$0xff]
        %v987 = vld [vmem:[#allocation5 + $0x1e8] sm:$0xff]
        %v988 = vld [vmem:[#allocation5 + $0x1f0] sm:$0xff]
        %v989 = vld [vmem:[#allocation5 + $0x1f8] sm:$0xff]
        %v990 = vpack.c.b16 %v912, %v910
        %v991 = vpack.c.b16 %v913, %v911
        %v992 = vpack.c.b16 %v916, %v914
        %v993 = vpack.c.b16 %v917, %v915
        %v994 = vpack.c.b16 %v920, %v918
        %v995 = vpack.c.b16 %v921, %v919
        %v996 = vpack.c.b16 %v924, %v922
        %v997 = vpack.c.b16 %v925, %v923
        %v1070 = vunpack.c.l.b16 %v926
        %v1071 = vunpack.c.h.b16 %v926
        %v1072 = vunpack.c.l.b16 %v927
        %v1073 = vunpack.c.h.b16 %v927
        %v1074 = vunpack.c.l.b16 %v928
        %v1075 = vunpack.c.h.b16 %v928
        %v1076 = vunpack.c.l.b16 %v929
        %v1077 = vunpack.c.h.b16 %v929
        %v1078 = vunpack.c.l.b16 %v930
        %v1079 = vunpack.c.h.b16 %v930
        %v1080 = vunpack.c.l.b16 %v931
        %v1081 = vunpack.c.h.b16 %v931
        %v1082 = vunpack.c.l.b16 %v932
        %v1083 = vunpack.c.h.b16 %v932
        %v1084 = vunpack.c.l.b16 %v933
        %v1085 = vunpack.c.h.b16 %v933
        %v1086 = vunpack.c.l.b16 %v934
        %v1087 = vunpack.c.h.b16 %v934
        %v1088 = vunpack.c.l.b16 %v935
        %v1089 = vunpack.c.h.b16 %v935
        %v1090 = vunpack.c.l.b16 %v936
        %v1091 = vunpack.c.h.b16 %v936
        %v1092 = vunpack.c.l.b16 %v937
        %v1093 = vunpack.c.h.b16 %v937
        %v1094 = vunpack.c.l.b16 %v938
        %v1095 = vunpack.c.h.b16 %v938
        %v1096 = vunpack.c.l.b16 %v939
        %v1097 = vunpack.c.h.b16 %v939
        %v1098 = vunpack.c.l.b16 %v940
        %v1099 = vunpack.c.h.b16 %v940
        %v1100 = vunpack.c.l.b16 %v941
        %v1101 = vunpack.c.h.b16 %v941
        %v1102 = vunpack.c.l.b16 %v942
        %v1103 = vunpack.c.h.b16 %v942
        %v1104 = vunpack.c.l.b16 %v943
        %v1105 = vunpack.c.h.b16 %v943
        %v1106 = vunpack.c.l.b16 %v944
        %v1107 = vunpack.c.h.b16 %v944
        %v1108 = vunpack.c.l.b16 %v945
        %v1109 = vunpack.c.h.b16 %v945
        %v1110 = vunpack.c.l.b16 %v946
        %v1111 = vunpack.c.h.b16 %v946
        %v1112 = vunpack.c.l.b16 %v947
        %v1113 = vunpack.c.h.b16 %v947
        %v1114 = vunpack.c.l.b16 %v948
        %v1115 = vunpack.c.h.b16 %v948
        %v1116 = vunpack.c.l.b16 %v949
        %v1117 = vunpack.c.h.b16 %v949
        %v1118 = vunpack.c.l.b16 %v950
        %v1119 = vunpack.c.h.b16 %v950
        %v1120 = vunpack.c.l.b16 %v951
        %v1121 = vunpack.c.h.b16 %v951
        %v1122 = vunpack.c.l.b16 %v952
        %v1123 = vunpack.c.h.b16 %v952
        %v1124 = vunpack.c.l.b16 %v953
        %v1125 = vunpack.c.h.b16 %v953
        %v1126 = vunpack.c.l.b16 %v954
        %v1127 = vunpack.c.h.b16 %v954
        %v1128 = vunpack.c.l.b16 %v955
        %v1129 = vunpack.c.h.b16 %v955
        %v1130 = vunpack.c.l.b16 %v956
        %v1131 = vunpack.c.h.b16 %v956
        %v1132 = vunpack.c.l.b16 %v957
        %v1133 = vunpack.c.h.b16 %v957
        %v1134 = vunpack.c.l.b16 %v958
        %v1135 = vunpack.c.h.b16 %v958
        %v1136 = vunpack.c.l.b16 %v959
        %v1137 = vunpack.c.h.b16 %v959
        %v1138 = vunpack.c.l.b16 %v960
        %v1139 = vunpack.c.h.b16 %v960
        %v1140 = vunpack.c.l.b16 %v961
        %v1141 = vunpack.c.h.b16 %v961
        %v1142 = vunpack.c.l.b16 %v962
        %v1143 = vunpack.c.h.b16 %v962
        %v1144 = vunpack.c.l.b16 %v963
        %v1145 = vunpack.c.h.b16 %v963
        %v1146 = vunpack.c.l.b16 %v964
        %v1147 = vunpack.c.h.b16 %v964
        %v1148 = vunpack.c.l.b16 %v965
        %v1149 = vunpack.c.h.b16 %v965
        %v1150 = vunpack.c.l.b16 %v966
        %v1151 = vunpack.c.h.b16 %v966
        %v1152 = vunpack.c.l.b16 %v967
        %v1153 = vunpack.c.h.b16 %v967
        %v1154 = vunpack.c.l.b16 %v968
        %v1155 = vunpack.c.h.b16 %v968
        %v1156 = vunpack.c.l.b16 %v969
        %v1157 = vunpack.c.h.b16 %v969
        %v1158 = vunpack.c.l.b16 %v970
        %v1159 = vunpack.c.h.b16 %v970
        %v1160 = vunpack.c.l.b16 %v971
        %v1161 = vunpack.c.h.b16 %v971
        %v1162 = vunpack.c.l.b16 %v972
        %v1163 = vunpack.c.h.b16 %v972
        %v1164 = vunpack.c.l.b16 %v973
        %v1165 = vunpack.c.h.b16 %v973
        %v1166 = vunpack.c.l.b16 %v974
        %v1167 = vunpack.c.h.b16 %v974
        %v1168 = vunpack.c.l.b16 %v975
        %v1169 = vunpack.c.h.b16 %v975
        %v1170 = vunpack.c.l.b16 %v976
        %v1171 = vunpack.c.h.b16 %v976
        %v1172 = vunpack.c.l.b16 %v977
        %v1173 = vunpack.c.h.b16 %v977
        %v1174 = vunpack.c.l.b16 %v978
        %v1175 = vunpack.c.h.b16 %v978
        %v1176 = vunpack.c.l.b16 %v979
        %v1177 = vunpack.c.h.b16 %v979
        %v1178 = vunpack.c.l.b16 %v980
        %v1179 = vunpack.c.h.b16 %v980
        %v1180 = vunpack.c.l.b16 %v981
        %v1181 = vunpack.c.h.b16 %v981
        %v1182 = vunpack.c.l.b16 %v982
        %v1183 = vunpack.c.h.b16 %v982
        %v1184 = vunpack.c.l.b16 %v983
        %v1185 = vunpack.c.h.b16 %v983
        %v1186 = vunpack.c.l.b16 %v984
        %v1187 = vunpack.c.h.b16 %v984
        %v1188 = vunpack.c.l.b16 %v985
        %v1189 = vunpack.c.h.b16 %v985
        %v1190 = vunpack.c.l.b16 %v986
        %v1191 = vunpack.c.h.b16 %v986
        %v1192 = vunpack.c.l.b16 %v987
        %v1193 = vunpack.c.h.b16 %v987
        %v1194 = vunpack.c.l.b16 %v988
        %v1195 = vunpack.c.h.b16 %v988
        %v1196 = vunpack.c.l.b16 %v989
        %v1197 = vunpack.c.h.b16 %v989
        %v1198 = vpack.c.b16 %v1074, %v1070
        %v1199 = vpack.c.b16 %v1075, %v1071
        %v1200 = vpack.c.b16 %v1076, %v1072
        %v1201 = vpack.c.b16 %v1077, %v1073
        %v1202 = vpack.c.b16 %v1082, %v1078
        %v1203 = vpack.c.b16 %v1083, %v1079
        %v1204 = vpack.c.b16 %v1084, %v1080
        %v1205 = vpack.c.b16 %v1085, %v1081
        %v1206 = vpack.c.b16 %v1090, %v1086
        %v1207 = vpack.c.b16 %v1091, %v1087
        %v1208 = vpack.c.b16 %v1092, %v1088
        %v1209 = vpack.c.b16 %v1093, %v1089
        %v1210 = vpack.c.b16 %v1098, %v1094
        %v1211 = vpack.c.b16 %v1099, %v1095
        %v1212 = vpack.c.b16 %v1100, %v1096
        %v1213 = vpack.c.b16 %v1101, %v1097
        %v1214 = vpack.c.b16 %v1106, %v1102
        %v1215 = vpack.c.b16 %v1107, %v1103
        %v1216 = vpack.c.b16 %v1108, %v1104
        %v1217 = vpack.c.b16 %v1109, %v1105
        %v1218 = vpack.c.b16 %v1114, %v1110
        %v1219 = vpack.c.b16 %v1115, %v1111
        %v1220 = vpack.c.b16 %v1116, %v1112
        %v1221 = vpack.c.b16 %v1117, %v1113
        %v1222 = vpack.c.b16 %v1122, %v1118
        %v1223 = vpack.c.b16 %v1123, %v1119
        %v1224 = vpack.c.b16 %v1124, %v1120
        %v1225 = vpack.c.b16 %v1125, %v1121
        %v1226 = vpack.c.b16 %v1130, %v1126
        %v1227 = vpack.c.b16 %v1131, %v1127
        %v1228 = vpack.c.b16 %v1132, %v1128
        %v1229 = vpack.c.b16 %v1133, %v1129
        %v1230 = vpack.c.b16 %v1138, %v1134
        %v1231 = vpack.c.b16 %v1139, %v1135
        %v1232 = vpack.c.b16 %v1140, %v1136
        %v1233 = vpack.c.b16 %v1141, %v1137
        %v1234 = vpack.c.b16 %v1146, %v1142
        %v1235 = vpack.c.b16 %v1147, %v1143
        %v1236 = vpack.c.b16 %v1148, %v1144
        %v1237 = vpack.c.b16 %v1149, %v1145
        %v1238 = vpack.c.b16 %v1154, %v1150
        %v1239 = vpack.c.b16 %v1155, %v1151
        %v1240 = vpack.c.b16 %v1156, %v1152
        %v1241 = vpack.c.b16 %v1157, %v1153
        %v1242 = vpack.c.b16 %v1162, %v1158
        %v1243 = vpack.c.b16 %v1163, %v1159
        %v1244 = vpack.c.b16 %v1164, %v1160
        %v1245 = vpack.c.b16 %v1165, %v1161
        %v1246 = vpack.c.b16 %v1170, %v1166
        %v1247 = vpack.c.b16 %v1171, %v1167
        %v1248 = vpack.c.b16 %v1172, %v1168
        %v1249 = vpack.c.b16 %v1173, %v1169
        %v1250 = vpack.c.b16 %v1178, %v1174
        %v1251 = vpack.c.b16 %v1179, %v1175
        %v1252 = vpack.c.b16 %v1180, %v1176
        %v1253 = vpack.c.b16 %v1181, %v1177
        %v1254 = vpack.c.b16 %v1186, %v1182
        %v1255 = vpack.c.b16 %v1187, %v1183
        %v1256 = vpack.c.b16 %v1188, %v1184
        %v1257 = vpack.c.b16 %v1189, %v1185
        %v1258 = vpack.c.b16 %v1194, %v1190
        %v1259 = vpack.c.b16 %v1195, %v1191
        %v1260 = vpack.c.b16 %v1196, %v1192
        %v1261 = vpack.c.b16 %v1197, %v1193
        %1326 = vmatprep.subr.bf16.mxu0 %v1199
        %1327 = vmatpush1.bf16.msra.mxu0 %v1198
        %1328 = vmatprep.subr.bf16.mxu0 %v1203
        %1329 = vmatpush1.bf16.msra.mxu0 %v1202
        %1330 = vmatprep.subr.bf16.mxu0 %v1207
        %1331 = vmatpush1.bf16.msra.mxu0 %v1206
        %1332 = vmatprep.subr.bf16.mxu0 %v1211
        %1333 = vmatpush1.bf16.msra.mxu0 %v1210
        %1334 = vmatprep.subr.bf16.mxu0 %v1215
        %1335 = vmatpush1.bf16.msra.mxu0 %v1214
        %1336 = vmatprep.subr.bf16.mxu0 %v1219
        %1337 = vmatpush1.bf16.msra.mxu0 %v1218
        %1338 = vmatprep.subr.bf16.mxu0 %v1223
        %1339 = vmatpush1.bf16.msra.mxu0 %v1222
        %1340 = vmatprep.subr.bf16.mxu0 %v1227
        %1341 = vmatpush1.bf16.msra.mxu0 %v1226
        %1342 = vmatprep.subr.bf16.mxu0 %v1231
        %1343 = vmatpush1.bf16.msra.mxu0 %v1230
        %1344 = vmatprep.subr.bf16.mxu0 %v1235
        %1345 = vmatpush1.bf16.msra.mxu0 %v1234
        %1346 = vmatprep.subr.bf16.mxu0 %v1239
        %1347 = vmatpush1.bf16.msra.mxu0 %v1238
        %1348 = vmatprep.subr.bf16.mxu0 %v1243
        %1349 = vmatpush1.bf16.msra.mxu0 %v1242
        %1350 = vmatprep.subr.bf16.mxu0 %v1247
        %1351 = vmatpush1.bf16.msra.mxu0 %v1246
        %1352 = vmatprep.subr.bf16.mxu0 %v1251
        %1353 = vmatpush1.bf16.msra.mxu0 %v1250
        %1354 = vmatprep.subr.bf16.mxu0 %v1255
        %1355 = vmatpush1.bf16.msra.mxu0 %v1254
        %1356 = vmatprep.subr.bf16.mxu0 %v1259
        %1357 = vmatpush1.bf16.msra.mxu0 %v1258
        %1358 = vmatprep.mubr.bf16.mxu0 %v991
        %1359 = vmatmul.mubr.bf16.gmra.mrb[0].mxu0 %v990
        %v1360 = vpop.f32.mrb[0].mxu0
        %v1361 = vadd.f32 0.0, %v1360
        %v1362 = vpop.f32.mrb[0].mxu0
        %v1363 = vadd.f32 0.0, %v1362
        %v1364 = vpop.f32.mrb[0].mxu0
        %v1365 = vadd.f32 0.0, %v1364
        %v1366 = vpop.f32.mrb[0].mxu0
        %v1367 = vadd.f32 0.0, %v1366
        %1368 = vmatprep.mubr.bf16.mxu0 %v993
        %1369 = vmatmul.mubr.bf16.gmra.mrb[0].mxu0 %v992
        %v1370 = vpop.f32.mrb[0].mxu0
        %v1371 = vadd.f32 0.0, %v1370
        %v1372 = vpop.f32.mrb[0].mxu0
        %v1373 = vadd.f32 0.0, %v1372
        %v1374 = vpop.f32.mrb[0].mxu0
        %v1375 = vadd.f32 0.0, %v1374
        %v1376 = vpop.f32.mrb[0].mxu0
        %v1377 = vadd.f32 0.0, %v1376
        %1378 = vmatprep.mubr.bf16.mxu0 %v995
        %1379 = vmatmul.mubr.bf16.gmra.mrb[0].mxu0 %v994
        %v1380 = vpop.f32.mrb[0].mxu0
        %v1381 = vadd.f32 0.0, %v1380
        %v1382 = vpop.f32.mrb[0].mxu0
        %v1383 = vadd.f32 0.0, %v1382
        %v1384 = vpop.f32.mrb[0].mxu0
        %v1385 = vadd.f32 0.0, %v1384
        %v1386 = vpop.f32.mrb[0].mxu0
        %v1387 = vadd.f32 0.0, %v1386
        %1388 = vmatprep.mubr.bf16.mxu0 %v997
        %1389 = vmatmul.mubr.bf16.gmra.mrb[0].mxu0 %v996
        %v1390 = vpop.f32.mrb[0].mxu0
        %v1391 = vadd.f32 0.0, %v1390
        %v1392 = vpop.f32.mrb[0].mxu0
        %v1393 = vadd.f32 0.0, %v1392
        %v1394 = vpop.f32.mrb[0].mxu0
        %v1395 = vadd.f32 0.0, %v1394
        %v1396 = vpop.f32.mrb[0].mxu0
        %v1397 = vadd.f32 0.0, %v1396
        %1398 = vdwg.mxu0
        %1399 = vmatprep.subr.bf16.mxu0 %v1201
        %1400 = vmatpush1.bf16.msra.mxu0 %v1200
        %1401 = vmatprep.subr.bf16.mxu0 %v1205
        %1402 = vmatpush1.bf16.msra.mxu0 %v1204
        %1403 = vmatprep.subr.bf16.mxu0 %v1209
        %1404 = vmatpush1.bf16.msra.mxu0 %v1208
        %1405 = vmatprep.subr.bf16.mxu0 %v1213
        %1406 = vmatpush1.bf16.msra.mxu0 %v1212
        %1407 = vmatprep.subr.bf16.mxu0 %v1217
        %1408 = vmatpush1.bf16.msra.mxu0 %v1216
        %1409 = vmatprep.subr.bf16.mxu0 %v1221
        %1410 = vmatpush1.bf16.msra.mxu0 %v1220
        %1411 = vmatprep.subr.bf16.mxu0 %v1225
        %1412 = vmatpush1.bf16.msra.mxu0 %v1224
        %1413 = vmatprep.subr.bf16.mxu0 %v1229
        %1414 = vmatpush1.bf16.msra.mxu0 %v1228
        %1415 = vmatprep.subr.bf16.mxu0 %v1233
        %1416 = vmatpush1.bf16.msra.mxu0 %v1232
        %1417 = vmatprep.subr.bf16.mxu0 %v1237
        %1418 = vmatpush1.bf16.msra.mxu0 %v1236
        %1419 = vmatprep.subr.bf16.mxu0 %v1241
        %1420 = vmatpush1.bf16.msra.mxu0 %v1240
        %1421 = vmatprep.subr.bf16.mxu0 %v1245
        %1422 = vmatpush1.bf16.msra.mxu0 %v1244
        %1423 = vmatprep.subr.bf16.mxu0 %v1249
        %1424 = vmatpush1.bf16.msra.mxu0 %v1248
        %1425 = vmatprep.subr.bf16.mxu0 %v1253
        %1426 = vmatpush1.bf16.msra.mxu0 %v1252
        %1427 = vmatprep.subr.bf16.mxu0 %v1257
        %1428 = vmatpush1.bf16.msra.mxu0 %v1256
        %1429 = vmatprep.subr.bf16.mxu0 %v1261
        %1430 = vmatpush1.bf16.msra.mxu0 %v1260
        %1431 = vmatprep.mubr.bf16.mxu0 %v991
        %1432 = vmatmul.mubr.bf16.gmra.mrb[0].mxu0 %v990
        %v1433 = vpop.f32.mrb[0].mxu0
        %v1434 = vadd.f32 0.0, %v1433
        %v1435 = vpop.f32.mrb[0].mxu0
        %v1436 = vadd.f32 0.0, %v1435
        %v1437 = vpop.f32.mrb[0].mxu0
        %v1438 = vadd.f32 0.0, %v1437
        %v1439 = vpop.f32.mrb[0].mxu0
        %v1440 = vadd.f32 0.0, %v1439
        %1441 = vmatprep.mubr.bf16.mxu0 %v993
        %1442 = vmatmul.mubr.bf16.gmra.mrb[0].mxu0 %v992
        %v1443 = vpop.f32.mrb[0].mxu0
        %v1444 = vadd.f32 0.0, %v1443
        %v1445 = vpop.f32.mrb[0].mxu0
        %v1446 = vadd.f32 0.0, %v1445
        %v1447 = vpop.f32.mrb[0].mxu0
        %v1448 = vadd.f32 0.0, %v1447
        %v1449 = vpop.f32.mrb[0].mxu0
        %v1450 = vadd.f32 0.0, %v1449
        %1451 = vmatprep.mubr.bf16.mxu0 %v995
        %1452 = vmatmul.mubr.bf16.gmra.mrb[0].mxu0 %v994
        %v1453 = vpop.f32.mrb[0].mxu0
        %v1454 = vadd.f32 0.0, %v1453
        %v1455 = vpop.f32.mrb[0].mxu0
        %v1456 = vadd.f32 0.0, %v1455
        %v1457 = vpop.f32.mrb[0].mxu0
        %v1458 = vadd.f32 0.0, %v1457
        %v1459 = vpop.f32.mrb[0].mxu0
        %v1460 = vadd.f32 0.0, %v1459
        %1461 = vmatprep.mubr.bf16.mxu0 %v997
        %1462 = vmatmul.mubr.bf16.gmra.mrb[0].mxu0 %v996
        %v1463 = vpop.f32.mrb[0].mxu0
        %v1464 = vadd.f32 0.0, %v1463
        %v1465 = vpop.f32.mrb[0].mxu0
        %v1466 = vadd.f32 0.0, %v1465
        %v1467 = vpop.f32.mrb[0].mxu0
        %v1468 = vadd.f32 0.0, %v1467
        %v1469 = vpop.f32.mrb[0].mxu0
        %v1470 = vadd.f32 0.0, %v1469
        %1471 = vdwg.mxu0
        %s1472 = scalar_lea.vmem [#allocation5], 512
        %v1473 = vld [vmem:[%s1472] sm:$0xff]
        %v1474 = vld [vmem:[%s1472 + $0x8] sm:$0xff]
        %v1475 = vld [vmem:[%s1472 + $0x10] sm:$0xff]
        %v1476 = vld [vmem:[%s1472 + $0x18] sm:$0xff]
        %v1477 = vld [vmem:[%s1472 + $0x20] sm:$0xff]
        %v1478 = vld [vmem:[%s1472 + $0x28] sm:$0xff]
        %v1479 = vld [vmem:[%s1472 + $0x30] sm:$0xff]
        %v1480 = vld [vmem:[%s1472 + $0x38] sm:$0xff]
        %v1481 = vld [vmem:[%s1472 + $0x40] sm:$0xff]
        %v1482 = vld [vmem:[%s1472 + $0x48] sm:$0xff]
        %v1483 = vld [vmem:[%s1472 + $0x50] sm:$0xff]
        %v1484 = vld [vmem:[%s1472 + $0x58] sm:$0xff]
        %v1485 = vld [vmem:[%s1472 + $0x60] sm:$0xff]
        %v1486 = vld [vmem:[%s1472 + $0x68] sm:$0xff]
        %v1487 = vld [vmem:[%s1472 + $0x70] sm:$0xff]
        %v1488 = vld [vmem:[%s1472 + $0x78] sm:$0xff]
        %v1489 = vld [vmem:[%s1472 + $0x80] sm:$0xff]
        %v1490 = vld [vmem:[%s1472 + $0x88] sm:$0xff]
        %v1491 = vld [vmem:[%s1472 + $0x90] sm:$0xff]
        %v1492 = vld [vmem:[%s1472 + $0x98] sm:$0xff]
        %v1493 = vld [vmem:[%s1472 + $0xa0] sm:$0xff]
        %v1494 = vld [vmem:[%s1472 + $0xa8] sm:$0xff]
        %v1495 = vld [vmem:[%s1472 + $0xb0] sm:$0xff]
        %v1496 = vld [vmem:[%s1472 + $0xb8] sm:$0xff]
        %v1497 = vld [vmem:[%s1472 + $0xc0] sm:$0xff]
        %v1498 = vld [vmem:[%s1472 + $0xc8] sm:$0xff]
        %v1499 = vld [vmem:[%s1472 + $0xd0] sm:$0xff]
        %v1500 = vld [vmem:[%s1472 + $0xd8] sm:$0xff]
        %v1501 = vld [vmem:[%s1472 + $0xe0] sm:$0xff]
        %v1502 = vld [vmem:[%s1472 + $0xe8] sm:$0xff]
        %v1503 = vld [vmem:[%s1472 + $0xf0] sm:$0xff]
        %v1504 = vld [vmem:[%s1472 + $0xf8] sm:$0xff]
        %v1505 = vld [vmem:[%s1472 + $0x100] sm:$0xff]
        %v1506 = vld [vmem:[%s1472 + $0x108] sm:$0xff]
        %v1507 = vld [vmem:[%s1472 + $0x110] sm:$0xff]
        %v1508 = vld [vmem:[%s1472 + $0x118] sm:$0xff]
        %v1509 = vld [vmem:[%s1472 + $0x120] sm:$0xff]
        %v1510 = vld [vmem:[%s1472 + $0x128] sm:$0xff]
        %v1511 = vld [vmem:[%s1472 + $0x130] sm:$0xff]
        %v1512 = vld [vmem:[%s1472 + $0x138] sm:$0xff]
        %v1513 = vld [vmem:[%s1472 + $0x140] sm:$0xff]
        %v1514 = vld [vmem:[%s1472 + $0x148] sm:$0xff]
        %v1515 = vld [vmem:[%s1472 + $0x150] sm:$0xff]
        %v1516 = vld [vmem:[%s1472 + $0x158] sm:$0xff]
        %v1517 = vld [vmem:[%s1472 + $0x160] sm:$0xff]
        %v1518 = vld [vmem:[%s1472 + $0x168] sm:$0xff]
        %v1519 = vld [vmem:[%s1472 + $0x170] sm:$0xff]
        %v1520 = vld [vmem:[%s1472 + $0x178] sm:$0xff]
        %v1521 = vld [vmem:[%s1472 + $0x180] sm:$0xff]
        %v1522 = vld [vmem:[%s1472 + $0x188] sm:$0xff]
        %v1523 = vld [vmem:[%s1472 + $0x190] sm:$0xff]
        %v1524 = vld [vmem:[%s1472 + $0x198] sm:$0xff]
        %v1525 = vld [vmem:[%s1472 + $0x1a0] sm:$0xff]
        %v1526 = vld [vmem:[%s1472 + $0x1a8] sm:$0xff]
        %v1527 = vld [vmem:[%s1472 + $0x1b0] sm:$0xff]
        %v1528 = vld [vmem:[%s1472 + $0x1b8] sm:$0xff]
        %v1529 = vld [vmem:[%s1472 + $0x1c0] sm:$0xff]
        %v1530 = vld [vmem:[%s1472 + $0x1c8] sm:$0xff]
        %v1531 = vld [vmem:[%s1472 + $0x1d0] sm:$0xff]
        %v1532 = vld [vmem:[%s1472 + $0x1d8] sm:$0xff]
        %v1533 = vld [vmem:[%s1472 + $0x1e0] sm:$0xff]
        %v1534 = vld [vmem:[%s1472 + $0x1e8] sm:$0xff]
        %v1535 = vld [vmem:[%s1472 + $0x1f0] sm:$0xff]
        %v1536 = vld [vmem:[%s1472 + $0x1f8] sm:$0xff]
        %v1601 = vunpack.c.l.b16 %v1473
        %v1602 = vunpack.c.h.b16 %v1473
        %v1603 = vunpack.c.l.b16 %v1474
        %v1604 = vunpack.c.h.b16 %v1474
        %v1605 = vunpack.c.l.b16 %v1475
        %v1606 = vunpack.c.h.b16 %v1475
        %v1607 = vunpack.c.l.b16 %v1476
        %v1608 = vunpack.c.h.b16 %v1476
        %v1609 = vunpack.c.l.b16 %v1477
        %v1610 = vunpack.c.h.b16 %v1477
        %v1611 = vunpack.c.l.b16 %v1478
        %v1612 = vunpack.c.h.b16 %v1478
        %v1613 = vunpack.c.l.b16 %v1479
        %v1614 = vunpack.c.h.b16 %v1479
        %v1615 = vunpack.c.l.b16 %v1480
        %v1616 = vunpack.c.h.b16 %v1480
        %v1617 = vunpack.c.l.b16 %v1481
        %v1618 = vunpack.c.h.b16 %v1481
        %v1619 = vunpack.c.l.b16 %v1482
        %v1620 = vunpack.c.h.b16 %v1482
        %v1621 = vunpack.c.l.b16 %v1483
        %v1622 = vunpack.c.h.b16 %v1483
        %v1623 = vunpack.c.l.b16 %v1484
        %v1624 = vunpack.c.h.b16 %v1484
        %v1625 = vunpack.c.l.b16 %v1485
        %v1626 = vunpack.c.h.b16 %v1485
        %v1627 = vunpack.c.l.b16 %v1486
        %v1628 = vunpack.c.h.b16 %v1486
        %v1629 = vunpack.c.l.b16 %v1487
        %v1630 = vunpack.c.h.b16 %v1487
        %v1631 = vunpack.c.l.b16 %v1488
        %v1632 = vunpack.c.h.b16 %v1488
        %v1633 = vunpack.c.l.b16 %v1489
        %v1634 = vunpack.c.h.b16 %v1489
        %v1635 = vunpack.c.l.b16 %v1490
        %v1636 = vunpack.c.h.b16 %v1490
        %v1637 = vunpack.c.l.b16 %v1491
        %v1638 = vunpack.c.h.b16 %v1491
        %v1639 = vunpack.c.l.b16 %v1492
        %v1640 = vunpack.c.h.b16 %v1492
        %v1641 = vunpack.c.l.b16 %v1493
        %v1642 = vunpack.c.h.b16 %v1493
        %v1643 = vunpack.c.l.b16 %v1494
        %v1644 = vunpack.c.h.b16 %v1494
        %v1645 = vunpack.c.l.b16 %v1495
        %v1646 = vunpack.c.h.b16 %v1495
        %v1647 = vunpack.c.l.b16 %v1496
        %v1648 = vunpack.c.h.b16 %v1496
        %v1649 = vunpack.c.l.b16 %v1497
        %v1650 = vunpack.c.h.b16 %v1497
        %v1651 = vunpack.c.l.b16 %v1498
        %v1652 = vunpack.c.h.b16 %v1498
        %v1653 = vunpack.c.l.b16 %v1499
        %v1654 = vunpack.c.h.b16 %v1499
        %v1655 = vunpack.c.l.b16 %v1500
        %v1656 = vunpack.c.h.b16 %v1500
        %v1657 = vunpack.c.l.b16 %v1501
        %v1658 = vunpack.c.h.b16 %v1501
        %v1659 = vunpack.c.l.b16 %v1502
        %v1660 = vunpack.c.h.b16 %v1502
        %v1661 = vunpack.c.l.b16 %v1503
        %v1662 = vunpack.c.h.b16 %v1503
        %v1663 = vunpack.c.l.b16 %v1504
        %v1664 = vunpack.c.h.b16 %v1504
        %v1665 = vunpack.c.l.b16 %v1505
        %v1666 = vunpack.c.h.b16 %v1505
        %v1667 = vunpack.c.l.b16 %v1506
        %v1668 = vunpack.c.h.b16 %v1506
        %v1669 = vunpack.c.l.b16 %v1507
        %v1670 = vunpack.c.h.b16 %v1507
        %v1671 = vunpack.c.l.b16 %v1508
        %v1672 = vunpack.c.h.b16 %v1508
        %v1673 = vunpack.c.l.b16 %v1509
        %v1674 = vunpack.c.h.b16 %v1509
        %v1675 = vunpack.c.l.b16 %v1510
        %v1676 = vunpack.c.h.b16 %v1510
        %v1677 = vunpack.c.l.b16 %v1511
        %v1678 = vunpack.c.h.b16 %v1511
        %v1679 = vunpack.c.l.b16 %v1512
        %v1680 = vunpack.c.h.b16 %v1512
        %v1681 = vunpack.c.l.b16 %v1513
        %v1682 = vunpack.c.h.b16 %v1513
        %v1683 = vunpack.c.l.b16 %v1514
        %v1684 = vunpack.c.h.b16 %v1514
        %v1685 = vunpack.c.l.b16 %v1515
        %v1686 = vunpack.c.h.b16 %v1515
        %v1687 = vunpack.c.l.b16 %v1516
        %v1688 = vunpack.c.h.b16 %v1516
        %v1689 = vunpack.c.l.b16 %v1517
        %v1690 = vunpack.c.h.b16 %v1517
        %v1691 = vunpack.c.l.b16 %v1518
        %v1692 = vunpack.c.h.b16 %v1518
        %v1693 = vunpack.c.l.b16 %v1519
        %v1694 = vunpack.c.h.b16 %v1519
        %v1695 = vunpack.c.l.b16 %v1520
        %v1696 = vunpack.c.h.b16 %v1520
        %v1697 = vunpack.c.l.b16 %v1521
        %v1698 = vunpack.c.h.b16 %v1521
        %v1699 = vunpack.c.l.b16 %v1522
        %v1700 = vunpack.c.h.b16 %v1522
        %v1701 = vunpack.c.l.b16 %v1523
        %v1702 = vunpack.c.h.b16 %v1523
        %v1703 = vunpack.c.l.b16 %v1524
        %v1704 = vunpack.c.h.b16 %v1524
        %v1705 = vunpack.c.l.b16 %v1525
        %v1706 = vunpack.c.h.b16 %v1525
        %v1707 = vunpack.c.l.b16 %v1526
        %v1708 = vunpack.c.h.b16 %v1526
        %v1709 = vunpack.c.l.b16 %v1527
        %v1710 = vunpack.c.h.b16 %v1527
        %v1711 = vunpack.c.l.b16 %v1528
        %v1712 = vunpack.c.h.b16 %v1528
        %v1713 = vunpack.c.l.b16 %v1529
        %v1714 = vunpack.c.h.b16 %v1529
        %v1715 = vunpack.c.l.b16 %v1530
        %v1716 = vunpack.c.h.b16 %v1530
        %v1717 = vunpack.c.l.b16 %v1531
        %v1718 = vunpack.c.h.b16 %v1531
        %v1719 = vunpack.c.l.b16 %v1532
        %v1720 = vunpack.c.h.b16 %v1532
        %v1721 = vunpack.c.l.b16 %v1533
        %v1722 = vunpack.c.h.b16 %v1533
        %v1723 = vunpack.c.l.b16 %v1534
        %v1724 = vunpack.c.h.b16 %v1534
        %v1725 = vunpack.c.l.b16 %v1535
        %v1726 = vunpack.c.h.b16 %v1535
        %v1727 = vunpack.c.l.b16 %v1536
        %v1728 = vunpack.c.h.b16 %v1536
        %v1729 = vpack.c.b16 %v1605, %v1601
        %v1730 = vpack.c.b16 %v1606, %v1602
        %v1731 = vpack.c.b16 %v1607, %v1603
        %v1732 = vpack.c.b16 %v1608, %v1604
        %v1733 = vpack.c.b16 %v1613, %v1609
        %v1734 = vpack.c.b16 %v1614, %v1610
        %v1735 = vpack.c.b16 %v1615, %v1611
        %v1736 = vpack.c.b16 %v1616, %v1612
        %v1737 = vpack.c.b16 %v1621, %v1617
        %v1738 = vpack.c.b16 %v1622, %v1618
        %v1739 = vpack.c.b16 %v1623, %v1619
        %v1740 = vpack.c.b16 %v1624, %v1620
        %v1741 = vpack.c.b16 %v1629, %v1625
        %v1742 = vpack.c.b16 %v1630, %v1626
        %v1743 = vpack.c.b16 %v1631, %v1627
        %v1744 = vpack.c.b16 %v1632, %v1628
        %v1745 = vpack.c.b16 %v1637, %v1633
        %v1746 = vpack.c.b16 %v1638, %v1634
        %v1747 = vpack.c.b16 %v1639, %v1635
        %v1748 = vpack.c.b16 %v1640, %v1636
        %v1749 = vpack.c.b16 %v1645, %v1641
        %v1750 = vpack.c.b16 %v1646, %v1642
        %v1751 = vpack.c.b16 %v1647, %v1643
        %v1752 = vpack.c.b16 %v1648, %v1644
        %v1753 = vpack.c.b16 %v1653, %v1649
        %v1754 = vpack.c.b16 %v1654, %v1650
        %v1755 = vpack.c.b16 %v1655, %v1651
        %v1756 = vpack.c.b16 %v1656, %v1652
        %v1757 = vpack.c.b16 %v1661, %v1657
        %v1758 = vpack.c.b16 %v1662, %v1658
        %v1759 = vpack.c.b16 %v1663, %v1659
        %v1760 = vpack.c.b16 %v1664, %v1660
        %v1761 = vpack.c.b16 %v1669, %v1665
        %v1762 = vpack.c.b16 %v1670, %v1666
        %v1763 = vpack.c.b16 %v1671, %v1667
        %v1764 = vpack.c.b16 %v1672, %v1668
        %v1765 = vpack.c.b16 %v1677, %v1673
        %v1766 = vpack.c.b16 %v1678, %v1674
        %v1767 = vpack.c.b16 %v1679, %v1675
        %v1768 = vpack.c.b16 %v1680, %v1676
        %v1769 = vpack.c.b16 %v1685, %v1681
        %v1770 = vpack.c.b16 %v1686, %v1682
        %v1771 = vpack.c.b16 %v1687, %v1683
        %v1772 = vpack.c.b16 %v1688, %v1684
        %v1773 = vpack.c.b16 %v1693, %v1689
        %v1774 = vpack.c.b16 %v1694, %v1690
        %v1775 = vpack.c.b16 %v1695, %v1691
        %v1776 = vpack.c.b16 %v1696, %v1692
        %v1777 = vpack.c.b16 %v1701, %v1697
        %v1778 = vpack.c.b16 %v1702, %v1698
        %v1779 = vpack.c.b16 %v1703, %v1699
        %v1780 = vpack.c.b16 %v1704, %v1700
        %v1781 = vpack.c.b16 %v1709, %v1705
        %v1782 = vpack.c.b16 %v1710, %v1706
        %v1783 = vpack.c.b16 %v1711, %v1707
        %v1784 = vpack.c.b16 %v1712, %v1708
        %v1785 = vpack.c.b16 %v1717, %v1713
        %v1786 = vpack.c.b16 %v1718, %v1714
        %v1787 = vpack.c.b16 %v1719, %v1715
        %v1788 = vpack.c.b16 %v1720, %v1716
        %v1789 = vpack.c.b16 %v1725, %v1721
        %v1790 = vpack.c.b16 %v1726, %v1722
        %v1791 = vpack.c.b16 %v1727, %v1723
        %v1792 = vpack.c.b16 %v1728, %v1724
        %1857 = vmatprep.subr.bf16.mxu0 %v1730
        %1858 = vmatpush1.bf16.msra.mxu0 %v1729
        %1859 = vmatprep.subr.bf16.mxu0 %v1734
        %1860 = vmatpush1.bf16.msra.mxu0 %v1733
        %1861 = vmatprep.subr.bf16.mxu0 %v1738
        %1862 = vmatpush1.bf16.msra.mxu0 %v1737
        %1863 = vmatprep.subr.bf16.mxu0 %v1742
        %1864 = vmatpush1.bf16.msra.mxu0 %v1741
        %1865 = vmatprep.subr.bf16.mxu0 %v1746
        %1866 = vmatpush1.bf16.msra.mxu0 %v1745
        %1867 = vmatprep.subr.bf16.mxu0 %v1750
        %1868 = vmatpush1.bf16.msra.mxu0 %v1749
        %1869 = vmatprep.subr.bf16.mxu0 %v1754
        %1870 = vmatpush1.bf16.msra.mxu0 %v1753
        %1871 = vmatprep.subr.bf16.mxu0 %v1758
        %1872 = vmatpush1.bf16.msra.mxu0 %v1757
        %1873 = vmatprep.subr.bf16.mxu0 %v1762
        %1874 = vmatpush1.bf16.msra.mxu0 %v1761
        %1875 = vmatprep.subr.bf16.mxu0 %v1766
        %1876 = vmatpush1.bf16.msra.mxu0 %v1765
        %1877 = vmatprep.subr.bf16.mxu0 %v1770
        %1878 = vmatpush1.bf16.msra.mxu0 %v1769
        %1879 = vmatprep.subr.bf16.mxu0 %v1774
        %1880 = vmatpush1.bf16.msra.mxu0 %v1773
        %1881 = vmatprep.subr.bf16.mxu0 %v1778
        %1882 = vmatpush1.bf16.msra.mxu0 %v1777
        %1883 = vmatprep.subr.bf16.mxu0 %v1782
        %1884 = vmatpush1.bf16.msra.mxu0 %v1781
        %1885 = vmatprep.subr.bf16.mxu0 %v1786
        %1886 = vmatpush1.bf16.msra.mxu0 %v1785
        %1887 = vmatprep.subr.bf16.mxu0 %v1790
        %1888 = vmatpush1.bf16.msra.mxu0 %v1789
        %1889 = vmatprep.mubr.bf16.mxu0 %v991
        %1890 = vmatmul.mubr.bf16.gmra.mrb[0].mxu0 %v990
        %v1891 = vpop.f32.mrb[0].mxu0
        %v1892 = vadd.f32 0.0, %v1891
        %v1893 = vpop.f32.mrb[0].mxu0
        %v1894 = vadd.f32 0.0, %v1893
        %v1895 = vpop.f32.mrb[0].mxu0
        %v1896 = vadd.f32 0.0, %v1895
        %v1897 = vpop.f32.mrb[0].mxu0
        %v1898 = vadd.f32 0.0, %v1897
        %1899 = vmatprep.mubr.bf16.mxu0 %v993
        %1900 = vmatmul.mubr.bf16.gmra.mrb[0].mxu0 %v992
        %v1901 = vpop.f32.mrb[0].mxu0
        %v1902 = vadd.f32 0.0, %v1901
        %v1903 = vpop.f32.mrb[0].mxu0
        %v1904 = vadd.f32 0.0, %v1903
        %v1905 = vpop.f32.mrb[0].mxu0
        %v1906 = vadd.f32 0.0, %v1905
        %v1907 = vpop.f32.mrb[0].mxu0
        %v1908 = vadd.f32 0.0, %v1907
        %1909 = vmatprep.mubr.bf16.mxu0 %v995
        %1910 = vmatmul.mubr.bf16.gmra.mrb[0].mxu0 %v994
        %v1911 = vpop.f32.mrb[0].mxu0
        %v1912 = vadd.f32 0.0, %v1911
        %v1913 = vpop.f32.mrb[0].mxu0
        %v1914 = vadd.f32 0.0, %v1913
        %v1915 = vpop.f32.mrb[0].mxu0
        %v1916 = vadd.f32 0.0, %v1915
        %v1917 = vpop.f32.mrb[0].mxu0
        %v1918 = vadd.f32 0.0, %v1917
        %1919 = vmatprep.mubr.bf16.mxu0 %v997
        %1920 = vmatmul.mubr.bf16.gmra.mrb[0].mxu0 %v996
        %v1921 = vpop.f32.mrb[0].mxu0
        %v1922 = vadd.f32 0.0, %v1921
        %v1923 = vpop.f32.mrb[0].mxu0
        %v1924 = vadd.f32 0.0, %v1923
        %v1925 = vpop.f32.mrb[0].mxu0
        %v1926 = vadd.f32 0.0, %v1925
        %v1927 = vpop.f32.mrb[0].mxu0
        %v1928 = vadd.f32 0.0, %v1927
        %1929 = vdwg.mxu0
        %1930 = vmatprep.subr.bf16.mxu0 %v1732
        %1931 = vmatpush1.bf16.msra.mxu0 %v1731
        %1932 = vmatprep.subr.bf16.mxu0 %v1736
        %1933 = vmatpush1.bf16.msra.mxu0 %v1735
        %1934 = vmatprep.subr.bf16.mxu0 %v1740
        %1935 = vmatpush1.bf16.msra.mxu0 %v1739
        %1936 = vmatprep.subr.bf16.mxu0 %v1744
        %1937 = vmatpush1.bf16.msra.mxu0 %v1743
        %1938 = vmatprep.subr.bf16.mxu0 %v1748
        %1939 = vmatpush1.bf16.msra.mxu0 %v1747
        %1940 = vmatprep.subr.bf16.mxu0 %v1752
        %1941 = vmatpush1.bf16.msra.mxu0 %v1751
        %1942 = vmatprep.subr.bf16.mxu0 %v1756
        %1943 = vmatpush1.bf16.msra.mxu0 %v1755
        %1944 = vmatprep.subr.bf16.mxu0 %v1760
        %1945 = vmatpush1.bf16.msra.mxu0 %v1759
        %1946 = vmatprep.subr.bf16.mxu0 %v1764
        %1947 = vmatpush1.bf16.msra.mxu0 %v1763
        %1948 = vmatprep.subr.bf16.mxu0 %v1768
        %1949 = vmatpush1.bf16.msra.mxu0 %v1767
        %1950 = vmatprep.subr.bf16.mxu0 %v1772
        %1951 = vmatpush1.bf16.msra.mxu0 %v1771
        %1952 = vmatprep.subr.bf16.mxu0 %v1776
        %1953 = vmatpush1.bf16.msra.mxu0 %v1775
        %1954 = vmatprep.subr.bf16.mxu0 %v1780
        %1955 = vmatpush1.bf16.msra.mxu0 %v1779
        %1956 = vmatprep.subr.bf16.mxu0 %v1784
        %1957 = vmatpush1.bf16.msra.mxu0 %v1783
        %1958 = vmatprep.subr.bf16.mxu0 %v1788
        %1959 = vmatpush1.bf16.msra.mxu0 %v1787
        %1960 = vmatprep.subr.bf16.mxu0 %v1792
        %1961 = vmatpush1.bf16.msra.mxu0 %v1791
        %1962 = vmatprep.mubr.bf16.mxu0 %v991
        %1963 = vmatmul.mubr.bf16.gmra.mrb[0].mxu0 %v990
        %v1964 = vpop.f32.mrb[0].mxu0
        %v1965 = vadd.f32 0.0, %v1964
        %v1966 = vpop.f32.mrb[0].mxu0
        %v1967 = vadd.f32 0.0, %v1966
        %v1968 = vpop.f32.mrb[0].mxu0
        %v1969 = vadd.f32 0.0, %v1968
        %v1970 = vpop.f32.mrb[0].mxu0
        %v1971 = vadd.f32 0.0, %v1970
        %1972 = vmatprep.mubr.bf16.mxu0 %v993
        %1973 = vmatmul.mubr.bf16.gmra.mrb[0].mxu0 %v992
        %v1974 = vpop.f32.mrb[0].mxu0
        %v1975 = vadd.f32 0.0, %v1974
        %v1976 = vpop.f32.mrb[0].mxu0
        %v1977 = vadd.f32 0.0, %v1976
        %v1978 = vpop.f32.mrb[0].mxu0
        %v1979 = vadd.f32 0.0, %v1978
        %v1980 = vpop.f32.mrb[0].mxu0
        %v1981 = vadd.f32 0.0, %v1980
        %1982 = vmatprep.mubr.bf16.mxu0 %v995
        %1983 = vmatmul.mubr.bf16.gmra.mrb[0].mxu0 %v994
        %v1984 = vpop.f32.mrb[0].mxu0
        %v1985 = vadd.f32 0.0, %v1984
        %v1986 = vpop.f32.mrb[0].mxu0
        %v1987 = vadd.f32 0.0, %v1986
        %v1988 = vpop.f32.mrb[0].mxu0
        %v1989 = vadd.f32 0.0, %v1988
        %v1990 = vpop.f32.mrb[0].mxu0
        %v1991 = vadd.f32 0.0, %v1990
        %1992 = vmatprep.mubr.bf16.mxu0 %v997
        %1993 = vmatmul.mubr.bf16.gmra.mrb[0].mxu0 %v996
        %v1994 = vpop.f32.mrb[0].mxu0
        %v1995 = vadd.f32 0.0, %v1994
        %v1996 = vpop.f32.mrb[0].mxu0
        %v1997 = vadd.f32 0.0, %v1996
        %v1998 = vpop.f32.mrb[0].mxu0
        %v1999 = vadd.f32 0.0, %v1998
        %v2000 = vpop.f32.mrb[0].mxu0
        %v2001 = vadd.f32 0.0, %v2000
        %2002 = vdwg.mxu0
        %v2035 = vrot.slane %v1892, 1
        %v2036 = vrot.slane %v1894, 1
        %v2037 = vrot.slane %v1965, 1
        %v2038 = vrot.slane %v1967, 1
        %v2039 = vrot.slane %v1896, 1
        %v2040 = vrot.slane %v1898, 1
        %v2041 = vrot.slane %v1969, 1
        %v2042 = vrot.slane %v1971, 1
        %v2043 = vrot.slane %v1902, 1
        %v2044 = vrot.slane %v1904, 1
        %v2045 = vrot.slane %v1975, 1
        %v2046 = vrot.slane %v1977, 1
        %v2047 = vrot.slane %v1906, 1
        %v2048 = vrot.slane %v1908, 1
        %v2049 = vrot.slane %v1979, 1
        %v2050 = vrot.slane %v1981, 1
        %v2051 = vrot.slane %v1912, 1
        %v2052 = vrot.slane %v1914, 1
        %v2053 = vrot.slane %v1985, 1
        %v2054 = vrot.slane %v1987, 1
        %v2055 = vrot.slane %v1916, 1
        %v2056 = vrot.slane %v1918, 1
        %v2057 = vrot.slane %v1989, 1
        %v2058 = vrot.slane %v1991, 1
        %v2059 = vrot.slane %v1922, 1
        %v2060 = vrot.slane %v1924, 1
        %v2061 = vrot.slane %v1995, 1
        %v2062 = vrot.slane %v1997, 1
        %v2063 = vrot.slane %v1926, 1
        %v2064 = vrot.slane %v1928, 1
        %v2065 = vrot.slane %v1999, 1
        %v2066 = vrot.slane %v2001, 1
        %v2099 = vsel %vm528, %v2035, %v2035
        %v2100 = vsel %vm528, %v2036, %v2036
        %v2101 = vsel %vm528, %v2037, %v2037
        %v2102 = vsel %vm528, %v2038, %v2038
        %v2103 = vsel %vm528, %v2039, %v2039
        %v2104 = vsel %vm528, %v2040, %v2040
        %v2105 = vsel %vm528, %v2041, %v2041
        %v2106 = vsel %vm528, %v2042, %v2042
        %v2107 = vsel %vm528, %v2043, %v2043
        %v2108 = vsel %vm528, %v2044, %v2044
        %v2109 = vsel %vm528, %v2045, %v2045
        %v2110 = vsel %vm528, %v2046, %v2046
        %v2111 = vsel %vm528, %v2047, %v2047
        %v2112 = vsel %vm528, %v2048, %v2048
        %v2113 = vsel %vm528, %v2049, %v2049
        %v2114 = vsel %vm528, %v2050, %v2050
        %v2115 = vsel %vm528, %v2051, %v2051
        %v2116 = vsel %vm528, %v2052, %v2052
        %v2117 = vsel %vm528, %v2053, %v2053
        %v2118 = vsel %vm528, %v2054, %v2054
        %v2119 = vsel %vm528, %v2055, %v2055
        %v2120 = vsel %vm528, %v2056, %v2056
        %v2121 = vsel %vm528, %v2057, %v2057
        %v2122 = vsel %vm528, %v2058, %v2058
        %v2123 = vsel %vm528, %v2059, %v2059
        %v2124 = vsel %vm528, %v2060, %v2060
        %v2125 = vsel %vm528, %v2061, %v2061
        %v2126 = vsel %vm528, %v2062, %v2062
        %v2127 = vsel %vm528, %v2063, %v2063
        %v2128 = vsel %vm528, %v2064, %v2064
        %v2129 = vsel %vm528, %v2065, %v2065
        %v2130 = vsel %vm528, %v2066, %v2066
        %v2131 = vadd.f32 %v1361, %v2099
        %v2132 = vadd.f32 %v1363, %v2100
        %v2133 = vadd.f32 %v1434, %v2101
        %v2134 = vadd.f32 %v1436, %v2102
        %v2135 = vadd.f32 %v1365, %v2103
        %v2136 = vadd.f32 %v1367, %v2104
        %v2137 = vadd.f32 %v1438, %v2105
        %v2138 = vadd.f32 %v1440, %v2106
        %v2139 = vadd.f32 %v1371, %v2107
        %v2140 = vadd.f32 %v1373, %v2108
        %v2141 = vadd.f32 %v1444, %v2109
        %v2142 = vadd.f32 %v1446, %v2110
        %v2143 = vadd.f32 %v1375, %v2111
        %v2144 = vadd.f32 %v1377, %v2112
        %v2145 = vadd.f32 %v1448, %v2113
        %v2146 = vadd.f32 %v1450, %v2114
        %v2147 = vadd.f32 %v1381, %v2115
        %v2148 = vadd.f32 %v1383, %v2116
        %v2149 = vadd.f32 %v1454, %v2117
        %v2150 = vadd.f32 %v1456, %v2118
        %v2151 = vadd.f32 %v1385, %v2119
        %v2152 = vadd.f32 %v1387, %v2120
        %v2153 = vadd.f32 %v1458, %v2121
        %v2154 = vadd.f32 %v1460, %v2122
        %v2155 = vadd.f32 %v1391, %v2123
        %v2156 = vadd.f32 %v1393, %v2124
        %v2157 = vadd.f32 %v1464, %v2125
        %v2158 = vadd.f32 %v1466, %v2126
        %v2159 = vadd.f32 %v1395, %v2127
        %v2160 = vadd.f32 %v1397, %v2128
        %v2161 = vadd.f32 %v1468, %v2129
        %v2162 = vadd.f32 %v1470, %v2130
        %s2163 = scalar_lea.vmem [#allocation5], 1024
        %v2164 = vld [vmem:[%s2163] sm:$0xff]
        %v2165 = vld [vmem:[%s2163 + $0x8] sm:$0xff]
        %v2166 = vld [vmem:[%s2163 + $0x10] sm:$0xff]
        %v2167 = vld [vmem:[%s2163 + $0x18] sm:$0xff]
        %v2168 = vld [vmem:[%s2163 + $0x20] sm:$0xff]
        %v2169 = vld [vmem:[%s2163 + $0x28] sm:$0xff]
        %v2170 = vld [vmem:[%s2163 + $0x30] sm:$0xff]
        %v2171 = vld [vmem:[%s2163 + $0x38] sm:$0xff]
        %v2172 = vld [vmem:[%s2163 + $0x40] sm:$0xff]
        %v2173 = vld [vmem:[%s2163 + $0x48] sm:$0xff]
        %v2174 = vld [vmem:[%s2163 + $0x50] sm:$0xff]
        %v2175 = vld [vmem:[%s2163 + $0x58] sm:$0xff]
        %v2176 = vld [vmem:[%s2163 + $0x60] sm:$0xff]
        %v2177 = vld [vmem:[%s2163 + $0x68] sm:$0xff]
        %v2178 = vld [vmem:[%s2163 + $0x70] sm:$0xff]
        %v2179 = vld [vmem:[%s2163 + $0x78] sm:$0xff]
        %v2180 = vld [vmem:[%s2163 + $0x80] sm:$0xff]
        %v2181 = vld [vmem:[%s2163 + $0x88] sm:$0xff]
        %v2182 = vld [vmem:[%s2163 + $0x90] sm:$0xff]
        %v2183 = vld [vmem:[%s2163 + $0x98] sm:$0xff]
        %v2184 = vld [vmem:[%s2163 + $0xa0] sm:$0xff]
        %v2185 = vld [vmem:[%s2163 + $0xa8] sm:$0xff]
        %v2186 = vld [vmem:[%s2163 + $0xb0] sm:$0xff]
        %v2187 = vld [vmem:[%s2163 + $0xb8] sm:$0xff]
        %v2188 = vld [vmem:[%s2163 + $0xc0] sm:$0xff]
        %v2189 = vld [vmem:[%s2163 + $0xc8] sm:$0xff]
        %v2190 = vld [vmem:[%s2163 + $0xd0] sm:$0xff]
        %v2191 = vld [vmem:[%s2163 + $0xd8] sm:$0xff]
        %v2192 = vld [vmem:[%s2163 + $0xe0] sm:$0xff]
        %v2193 = vld [vmem:[%s2163 + $0xe8] sm:$0xff]
        %v2194 = vld [vmem:[%s2163 + $0xf0] sm:$0xff]
        %v2195 = vld [vmem:[%s2163 + $0xf8] sm:$0xff]
        %v2196 = vld [vmem:[%s2163 + $0x100] sm:$0xff]
        %v2197 = vld [vmem:[%s2163 + $0x108] sm:$0xff]
        %v2198 = vld [vmem:[%s2163 + $0x110] sm:$0xff]
        %v2199 = vld [vmem:[%s2163 + $0x118] sm:$0xff]
        %v2200 = vld [vmem:[%s2163 + $0x120] sm:$0xff]
        %v2201 = vld [vmem:[%s2163 + $0x128] sm:$0xff]
        %v2202 = vld [vmem:[%s2163 + $0x130] sm:$0xff]
        %v2203 = vld [vmem:[%s2163 + $0x138] sm:$0xff]
        %v2204 = vld [vmem:[%s2163 + $0x140] sm:$0xff]
        %v2205 = vld [vmem:[%s2163 + $0x148] sm:$0xff]
        %v2206 = vld [vmem:[%s2163 + $0x150] sm:$0xff]
        %v2207 = vld [vmem:[%s2163 + $0x158] sm:$0xff]
        %v2208 = vld [vmem:[%s2163 + $0x160] sm:$0xff]
        %v2209 = vld [vmem:[%s2163 + $0x168] sm:$0xff]
        %v2210 = vld [vmem:[%s2163 + $0x170] sm:$0xff]
        %v2211 = vld [vmem:[%s2163 + $0x178] sm:$0xff]
        %v2212 = vld [vmem:[%s2163 + $0x180] sm:$0xff]
        %v2213 = vld [vmem:[%s2163 + $0x188] sm:$0xff]
        %v2214 = vld [vmem:[%s2163 + $0x190] sm:$0xff]
        %v2215 = vld [vmem:[%s2163 + $0x198] sm:$0xff]
        %v2216 = vld [vmem:[%s2163 + $0x1a0] sm:$0xff]
        %v2217 = vld [vmem:[%s2163 + $0x1a8] sm:$0xff]
        %v2218 = vld [vmem:[%s2163 + $0x1b0] sm:$0xff]
        %v2219 = vld [vmem:[%s2163 + $0x1b8] sm:$0xff]
        %v2220 = vld [vmem:[%s2163 + $0x1c0] sm:$0xff]
        %v2221 = vld [vmem:[%s2163 + $0x1c8] sm:$0xff]
        %v2222 = vld [vmem:[%s2163 + $0x1d0] sm:$0xff]
        %v2223 = vld [vmem:[%s2163 + $0x1d8] sm:$0xff]
        %v2224 = vld [vmem:[%s2163 + $0x1e0] sm:$0xff]
        %v2225 = vld [vmem:[%s2163 + $0x1e8] sm:$0xff]
        %v2226 = vld [vmem:[%s2163 + $0x1f0] sm:$0xff]
        %v2227 = vld [vmem:[%s2163 + $0x1f8] sm:$0xff]
        %v2292 = vunpack.c.l.b16 %v2164
        %v2293 = vunpack.c.h.b16 %v2164
        %v2294 = vunpack.c.l.b16 %v2165
        %v2295 = vunpack.c.h.b16 %v2165
        %v2296 = vunpack.c.l.b16 %v2166
        %v2297 = vunpack.c.h.b16 %v2166
        %v2298 = vunpack.c.l.b16 %v2167
        %v2299 = vunpack.c.h.b16 %v2167
        %v2300 = vunpack.c.l.b16 %v2168
        %v2301 = vunpack.c.h.b16 %v2168
        %v2302 = vunpack.c.l.b16 %v2169
        %v2303 = vunpack.c.h.b16 %v2169
        %v2304 = vunpack.c.l.b16 %v2170
        %v2305 = vunpack.c.h.b16 %v2170
        %v2306 = vunpack.c.l.b16 %v2171
        %v2307 = vunpack.c.h.b16 %v2171
        %v2308 = vunpack.c.l.b16 %v2172
        %v2309 = vunpack.c.h.b16 %v2172
        %v2310 = vunpack.c.l.b16 %v2173
        %v2311 = vunpack.c.h.b16 %v2173
        %v2312 = vunpack.c.l.b16 %v2174
        %v2313 = vunpack.c.h.b16 %v2174
        %v2314 = vunpack.c.l.b16 %v2175
        %v2315 = vunpack.c.h.b16 %v2175
        %v2316 = vunpack.c.l.b16 %v2176
        %v2317 = vunpack.c.h.b16 %v2176
        %v2318 = vunpack.c.l.b16 %v2177
        %v2319 = vunpack.c.h.b16 %v2177
        %v2320 = vunpack.c.l.b16 %v2178
        %v2321 = vunpack.c.h.b16 %v2178
        %v2322 = vunpack.c.l.b16 %v2179
        %v2323 = vunpack.c.h.b16 %v2179
        %v2324 = vunpack.c.l.b16 %v2180
        %v2325 = vunpack.c.h.b16 %v2180
        %v2326 = vunpack.c.l.b16 %v2181
        %v2327 = vunpack.c.h.b16 %v2181
        %v2328 = vunpack.c.l.b16 %v2182
        %v2329 = vunpack.c.h.b16 %v2182
        %v2330 = vunpack.c.l.b16 %v2183
        %v2331 = vunpack.c.h.b16 %v2183
        %v2332 = vunpack.c.l.b16 %v2184
        %v2333 = vunpack.c.h.b16 %v2184
        %v2334 = vunpack.c.l.b16 %v2185
        %v2335 = vunpack.c.h.b16 %v2185
        %v2336 = vunpack.c.l.b16 %v2186
        %v2337 = vunpack.c.h.b16 %v2186
        %v2338 = vunpack.c.l.b16 %v2187
        %v2339 = vunpack.c.h.b16 %v2187
        %v2340 = vunpack.c.l.b16 %v2188
        %v2341 = vunpack.c.h.b16 %v2188
        %v2342 = vunpack.c.l.b16 %v2189
        %v2343 = vunpack.c.h.b16 %v2189
        %v2344 = vunpack.c.l.b16 %v2190
        %v2345 = vunpack.c.h.b16 %v2190
        %v2346 = vunpack.c.l.b16 %v2191
        %v2347 = vunpack.c.h.b16 %v2191
        %v2348 = vunpack.c.l.b16 %v2192
        %v2349 = vunpack.c.h.b16 %v2192
        %v2350 = vunpack.c.l.b16 %v2193
        %v2351 = vunpack.c.h.b16 %v2193
        %v2352 = vunpack.c.l.b16 %v2194
        %v2353 = vunpack.c.h.b16 %v2194
        %v2354 = vunpack.c.l.b16 %v2195
        %v2355 = vunpack.c.h.b16 %v2195
        %v2356 = vunpack.c.l.b16 %v2196
        %v2357 = vunpack.c.h.b16 %v2196
        %v2358 = vunpack.c.l.b16 %v2197
        %v2359 = vunpack.c.h.b16 %v2197
        %v2360 = vunpack.c.l.b16 %v2198
        %v2361 = vunpack.c.h.b16 %v2198
        %v2362 = vunpack.c.l.b16 %v2199
        %v2363 = vunpack.c.h.b16 %v2199
        %v2364 = vunpack.c.l.b16 %v2200
        %v2365 = vunpack.c.h.b16 %v2200
        %v2366 = vunpack.c.l.b16 %v2201
        %v2367 = vunpack.c.h.b16 %v2201
        %v2368 = vunpack.c.l.b16 %v2202
        %v2369 = vunpack.c.h.b16 %v2202
        %v2370 = vunpack.c.l.b16 %v2203
        %v2371 = vunpack.c.h.b16 %v2203
        %v2372 = vunpack.c.l.b16 %v2204
        %v2373 = vunpack.c.h.b16 %v2204
        %v2374 = vunpack.c.l.b16 %v2205
        %v2375 = vunpack.c.h.b16 %v2205
        %v2376 = vunpack.c.l.b16 %v2206
        %v2377 = vunpack.c.h.b16 %v2206
        %v2378 = vunpack.c.l.b16 %v2207
        %v2379 = vunpack.c.h.b16 %v2207
        %v2380 = vunpack.c.l.b16 %v2208
        %v2381 = vunpack.c.h.b16 %v2208
        %v2382 = vunpack.c.l.b16 %v2209
        %v2383 = vunpack.c.h.b16 %v2209
        %v2384 = vunpack.c.l.b16 %v2210
        %v2385 = vunpack.c.h.b16 %v2210
        %v2386 = vunpack.c.l.b16 %v2211
        %v2387 = vunpack.c.h.b16 %v2211
        %v2388 = vunpack.c.l.b16 %v2212
        %v2389 = vunpack.c.h.b16 %v2212
        %v2390 = vunpack.c.l.b16 %v2213
        %v2391 = vunpack.c.h.b16 %v2213
        %v2392 = vunpack.c.l.b16 %v2214
        %v2393 = vunpack.c.h.b16 %v2214
        %v2394 = vunpack.c.l.b16 %v2215
        %v2395 = vunpack.c.h.b16 %v2215
        %v2396 = vunpack.c.l.b16 %v2216
        %v2397 = vunpack.c.h.b16 %v2216
        %v2398 = vunpack.c.l.b16 %v2217
        %v2399 = vunpack.c.h.b16 %v2217
        %v2400 = vunpack.c.l.b16 %v2218
        %v2401 = vunpack.c.h.b16 %v2218
        %v2402 = vunpack.c.l.b16 %v2219
        %v2403 = vunpack.c.h.b16 %v2219
        %v2404 = vunpack.c.l.b16 %v2220
        %v2405 = vunpack.c.h.b16 %v2220
        %v2406 = vunpack.c.l.b16 %v2221
        %v2407 = vunpack.c.h.b16 %v2221
        %v2408 = vunpack.c.l.b16 %v2222
        %v2409 = vunpack.c.h.b16 %v2222
        %v2410 = vunpack.c.l.b16 %v2223
        %v2411 = vunpack.c.h.b16 %v2223
        %v2412 = vunpack.c.l.b16 %v2224
        %v2413 = vunpack.c.h.b16 %v2224
        %v2414 = vunpack.c.l.b16 %v2225
        %v2415 = vunpack.c.h.b16 %v2225
        %v2416 = vunpack.c.l.b16 %v2226
        %v2417 = vunpack.c.h.b16 %v2226
        %v2418 = vunpack.c.l.b16 %v2227
        %v2419 = vunpack.c.h.b16 %v2227
        %v2420 = vpack.c.b16 %v2296, %v2292
        %v2421 = vpack.c.b16 %v2297, %v2293
        %v2422 = vpack.c.b16 %v2298, %v2294
        %v2423 = vpack.c.b16 %v2299, %v2295
        %v2424 = vpack.c.b16 %v2304, %v2300
        %v2425 = vpack.c.b16 %v2305, %v2301
        %v2426 = vpack.c.b16 %v2306, %v2302
        %v2427 = vpack.c.b16 %v2307, %v2303
        %v2428 = vpack.c.b16 %v2312, %v2308
        %v2429 = vpack.c.b16 %v2313, %v2309
        %v2430 = vpack.c.b16 %v2314, %v2310
        %v2431 = vpack.c.b16 %v2315, %v2311
        %v2432 = vpack.c.b16 %v2320, %v2316
        %v2433 = vpack.c.b16 %v2321, %v2317
        %v2434 = vpack.c.b16 %v2322, %v2318
        %v2435 = vpack.c.b16 %v2323, %v2319
        %v2436 = vpack.c.b16 %v2328, %v2324
        %v2437 = vpack.c.b16 %v2329, %v2325
        %v2438 = vpack.c.b16 %v2330, %v2326
        %v2439 = vpack.c.b16 %v2331, %v2327
        %v2440 = vpack.c.b16 %v2336, %v2332
        %v2441 = vpack.c.b16 %v2337, %v2333
        %v2442 = vpack.c.b16 %v2338, %v2334
        %v2443 = vpack.c.b16 %v2339, %v2335
        %v2444 = vpack.c.b16 %v2344, %v2340
        %v2445 = vpack.c.b16 %v2345, %v2341
        %v2446 = vpack.c.b16 %v2346, %v2342
        %v2447 = vpack.c.b16 %v2347, %v2343
        %v2448 = vpack.c.b16 %v2352, %v2348
        %v2449 = vpack.c.b16 %v2353, %v2349
        %v2450 = vpack.c.b16 %v2354, %v2350
        %v2451 = vpack.c.b16 %v2355, %v2351
        %v2452 = vpack.c.b16 %v2360, %v2356
        %v2453 = vpack.c.b16 %v2361, %v2357
        %v2454 = vpack.c.b16 %v2362, %v2358
        %v2455 = vpack.c.b16 %v2363, %v2359
        %v2456 = vpack.c.b16 %v2368, %v2364
        %v2457 = vpack.c.b16 %v2369, %v2365
        %v2458 = vpack.c.b16 %v2370, %v2366
        %v2459 = vpack.c.b16 %v2371, %v2367
        %v2460 = vpack.c.b16 %v2376, %v2372
        %v2461 = vpack.c.b16 %v2377, %v2373
        %v2462 = vpack.c.b16 %v2378, %v2374
        %v2463 = vpack.c.b16 %v2379, %v2375
        %v2464 = vpack.c.b16 %v2384, %v2380
        %v2465 = vpack.c.b16 %v2385, %v2381
        %v2466 = vpack.c.b16 %v2386, %v2382
        %v2467 = vpack.c.b16 %v2387, %v2383
        %v2468 = vpack.c.b16 %v2392, %v2388
        %v2469 = vpack.c.b16 %v2393, %v2389
        %v2470 = vpack.c.b16 %v2394, %v2390
        %v2471 = vpack.c.b16 %v2395, %v2391
        %v2472 = vpack.c.b16 %v2400, %v2396
        %v2473 = vpack.c.b16 %v2401, %v2397
        %v2474 = vpack.c.b16 %v2402, %v2398
        %v2475 = vpack.c.b16 %v2403, %v2399
        %v2476 = vpack.c.b16 %v2408, %v2404
        %v2477 = vpack.c.b16 %v2409, %v2405
        %v2478 = vpack.c.b16 %v2410, %v2406
        %v2479 = vpack.c.b16 %v2411, %v2407
        %v2480 = vpack.c.b16 %v2416, %v2412
        %v2481 = vpack.c.b16 %v2417, %v2413
        %v2482 = vpack.c.b16 %v2418, %v2414
        %v2483 = vpack.c.b16 %v2419, %v2415
        %2548 = vmatprep.subr.bf16.mxu0 %v2421
        %2549 = vmatpush1.bf16.msra.mxu0 %v2420
        %2550 = vmatprep.subr.bf16.mxu0 %v2425
        %2551 = vmatpush1.bf16.msra.mxu0 %v2424
        %2552 = vmatprep.subr.bf16.mxu0 %v2429
        %2553 = vmatpush1.bf16.msra.mxu0 %v2428
        %2554 = vmatprep.subr.bf16.mxu0 %v2433
        %2555 = vmatpush1.bf16.msra.mxu0 %v2432
        %2556 = vmatprep.subr.bf16.mxu0 %v2437
        %2557 = vmatpush1.bf16.msra.mxu0 %v2436
        %2558 = vmatprep.subr.bf16.mxu0 %v2441
        %2559 = vmatpush1.bf16.msra.mxu0 %v2440
        %2560 = vmatprep.subr.bf16.mxu0 %v2445
        %2561 = vmatpush1.bf16.msra.mxu0 %v2444
        %2562 = vmatprep.subr.bf16.mxu0 %v2449
        %2563 = vmatpush1.bf16.msra.mxu0 %v2448
        %2564 = vmatprep.subr.bf16.mxu0 %v2453
        %2565 = vmatpush1.bf16.msra.mxu0 %v2452
        %2566 = vmatprep.subr.bf16.mxu0 %v2457
        %2567 = vmatpush1.bf16.msra.mxu0 %v2456
        %2568 = vmatprep.subr.bf16.mxu0 %v2461
        %2569 = vmatpush1.bf16.msra.mxu0 %v2460
        %2570 = vmatprep.subr.bf16.mxu0 %v2465
        %2571 = vmatpush1.bf16.msra.mxu0 %v2464
        %2572 = vmatprep.subr.bf16.mxu0 %v2469
        %2573 = vmatpush1.bf16.msra.mxu0 %v2468
        %2574 = vmatprep.subr.bf16.mxu0 %v2473
        %2575 = vmatpush1.bf16.msra.mxu0 %v2472
        %2576 = vmatprep.subr.bf16.mxu0 %v2477
        %2577 = vmatpush1.bf16.msra.mxu0 %v2476
        %2578 = vmatprep.subr.bf16.mxu0 %v2481
        %2579 = vmatpush1.bf16.msra.mxu0 %v2480
        %2580 = vmatprep.mubr.bf16.mxu0 %v991
        %2581 = vmatmul.mubr.bf16.gmra.mrb[0].mxu0 %v990
        %v2582 = vpop.f32.mrb[0].mxu0
        %v2583 = vadd.f32 0.0, %v2582
        %v2584 = vpop.f32.mrb[0].mxu0
        %v2585 = vadd.f32 0.0, %v2584
        %v2586 = vpop.f32.mrb[0].mxu0
        %v2587 = vadd.f32 0.0, %v2586
        %v2588 = vpop.f32.mrb[0].mxu0
        %v2589 = vadd.f32 0.0, %v2588
        %2590 = vmatprep.mubr.bf16.mxu0 %v993
        %2591 = vmatmul.mubr.bf16.gmra.mrb[0].mxu0 %v992
        %v2592 = vpop.f32.mrb[0].mxu0
        %v2593 = vadd.f32 0.0, %v2592
        %v2594 = vpop.f32.mrb[0].mxu0
        %v2595 = vadd.f32 0.0, %v2594
        %v2596 = vpop.f32.mrb[0].mxu0
        %v2597 = vadd.f32 0.0, %v2596
        %v2598 = vpop.f32.mrb[0].mxu0
        %v2599 = vadd.f32 0.0, %v2598
        %2600 = vmatprep.mubr.bf16.mxu0 %v995
        %2601 = vmatmul.mubr.bf16.gmra.mrb[0].mxu0 %v994
        %v2602 = vpop.f32.mrb[0].mxu0
        %v2603 = vadd.f32 0.0, %v2602
        %v2604 = vpop.f32.mrb[0].mxu0
        %v2605 = vadd.f32 0.0, %v2604
        %v2606 = vpop.f32.mrb[0].mxu0
        %v2607 = vadd.f32 0.0, %v2606
        %v2608 = vpop.f32.mrb[0].mxu0
        %v2609 = vadd.f32 0.0, %v2608
        %2610 = vmatprep.mubr.bf16.mxu0 %v997
        %2611 = vmatmul.mubr.bf16.gmra.mrb[0].mxu0 %v996
        %v2612 = vpop.f32.mrb[0].mxu0
        %v2613 = vadd.f32 0.0, %v2612
        %v2614 = vpop.f32.mrb[0].mxu0
        %v2615 = vadd.f32 0.0, %v2614
        %v2616 = vpop.f32.mrb[0].mxu0
        %v2617 = vadd.f32 0.0, %v2616
        %v2618 = vpop.f32.mrb[0].mxu0
        %v2619 = vadd.f32 0.0, %v2618
        %2620 = vdwg.mxu0
        %2621 = vmatprep.subr.bf16.mxu0 %v2423
        %2622 = vmatpush1.bf16.msra.mxu0 %v2422
        %2623 = vmatprep.subr.bf16.mxu0 %v2427
        %2624 = vmatpush1.bf16.msra.mxu0 %v2426
        %2625 = vmatprep.subr.bf16.mxu0 %v2431
        %2626 = vmatpush1.bf16.msra.mxu0 %v2430
        %2627 = vmatprep.subr.bf16.mxu0 %v2435
        %2628 = vmatpush1.bf16.msra.mxu0 %v2434
        %2629 = vmatprep.subr.bf16.mxu0 %v2439
        %2630 = vmatpush1.bf16.msra.mxu0 %v2438
        %2631 = vmatprep.subr.bf16.mxu0 %v2443
        %2632 = vmatpush1.bf16.msra.mxu0 %v2442
        %2633 = vmatprep.subr.bf16.mxu0 %v2447
        %2634 = vmatpush1.bf16.msra.mxu0 %v2446
        %2635 = vmatprep.subr.bf16.mxu0 %v2451
        %2636 = vmatpush1.bf16.msra.mxu0 %v2450
        %2637 = vmatprep.subr.bf16.mxu0 %v2455
        %2638 = vmatpush1.bf16.msra.mxu0 %v2454
        %2639 = vmatprep.subr.bf16.mxu0 %v2459
        %2640 = vmatpush1.bf16.msra.mxu0 %v2458
        %2641 = vmatprep.subr.bf16.mxu0 %v2463
        %2642 = vmatpush1.bf16.msra.mxu0 %v2462
        %2643 = vmatprep.subr.bf16.mxu0 %v2467
        %2644 = vmatpush1.bf16.msra.mxu0 %v2466
        %2645 = vmatprep.subr.bf16.mxu0 %v2471
        %2646 = vmatpush1.bf16.msra.mxu0 %v2470
        %2647 = vmatprep.subr.bf16.mxu0 %v2475
        %2648 = vmatpush1.bf16.msra.mxu0 %v2474
        %2649 = vmatprep.subr.bf16.mxu0 %v2479
        %2650 = vmatpush1.bf16.msra.mxu0 %v2478
        %2651 = vmatprep.subr.bf16.mxu0 %v2483
        %2652 = vmatpush1.bf16.msra.mxu0 %v2482
        %2653 = vmatprep.mubr.bf16.mxu0 %v991
        %2654 = vmatmul.mubr.bf16.gmra.mrb[0].mxu0 %v990
        %v2655 = vpop.f32.mrb[0].mxu0
        %v2656 = vadd.f32 0.0, %v2655
        %v2657 = vpop.f32.mrb[0].mxu0
        %v2658 = vadd.f32 0.0, %v2657
        %v2659 = vpop.f32.mrb[0].mxu0
        %v2660 = vadd.f32 0.0, %v2659
        %v2661 = vpop.f32.mrb[0].mxu0
        %v2662 = vadd.f32 0.0, %v2661
        %2663 = vmatprep.mubr.bf16.mxu0 %v993
        %2664 = vmatmul.mubr.bf16.gmra.mrb[0].mxu0 %v992
        %v2665 = vpop.f32.mrb[0].mxu0
        %v2666 = vadd.f32 0.0, %v2665
        %v2667 = vpop.f32.mrb[0].mxu0
        %v2668 = vadd.f32 0.0, %v2667
        %v2669 = vpop.f32.mrb[0].mxu0
        %v2670 = vadd.f32 0.0, %v2669
        %v2671 = vpop.f32.mrb[0].mxu0
        %v2672 = vadd.f32 0.0, %v2671
        %2673 = vmatprep.mubr.bf16.mxu0 %v995
        %2674 = vmatmul.mubr.bf16.gmra.mrb[0].mxu0 %v994
        %v2675 = vpop.f32.mrb[0].mxu0
        %v2676 = vadd.f32 0.0, %v2675
        %v2677 = vpop.f32.mrb[0].mxu0
        %v2678 = vadd.f32 0.0, %v2677
        %v2679 = vpop.f32.mrb[0].mxu0
        %v2680 = vadd.f32 0.0, %v2679
        %v2681 = vpop.f32.mrb[0].mxu0
        %v2682 = vadd.f32 0.0, %v2681
        %2683 = vmatprep.mubr.bf16.mxu0 %v997
        %2684 = vmatmul.mubr.bf16.gmra.mrb[0].mxu0 %v996
        %v2685 = vpop.f32.mrb[0].mxu0
        %v2686 = vadd.f32 0.0, %v2685
        %v2687 = vpop.f32.mrb[0].mxu0
        %v2688 = vadd.f32 0.0, %v2687
        %v2689 = vpop.f32.mrb[0].mxu0
        %v2690 = vadd.f32 0.0, %v2689
        %v2691 = vpop.f32.mrb[0].mxu0
        %v2692 = vadd.f32 0.0, %v2691
        %2693 = vdwg.mxu0
        %v2726 = vrot.slane %v2583, 7
        %v2727 = vrot.slane %v2585, 7
        %v2728 = vrot.slane %v2656, 7
        %v2729 = vrot.slane %v2658, 7
        %v2730 = vrot.slane %v2587, 7
        %v2731 = vrot.slane %v2589, 7
        %v2732 = vrot.slane %v2660, 7
        %v2733 = vrot.slane %v2662, 7
        %v2734 = vrot.slane %v2593, 7
        %v2735 = vrot.slane %v2595, 7
        %v2736 = vrot.slane %v2666, 7
        %v2737 = vrot.slane %v2668, 7
        %v2738 = vrot.slane %v2597, 7
        %v2739 = vrot.slane %v2599, 7
        %v2740 = vrot.slane %v2670, 7
        %v2741 = vrot.slane %v2672, 7
        %v2742 = vrot.slane %v2603, 7
        %v2743 = vrot.slane %v2605, 7
        %v2744 = vrot.slane %v2676, 7
        %v2745 = vrot.slane %v2678, 7
        %v2746 = vrot.slane %v2607, 7
        %v2747 = vrot.slane %v2609, 7
        %v2748 = vrot.slane %v2680, 7
        %v2749 = vrot.slane %v2682, 7
        %v2750 = vrot.slane %v2613, 7
        %v2751 = vrot.slane %v2615, 7
        %v2752 = vrot.slane %v2686, 7
        %v2753 = vrot.slane %v2688, 7
        %v2754 = vrot.slane %v2617, 7
        %v2755 = vrot.slane %v2619, 7
        %v2756 = vrot.slane %v2690, 7
        %v2757 = vrot.slane %v2692, 7
        %v2790 = vsel %vm553, %v2726, %v2726
        %v2791 = vsel %vm553, %v2727, %v2727
        %v2792 = vsel %vm553, %v2728, %v2728
        %v2793 = vsel %vm553, %v2729, %v2729
        %v2794 = vsel %vm553, %v2730, %v2730
        %v2795 = vsel %vm553, %v2731, %v2731
        %v2796 = vsel %vm553, %v2732, %v2732
        %v2797 = vsel %vm553, %v2733, %v2733
        %v2798 = vsel %vm553, %v2734, %v2734
        %v2799 = vsel %vm553, %v2735, %v2735
        %v2800 = vsel %vm553, %v2736, %v2736
        %v2801 = vsel %vm553, %v2737, %v2737
        %v2802 = vsel %vm553, %v2738, %v2738
        %v2803 = vsel %vm553, %v2739, %v2739
        %v2804 = vsel %vm553, %v2740, %v2740
        %v2805 = vsel %vm553, %v2741, %v2741
        %v2806 = vsel %vm553, %v2742, %v2742
        %v2807 = vsel %vm553, %v2743, %v2743
        %v2808 = vsel %vm553, %v2744, %v2744
        %v2809 = vsel %vm553, %v2745, %v2745
        %v2810 = vsel %vm553, %v2746, %v2746
        %v2811 = vsel %vm553, %v2747, %v2747
        %v2812 = vsel %vm553, %v2748, %v2748
        %v2813 = vsel %vm553, %v2749, %v2749
        %v2814 = vsel %vm553, %v2750, %v2750
        %v2815 = vsel %vm553, %v2751, %v2751
        %v2816 = vsel %vm553, %v2752, %v2752
        %v2817 = vsel %vm553, %v2753, %v2753
        %v2818 = vsel %vm553, %v2754, %v2754
        %v2819 = vsel %vm553, %v2755, %v2755
        %v2820 = vsel %vm553, %v2756, %v2756
        %v2821 = vsel %vm553, %v2757, %v2757
        %v2822 = vadd.f32 %v2131, %v2790
        %v2823 = vadd.f32 %v2132, %v2791
        %v2824 = vadd.f32 %v2133, %v2792
        %v2825 = vadd.f32 %v2134, %v2793
        %v2826 = vadd.f32 %v2135, %v2794
        %v2827 = vadd.f32 %v2136, %v2795
        %v2828 = vadd.f32 %v2137, %v2796
        %v2829 = vadd.f32 %v2138, %v2797
        %v2830 = vadd.f32 %v2139, %v2798
        %v2831 = vadd.f32 %v2140, %v2799
        %v2832 = vadd.f32 %v2141, %v2800
        %v2833 = vadd.f32 %v2142, %v2801
        %v2834 = vadd.f32 %v2143, %v2802
        %v2835 = vadd.f32 %v2144, %v2803
        %v2836 = vadd.f32 %v2145, %v2804
        %v2837 = vadd.f32 %v2146, %v2805
        %v2838 = vadd.f32 %v2147, %v2806
        %v2839 = vadd.f32 %v2148, %v2807
        %v2840 = vadd.f32 %v2149, %v2808
        %v2841 = vadd.f32 %v2150, %v2809
        %v2842 = vadd.f32 %v2151, %v2810
        %v2843 = vadd.f32 %v2152, %v2811
        %v2844 = vadd.f32 %v2153, %v2812
        %v2845 = vadd.f32 %v2154, %v2813
        %v2846 = vadd.f32 %v2155, %v2814
        %v2847 = vadd.f32 %v2156, %v2815
        %v2848 = vadd.f32 %v2157, %v2816
        %v2849 = vadd.f32 %v2158, %v2817
        %v2850 = vadd.f32 %v2159, %v2818
        %v2851 = vadd.f32 %v2160, %v2819
        %v2852 = vadd.f32 %v2161, %v2820
        %v2853 = vadd.f32 %v2162, %v2821
        %v2854 = vld [vmem:[%s5] sm:$0xf]
        %v2856 = vlaneseq
        %v2857 = vshrl.u32 %v2856, 7
        %v2858 = vsub.s32 0, %v2857
        %v2859 = vrot.slane %v2854, %v2858
        %v2860 = vlaneseq
        %v2861 = vshrl.u32 %v2860, 7
        %v2862 = vsub.s32 1, %v2861
        %v2863 = vrot.slane %v2854, %v2862
        %v2864 = vlaneseq
        %v2865 = vshrl.u32 %v2864, 7
        %v2866 = vsub.s32 2, %v2865
        %v2867 = vrot.slane %v2854, %v2866
        %v2868 = vlaneseq
        %v2869 = vshrl.u32 %v2868, 7
        %v2870 = vsub.s32 3, %v2869
        %v2871 = vrot.slane %v2854, %v2870
        %v2876 = vmul.f32 %v2822, %v2859
        %v2877 = vmul.f32 %v2823, %v2863
        %v2878 = vmul.f32 %v2824, %v2867
        %v2879 = vmul.f32 %v2825, %v2871
        %v2880 = vmul.f32 %v2826, %v2859
        %v2881 = vmul.f32 %v2827, %v2863
        %v2882 = vmul.f32 %v2828, %v2867
        %v2883 = vmul.f32 %v2829, %v2871
        %v2884 = vmul.f32 %v2830, %v2859
        %v2885 = vmul.f32 %v2831, %v2863
        %v2886 = vmul.f32 %v2832, %v2867
        %v2887 = vmul.f32 %v2833, %v2871
        %v2888 = vmul.f32 %v2834, %v2859
        %v2889 = vmul.f32 %v2835, %v2863
        %v2890 = vmul.f32 %v2836, %v2867
        %v2891 = vmul.f32 %v2837, %v2871
        %v2892 = vmul.f32 %v2838, %v2859
        %v2893 = vmul.f32 %v2839, %v2863
        %v2894 = vmul.f32 %v2840, %v2867
        %v2895 = vmul.f32 %v2841, %v2871
        %v2896 = vmul.f32 %v2842, %v2859
        %v2897 = vmul.f32 %v2843, %v2863
        %v2898 = vmul.f32 %v2844, %v2867
        %v2899 = vmul.f32 %v2845, %v2871
        %v2900 = vmul.f32 %v2846, %v2859
        %v2901 = vmul.f32 %v2847, %v2863
        %v2902 = vmul.f32 %v2848, %v2867
        %v2903 = vmul.f32 %v2849, %v2871
        %v2904 = vmul.f32 %v2850, %v2859
        %v2905 = vmul.f32 %v2851, %v2863
        %v2906 = vmul.f32 %v2852, %v2867
        %v2907 = vmul.f32 %v2853, %v2871
        %v2908 = vld [vmem:[%s6] sm:$0xf]
        %v2910 = vlaneseq
        %v2911 = vshrl.u32 %v2910, 7
        %v2912 = vsub.s32 0, %v2911
        %v2913 = vrot.slane %v2908, %v2912
        %v2914 = vlaneseq
        %v2915 = vshrl.u32 %v2914, 7
        %v2916 = vsub.s32 1, %v2915
        %v2917 = vrot.slane %v2908, %v2916
        %v2918 = vlaneseq
        %v2919 = vshrl.u32 %v2918, 7
        %v2920 = vsub.s32 2, %v2919
        %v2921 = vrot.slane %v2908, %v2920
        %v2922 = vlaneseq
        %v2923 = vshrl.u32 %v2922, 7
        %v2924 = vsub.s32 3, %v2923
        %v2925 = vrot.slane %v2908, %v2924
        %v2930 = vadd.f32 %v2876, %v2913
        %v2931 = vadd.f32 %v2877, %v2917
        %v2932 = vadd.f32 %v2878, %v2921
        %v2933 = vadd.f32 %v2879, %v2925
        %v2934 = vadd.f32 %v2880, %v2913
        %v2935 = vadd.f32 %v2881, %v2917
        %v2936 = vadd.f32 %v2882, %v2921
        %v2937 = vadd.f32 %v2883, %v2925
        %v2938 = vadd.f32 %v2884, %v2913
        %v2939 = vadd.f32 %v2885, %v2917
        %v2940 = vadd.f32 %v2886, %v2921
        %v2941 = vadd.f32 %v2887, %v2925
        %v2942 = vadd.f32 %v2888, %v2913
        %v2943 = vadd.f32 %v2889, %v2917
        %v2944 = vadd.f32 %v2890, %v2921
        %v2945 = vadd.f32 %v2891, %v2925
        %v2946 = vadd.f32 %v2892, %v2913
        %v2947 = vadd.f32 %v2893, %v2917
        %v2948 = vadd.f32 %v2894, %v2921
        %v2949 = vadd.f32 %v2895, %v2925
        %v2950 = vadd.f32 %v2896, %v2913
        %v2951 = vadd.f32 %v2897, %v2917
        %v2952 = vadd.f32 %v2898, %v2921
        %v2953 = vadd.f32 %v2899, %v2925
        %v2954 = vadd.f32 %v2900, %v2913
        %v2955 = vadd.f32 %v2901, %v2917
        %v2956 = vadd.f32 %v2902, %v2921
        %v2957 = vadd.f32 %v2903, %v2925
        %v2958 = vadd.f32 %v2904, %v2913
        %v2959 = vadd.f32 %v2905, %v2917
        %v2960 = vadd.f32 %v2906, %v2921
        %v2961 = vadd.f32 %v2907, %v2925
        %v2962 = vmax.f32 %v2930, 0.0
        %v2963 = vmax.f32 %v2931, 0.0
        %v2964 = vmax.f32 %v2932, 0.0
        %v2965 = vmax.f32 %v2933, 0.0
        %v2966 = vmax.f32 %v2934, 0.0
        %v2967 = vmax.f32 %v2935, 0.0
        %v2968 = vmax.f32 %v2936, 0.0
        %v2969 = vmax.f32 %v2937, 0.0
        %v2970 = vmax.f32 %v2938, 0.0
        %v2971 = vmax.f32 %v2939, 0.0
        %v2972 = vmax.f32 %v2940, 0.0
        %v2973 = vmax.f32 %v2941, 0.0
        %v2974 = vmax.f32 %v2942, 0.0
        %v2975 = vmax.f32 %v2943, 0.0
        %v2976 = vmax.f32 %v2944, 0.0
        %v2977 = vmax.f32 %v2945, 0.0
        %v2978 = vmax.f32 %v2946, 0.0
        %v2979 = vmax.f32 %v2947, 0.0
        %v2980 = vmax.f32 %v2948, 0.0
        %v2981 = vmax.f32 %v2949, 0.0
        %v2982 = vmax.f32 %v2950, 0.0
        %v2983 = vmax.f32 %v2951, 0.0
        %v2984 = vmax.f32 %v2952, 0.0
        %v2985 = vmax.f32 %v2953, 0.0
        %v2986 = vmax.f32 %v2954, 0.0
        %v2987 = vmax.f32 %v2955, 0.0
        %v2988 = vmax.f32 %v2956, 0.0
        %v2989 = vmax.f32 %v2957, 0.0
        %v2990 = vmax.f32 %v2958, 0.0
        %v2991 = vmax.f32 %v2959, 0.0
        %v2992 = vmax.f32 %v2960, 0.0
        %v2993 = vmax.f32 %v2961, 0.0
        %v2994 = vpack.c.bf16 %v2962, %v2962
        %v2995 = vpack.c.bf16 %v2963, %v2963
        %v2996 = vpack.c.bf16 %v2964, %v2964
        %v2997 = vpack.c.bf16 %v2965, %v2965
        %v2998 = vpack.c.bf16 %v2966, %v2966
        %v2999 = vpack.c.bf16 %v2967, %v2967
        %v3000 = vpack.c.bf16 %v2968, %v2968
        %v3001 = vpack.c.bf16 %v2969, %v2969
        %v3002 = vpack.c.bf16 %v2970, %v2970
        %v3003 = vpack.c.bf16 %v2971, %v2971
        %v3004 = vpack.c.bf16 %v2972, %v2972
        %v3005 = vpack.c.bf16 %v2973, %v2973
        %v3006 = vpack.c.bf16 %v2974, %v2974
        %v3007 = vpack.c.bf16 %v2975, %v2975
        %v3008 = vpack.c.bf16 %v2976, %v2976
        %v3009 = vpack.c.bf16 %v2977, %v2977
        %v3010 = vpack.c.bf16 %v2978, %v2978
        %v3011 = vpack.c.bf16 %v2979, %v2979
        %v3012 = vpack.c.bf16 %v2980, %v2980
        %v3013 = vpack.c.bf16 %v2981, %v2981
        %v3014 = vpack.c.bf16 %v2982, %v2982
        %v3015 = vpack.c.bf16 %v2983, %v2983
        %v3016 = vpack.c.bf16 %v2984, %v2984
        %v3017 = vpack.c.bf16 %v2985, %v2985
        %v3018 = vpack.c.bf16 %v2986, %v2986
        %v3019 = vpack.c.bf16 %v2987, %v2987
        %v3020 = vpack.c.bf16 %v2988, %v2988
        %v3021 = vpack.c.bf16 %v2989, %v2989
        %v3022 = vpack.c.bf16 %v2990, %v2990
        %v3023 = vpack.c.bf16 %v2991, %v2991
        %v3024 = vpack.c.bf16 %v2992, %v2992
        %v3025 = vpack.c.bf16 %v2993, %v2993
        %v3058 = vunpack.c.l.b16 %v2994
        %v3059 = vunpack.c.l.b16 %v2995
        %v3060 = vunpack.c.l.b16 %v2996
        %v3061 = vunpack.c.l.b16 %v2997
        %v3062 = vunpack.c.l.b16 %v2998
        %v3063 = vunpack.c.l.b16 %v2999
        %v3064 = vunpack.c.l.b16 %v3000
        %v3065 = vunpack.c.l.b16 %v3001
        %v3066 = vunpack.c.l.b16 %v3002
        %v3067 = vunpack.c.l.b16 %v3003
        %v3068 = vunpack.c.l.b16 %v3004
        %v3069 = vunpack.c.l.b16 %v3005
        %v3070 = vunpack.c.l.b16 %v3006
        %v3071 = vunpack.c.l.b16 %v3007
        %v3072 = vunpack.c.l.b16 %v3008
        %v3073 = vunpack.c.l.b16 %v3009
        %v3074 = vunpack.c.l.b16 %v3010
        %v3075 = vunpack.c.l.b16 %v3011
        %v3076 = vunpack.c.l.b16 %v3012
        %v3077 = vunpack.c.l.b16 %v3013
        %v3078 = vunpack.c.l.b16 %v3014
        %v3079 = vunpack.c.l.b16 %v3015
        %v3080 = vunpack.c.l.b16 %v3016
        %v3081 = vunpack.c.l.b16 %v3017
        %v3082 = vunpack.c.l.b16 %v3018
        %v3083 = vunpack.c.l.b16 %v3019
        %v3084 = vunpack.c.l.b16 %v3020
        %v3085 = vunpack.c.l.b16 %v3021
        %v3086 = vunpack.c.l.b16 %v3022
        %v3087 = vunpack.c.l.b16 %v3023
        %v3088 = vunpack.c.l.b16 %v3024
        %v3089 = vunpack.c.l.b16 %v3025
        %v3090 = vld [vmem:[#allocation7] sm:$0xff]
        %v3091 = vld [vmem:[#allocation7 + $0x8] sm:$0xff]
        %v3092 = vld [vmem:[#allocation7 + $0x10] sm:$0xff]
        %v3093 = vld [vmem:[#allocation7 + $0x18] sm:$0xff]
        %v3094 = vld [vmem:[#allocation7 + $0x20] sm:$0xff]
        %v3095 = vld [vmem:[#allocation7 + $0x28] sm:$0xff]
        %v3096 = vld [vmem:[#allocation7 + $0x30] sm:$0xff]
        %v3097 = vld [vmem:[#allocation7 + $0x38] sm:$0xff]
        %v3098 = vld [vmem:[#allocation7 + $0x40] sm:$0xff]
        %v3099 = vld [vmem:[#allocation7 + $0x48] sm:$0xff]
        %v3100 = vld [vmem:[#allocation7 + $0x50] sm:$0xff]
        %v3101 = vld [vmem:[#allocation7 + $0x58] sm:$0xff]
        %v3102 = vld [vmem:[#allocation7 + $0x60] sm:$0xff]
        %v3103 = vld [vmem:[#allocation7 + $0x68] sm:$0xff]
        %v3104 = vld [vmem:[#allocation7 + $0x70] sm:$0xff]
        %v3105 = vld [vmem:[#allocation7 + $0x78] sm:$0xff]
        %v3106 = vld [vmem:[#allocation7 + $0x80] sm:$0xff]
        %v3107 = vld [vmem:[#allocation7 + $0x88] sm:$0xff]
        %v3108 = vld [vmem:[#allocation7 + $0x90] sm:$0xff]
        %v3109 = vld [vmem:[#allocation7 + $0x98] sm:$0xff]
        %v3110 = vld [vmem:[#allocation7 + $0xa0] sm:$0xff]
        %v3111 = vld [vmem:[#allocation7 + $0xa8] sm:$0xff]
        %v3112 = vld [vmem:[#allocation7 + $0xb0] sm:$0xff]
        %v3113 = vld [vmem:[#allocation7 + $0xb8] sm:$0xff]
        %v3114 = vld [vmem:[#allocation7 + $0xc0] sm:$0xff]
        %v3115 = vld [vmem:[#allocation7 + $0xc8] sm:$0xff]
        %v3116 = vld [vmem:[#allocation7 + $0xd0] sm:$0xff]
        %v3117 = vld [vmem:[#allocation7 + $0xd8] sm:$0xff]
        %v3118 = vld [vmem:[#allocation7 + $0xe0] sm:$0xff]
        %v3119 = vld [vmem:[#allocation7 + $0xe8] sm:$0xff]
        %v3120 = vld [vmem:[#allocation7 + $0xf0] sm:$0xff]
        %v3121 = vld [vmem:[#allocation7 + $0xf8] sm:$0xff]
        %v3122 = vld [vmem:[#allocation7 + $0x100] sm:$0xff]
        %v3123 = vld [vmem:[#allocation7 + $0x108] sm:$0xff]
        %v3124 = vld [vmem:[#allocation7 + $0x110] sm:$0xff]
        %v3125 = vld [vmem:[#allocation7 + $0x118] sm:$0xff]
        %v3126 = vld [vmem:[#allocation7 + $0x120] sm:$0xff]
        %v3127 = vld [vmem:[#allocation7 + $0x128] sm:$0xff]
        %v3128 = vld [vmem:[#allocation7 + $0x130] sm:$0xff]
        %v3129 = vld [vmem:[#allocation7 + $0x138] sm:$0xff]
        %v3130 = vld [vmem:[#allocation7 + $0x140] sm:$0xff]
        %v3131 = vld [vmem:[#allocation7 + $0x148] sm:$0xff]
        %v3132 = vld [vmem:[#allocation7 + $0x150] sm:$0xff]
        %v3133 = vld [vmem:[#allocation7 + $0x158] sm:$0xff]
        %v3134 = vld [vmem:[#allocation7 + $0x160] sm:$0xff]
        %v3135 = vld [vmem:[#allocation7 + $0x168] sm:$0xff]
        %v3136 = vld [vmem:[#allocation7 + $0x170] sm:$0xff]
        %v3137 = vld [vmem:[#allocation7 + $0x178] sm:$0xff]
        %v3138 = vld [vmem:[#allocation7 + $0x180] sm:$0xff]
        %v3139 = vld [vmem:[#allocation7 + $0x188] sm:$0xff]
        %v3140 = vld [vmem:[#allocation7 + $0x190] sm:$0xff]
        %v3141 = vld [vmem:[#allocation7 + $0x198] sm:$0xff]
        %v3142 = vld [vmem:[#allocation7 + $0x1a0] sm:$0xff]
        %v3143 = vld [vmem:[#allocation7 + $0x1a8] sm:$0xff]
        %v3144 = vld [vmem:[#allocation7 + $0x1b0] sm:$0xff]
        %v3145 = vld [vmem:[#allocation7 + $0x1b8] sm:$0xff]
        %v3146 = vld [vmem:[#allocation7 + $0x1c0] sm:$0xff]
        %v3147 = vld [vmem:[#allocation7 + $0x1c8] sm:$0xff]
        %v3148 = vld [vmem:[#allocation7 + $0x1d0] sm:$0xff]
        %v3149 = vld [vmem:[#allocation7 + $0x1d8] sm:$0xff]
        %v3150 = vld [vmem:[#allocation7 + $0x1e0] sm:$0xff]
        %v3151 = vld [vmem:[#allocation7 + $0x1e8] sm:$0xff]
        %v3152 = vld [vmem:[#allocation7 + $0x1f0] sm:$0xff]
        %v3153 = vld [vmem:[#allocation7 + $0x1f8] sm:$0xff]
        %v3154 = vpack.c.b16 %v3062, %v3058
        %v3155 = vpack.c.b16 %v3063, %v3059
        %v3156 = vpack.c.b16 %v3064, %v3060
        %v3157 = vpack.c.b16 %v3065, %v3061
        %v3158 = vpack.c.b16 %v3070, %v3066
        %v3159 = vpack.c.b16 %v3071, %v3067
        %v3160 = vpack.c.b16 %v3072, %v3068
        %v3161 = vpack.c.b16 %v3073, %v3069
        %v3162 = vpack.c.b16 %v3078, %v3074
        %v3163 = vpack.c.b16 %v3079, %v3075
        %v3164 = vpack.c.b16 %v3080, %v3076
        %v3165 = vpack.c.b16 %v3081, %v3077
        %v3166 = vpack.c.b16 %v3086, %v3082
        %v3167 = vpack.c.b16 %v3087, %v3083
        %v3168 = vpack.c.b16 %v3088, %v3084
        %v3169 = vpack.c.b16 %v3089, %v3085
        %v3250 = vunpack.c.l.b16 %v3090
        %v3251 = vunpack.c.h.b16 %v3090
        %v3252 = vunpack.c.l.b16 %v3091
        %v3253 = vunpack.c.h.b16 %v3091
        %v3254 = vunpack.c.l.b16 %v3092
        %v3255 = vunpack.c.h.b16 %v3092
        %v3256 = vunpack.c.l.b16 %v3093
        %v3257 = vunpack.c.h.b16 %v3093
        %v3258 = vunpack.c.l.b16 %v3094
        %v3259 = vunpack.c.h.b16 %v3094
        %v3260 = vunpack.c.l.b16 %v3095
        %v3261 = vunpack.c.h.b16 %v3095
        %v3262 = vunpack.c.l.b16 %v3096
        %v3263 = vunpack.c.h.b16 %v3096
        %v3264 = vunpack.c.l.b16 %v3097
        %v3265 = vunpack.c.h.b16 %v3097
        %v3266 = vunpack.c.l.b16 %v3098
        %v3267 = vunpack.c.h.b16 %v3098
        %v3268 = vunpack.c.l.b16 %v3099
        %v3269 = vunpack.c.h.b16 %v3099
        %v3270 = vunpack.c.l.b16 %v3100
        %v3271 = vunpack.c.h.b16 %v3100
        %v3272 = vunpack.c.l.b16 %v3101
        %v3273 = vunpack.c.h.b16 %v3101
        %v3274 = vunpack.c.l.b16 %v3102
        %v3275 = vunpack.c.h.b16 %v3102
        %v3276 = vunpack.c.l.b16 %v3103
        %v3277 = vunpack.c.h.b16 %v3103
        %v3278 = vunpack.c.l.b16 %v3104
        %v3279 = vunpack.c.h.b16 %v3104
        %v3280 = vunpack.c.l.b16 %v3105
        %v3281 = vunpack.c.h.b16 %v3105
        %v3282 = vunpack.c.l.b16 %v3106
        %v3283 = vunpack.c.h.b16 %v3106
        %v3284 = vunpack.c.l.b16 %v3107
        %v3285 = vunpack.c.h.b16 %v3107
        %v3286 = vunpack.c.l.b16 %v3108
        %v3287 = vunpack.c.h.b16 %v3108
        %v3288 = vunpack.c.l.b16 %v3109
        %v3289 = vunpack.c.h.b16 %v3109
        %v3290 = vunpack.c.l.b16 %v3110
        %v3291 = vunpack.c.h.b16 %v3110
        %v3292 = vunpack.c.l.b16 %v3111
        %v3293 = vunpack.c.h.b16 %v3111
        %v3294 = vunpack.c.l.b16 %v3112
        %v3295 = vunpack.c.h.b16 %v3112
        %v3296 = vunpack.c.l.b16 %v3113
        %v3297 = vunpack.c.h.b16 %v3113
        %v3298 = vunpack.c.l.b16 %v3114
        %v3299 = vunpack.c.h.b16 %v3114
        %v3300 = vunpack.c.l.b16 %v3115
        %v3301 = vunpack.c.h.b16 %v3115
        %v3302 = vunpack.c.l.b16 %v3116
        %v3303 = vunpack.c.h.b16 %v3116
        %v3304 = vunpack.c.l.b16 %v3117
        %v3305 = vunpack.c.h.b16 %v3117
        %v3306 = vunpack.c.l.b16 %v3118
        %v3307 = vunpack.c.h.b16 %v3118
        %v3308 = vunpack.c.l.b16 %v3119
        %v3309 = vunpack.c.h.b16 %v3119
        %v3310 = vunpack.c.l.b16 %v3120
        %v3311 = vunpack.c.h.b16 %v3120
        %v3312 = vunpack.c.l.b16 %v3121
        %v3313 = vunpack.c.h.b16 %v3121
        %v3314 = vunpack.c.l.b16 %v3122
        %v3315 = vunpack.c.h.b16 %v3122
        %v3316 = vunpack.c.l.b16 %v3123
        %v3317 = vunpack.c.h.b16 %v3123
        %v3318 = vunpack.c.l.b16 %v3124
        %v3319 = vunpack.c.h.b16 %v3124
        %v3320 = vunpack.c.l.b16 %v3125
        %v3321 = vunpack.c.h.b16 %v3125
        %v3322 = vunpack.c.l.b16 %v3126
        %v3323 = vunpack.c.h.b16 %v3126
        %v3324 = vunpack.c.l.b16 %v3127
        %v3325 = vunpack.c.h.b16 %v3127
        %v3326 = vunpack.c.l.b16 %v3128
        %v3327 = vunpack.c.h.b16 %v3128
        %v3328 = vunpack.c.l.b16 %v3129
        %v3329 = vunpack.c.h.b16 %v3129
        %v3330 = vunpack.c.l.b16 %v3130
        %v3331 = vunpack.c.h.b16 %v3130
        %v3332 = vunpack.c.l.b16 %v3131
        %v3333 = vunpack.c.h.b16 %v3131
        %v3334 = vunpack.c.l.b16 %v3132
        %v3335 = vunpack.c.h.b16 %v3132
        %v3336 = vunpack.c.l.b16 %v3133
        %v3337 = vunpack.c.h.b16 %v3133
        %v3338 = vunpack.c.l.b16 %v3134
        %v3339 = vunpack.c.h.b16 %v3134
        %v3340 = vunpack.c.l.b16 %v3135
        %v3341 = vunpack.c.h.b16 %v3135
        %v3342 = vunpack.c.l.b16 %v3136
        %v3343 = vunpack.c.h.b16 %v3136
        %v3344 = vunpack.c.l.b16 %v3137
        %v3345 = vunpack.c.h.b16 %v3137
        %v3346 = vunpack.c.l.b16 %v3138
        %v3347 = vunpack.c.h.b16 %v3138
        %v3348 = vunpack.c.l.b16 %v3139
        %v3349 = vunpack.c.h.b16 %v3139
        %v3350 = vunpack.c.l.b16 %v3140
        %v3351 = vunpack.c.h.b16 %v3140
        %v3352 = vunpack.c.l.b16 %v3141
        %v3353 = vunpack.c.h.b16 %v3141
        %v3354 = vunpack.c.l.b16 %v3142
        %v3355 = vunpack.c.h.b16 %v3142
        %v3356 = vunpack.c.l.b16 %v3143
        %v3357 = vunpack.c.h.b16 %v3143
        %v3358 = vunpack.c.l.b16 %v3144
        %v3359 = vunpack.c.h.b16 %v3144
        %v3360 = vunpack.c.l.b16 %v3145
        %v3361 = vunpack.c.h.b16 %v3145
        %v3362 = vunpack.c.l.b16 %v3146
        %v3363 = vunpack.c.h.b16 %v3146
        %v3364 = vunpack.c.l.b16 %v3147
        %v3365 = vunpack.c.h.b16 %v3147
        %v3366 = vunpack.c.l.b16 %v3148
        %v3367 = vunpack.c.h.b16 %v3148
        %v3368 = vunpack.c.l.b16 %v3149
        %v3369 = vunpack.c.h.b16 %v3149
        %v3370 = vunpack.c.l.b16 %v3150
        %v3371 = vunpack.c.h.b16 %v3150
        %v3372 = vunpack.c.l.b16 %v3151
        %v3373 = vunpack.c.h.b16 %v3151
        %v3374 = vunpack.c.l.b16 %v3152
        %v3375 = vunpack.c.h.b16 %v3152
        %v3376 = vunpack.c.l.b16 %v3153
        %v3377 = vunpack.c.h.b16 %v3153
        %v3378 = vpack.c.b16 %v3252, %v3250
        %v3379 = vpack.c.b16 %v3253, %v3251
        %v3380 = vpack.c.b16 %v3256, %v3254
        %v3381 = vpack.c.b16 %v3257, %v3255
        %v3382 = vpack.c.b16 %v3260, %v3258
        %v3383 = vpack.c.b16 %v3261, %v3259
        %v3384 = vpack.c.b16 %v3264, %v3262
        %v3385 = vpack.c.b16 %v3265, %v3263
        %v3386 = vpack.c.b16 %v3268, %v3266
        %v3387 = vpack.c.b16 %v3269, %v3267
        %v3388 = vpack.c.b16 %v3272, %v3270
        %v3389 = vpack.c.b16 %v3273, %v3271
        %v3390 = vpack.c.b16 %v3276, %v3274
        %v3391 = vpack.c.b16 %v3277, %v3275
        %v3392 = vpack.c.b16 %v3280, %v3278
        %v3393 = vpack.c.b16 %v3281, %v3279
        %v3394 = vpack.c.b16 %v3284, %v3282
        %v3395 = vpack.c.b16 %v3285, %v3283
        %v3396 = vpack.c.b16 %v3288, %v3286
        %v3397 = vpack.c.b16 %v3289, %v3287
        %v3398 = vpack.c.b16 %v3292, %v3290
        %v3399 = vpack.c.b16 %v3293, %v3291
        %v3400 = vpack.c.b16 %v3296, %v3294
        %v3401 = vpack.c.b16 %v3297, %v3295
        %v3402 = vpack.c.b16 %v3300, %v3298
        %v3403 = vpack.c.b16 %v3301, %v3299
        %v3404 = vpack.c.b16 %v3304, %v3302
        %v3405 = vpack.c.b16 %v3305, %v3303
        %v3406 = vpack.c.b16 %v3308, %v3306
        %v3407 = vpack.c.b16 %v3309, %v3307
        %v3408 = vpack.c.b16 %v3312, %v3310
        %v3409 = vpack.c.b16 %v3313, %v3311
        %v3410 = vpack.c.b16 %v3316, %v3314
        %v3411 = vpack.c.b16 %v3317, %v3315
        %v3412 = vpack.c.b16 %v3320, %v3318
        %v3413 = vpack.c.b16 %v3321, %v3319
        %v3414 = vpack.c.b16 %v3324, %v3322
        %v3415 = vpack.c.b16 %v3325, %v3323
        %v3416 = vpack.c.b16 %v3328, %v3326
        %v3417 = vpack.c.b16 %v3329, %v3327
        %v3418 = vpack.c.b16 %v3332, %v3330
        %v3419 = vpack.c.b16 %v3333, %v3331
        %v3420 = vpack.c.b16 %v3336, %v3334
        %v3421 = vpack.c.b16 %v3337, %v3335
        %v3422 = vpack.c.b16 %v3340, %v3338
        %v3423 = vpack.c.b16 %v3341, %v3339
        %v3424 = vpack.c.b16 %v3344, %v3342
        %v3425 = vpack.c.b16 %v3345, %v3343
        %v3426 = vpack.c.b16 %v3348, %v3346
        %v3427 = vpack.c.b16 %v3349, %v3347
        %v3428 = vpack.c.b16 %v3352, %v3350
        %v3429 = vpack.c.b16 %v3353, %v3351
        %v3430 = vpack.c.b16 %v3356, %v3354
        %v3431 = vpack.c.b16 %v3357, %v3355
        %v3432 = vpack.c.b16 %v3360, %v3358
        %v3433 = vpack.c.b16 %v3361, %v3359
        %v3434 = vpack.c.b16 %v3364, %v3362
        %v3435 = vpack.c.b16 %v3365, %v3363
        %v3436 = vpack.c.b16 %v3368, %v3366
        %v3437 = vpack.c.b16 %v3369, %v3367
        %v3438 = vpack.c.b16 %v3372, %v3370
        %v3439 = vpack.c.b16 %v3373, %v3371
        %v3440 = vpack.c.b16 %v3376, %v3374
        %v3441 = vpack.c.b16 %v3377, %v3375
        %3506 = vmatprep.subr.bf16.mxu0 %v3379
        %3507 = vmatpush1.bf16.msra.mxu0 %v3378
        %3508 = vmatprep.subr.bf16.mxu0 %v3381
        %3509 = vmatpush1.bf16.msra.mxu0 %v3380
        %3510 = vmatprep.subr.bf16.mxu0 %v3383
        %3511 = vmatpush1.bf16.msra.mxu0 %v3382
        %3512 = vmatprep.subr.bf16.mxu0 %v3385
        %3513 = vmatpush1.bf16.msra.mxu0 %v3384
        %3514 = vmatprep.subr.bf16.mxu0 %v3387
        %3515 = vmatpush1.bf16.msra.mxu0 %v3386
        %3516 = vmatprep.subr.bf16.mxu0 %v3389
        %3517 = vmatpush1.bf16.msra.mxu0 %v3388
        %3518 = vmatprep.subr.bf16.mxu0 %v3391
        %3519 = vmatpush1.bf16.msra.mxu0 %v3390
        %3520 = vmatprep.subr.bf16.mxu0 %v3393
        %3521 = vmatpush1.bf16.msra.mxu0 %v3392
        %3522 = vmatprep.subr.bf16.mxu0 %v3395
        %3523 = vmatpush1.bf16.msra.mxu0 %v3394
        %3524 = vmatprep.subr.bf16.mxu0 %v3397
        %3525 = vmatpush1.bf16.msra.mxu0 %v3396
        %3526 = vmatprep.subr.bf16.mxu0 %v3399
        %3527 = vmatpush1.bf16.msra.mxu0 %v3398
        %3528 = vmatprep.subr.bf16.mxu0 %v3401
        %3529 = vmatpush1.bf16.msra.mxu0 %v3400
        %3530 = vmatprep.subr.bf16.mxu0 %v3403
        %3531 = vmatpush1.bf16.msra.mxu0 %v3402
        %3532 = vmatprep.subr.bf16.mxu0 %v3405
        %3533 = vmatpush1.bf16.msra.mxu0 %v3404
        %3534 = vmatprep.subr.bf16.mxu0 %v3407
        %3535 = vmatpush1.bf16.msra.mxu0 %v3406
        %3536 = vmatprep.subr.bf16.mxu0 %v3409
        %3537 = vmatpush1.bf16.msra.mxu0 %v3408
        %3538 = vmatprep.mubr.bf16.mxu0 %v3155
        %3539 = vmatmul.mubr.bf16.gmra.mrb[0].mxu0 %v3154
        %v3540 = vpop.f32.mrb[0].mxu0
        %v3541 = vadd.f32 0.0, %v3540
        %v3542 = vpop.f32.mrb[0].mxu0
        %v3543 = vadd.f32 0.0, %v3542
        %v3544 = vpop.f32.mrb[0].mxu0
        %v3545 = vadd.f32 0.0, %v3544
        %v3546 = vpop.f32.mrb[0].mxu0
        %v3547 = vadd.f32 0.0, %v3546
        %3548 = vmatprep.mubr.bf16.mxu0 %v3159
        %3549 = vmatmul.mubr.bf16.gmra.mrb[0].mxu0 %v3158
        %v3550 = vpop.f32.mrb[0].mxu0
        %v3551 = vadd.f32 0.0, %v3550
        %v3552 = vpop.f32.mrb[0].mxu0
        %v3553 = vadd.f32 0.0, %v3552
        %v3554 = vpop.f32.mrb[0].mxu0
        %v3555 = vadd.f32 0.0, %v3554
        %v3556 = vpop.f32.mrb[0].mxu0
        %v3557 = vadd.f32 0.0, %v3556
        %3558 = vmatprep.mubr.bf16.mxu0 %v3163
        %3559 = vmatmul.mubr.bf16.gmra.mrb[0].mxu0 %v3162
        %v3560 = vpop.f32.mrb[0].mxu0
        %v3561 = vadd.f32 0.0, %v3560
        %v3562 = vpop.f32.mrb[0].mxu0
        %v3563 = vadd.f32 0.0, %v3562
        %v3564 = vpop.f32.mrb[0].mxu0
        %v3565 = vadd.f32 0.0, %v3564
        %v3566 = vpop.f32.mrb[0].mxu0
        %v3567 = vadd.f32 0.0, %v3566
        %3568 = vmatprep.mubr.bf16.mxu0 %v3167
        %3569 = vmatmul.mubr.bf16.gmra.mrb[0].mxu0 %v3166
        %v3570 = vpop.f32.mrb[0].mxu0
        %v3571 = vadd.f32 0.0, %v3570
        %v3572 = vpop.f32.mrb[0].mxu0
        %v3573 = vadd.f32 0.0, %v3572
        %v3574 = vpop.f32.mrb[0].mxu0
        %v3575 = vadd.f32 0.0, %v3574
        %v3576 = vpop.f32.mrb[0].mxu0
        %v3577 = vadd.f32 0.0, %v3576
        %3578 = vdwg.mxu0
        %3579 = vmatprep.subr.bf16.mxu0 %v3411
        %3580 = vmatpush1.bf16.msra.mxu0 %v3410
        %3581 = vmatprep.subr.bf16.mxu0 %v3413
        %3582 = vmatpush1.bf16.msra.mxu0 %v3412
        %3583 = vmatprep.subr.bf16.mxu0 %v3415
        %3584 = vmatpush1.bf16.msra.mxu0 %v3414
        %3585 = vmatprep.subr.bf16.mxu0 %v3417
        %3586 = vmatpush1.bf16.msra.mxu0 %v3416
        %3587 = vmatprep.subr.bf16.mxu0 %v3419
        %3588 = vmatpush1.bf16.msra.mxu0 %v3418
        %3589 = vmatprep.subr.bf16.mxu0 %v3421
        %3590 = vmatpush1.bf16.msra.mxu0 %v3420
        %3591 = vmatprep.subr.bf16.mxu0 %v3423
        %3592 = vmatpush1.bf16.msra.mxu0 %v3422
        %3593 = vmatprep.subr.bf16.mxu0 %v3425
        %3594 = vmatpush1.bf16.msra.mxu0 %v3424
        %3595 = vmatprep.subr.bf16.mxu0 %v3427
        %3596 = vmatpush1.bf16.msra.mxu0 %v3426
        %3597 = vmatprep.subr.bf16.mxu0 %v3429
        %3598 = vmatpush1.bf16.msra.mxu0 %v3428
        %3599 = vmatprep.subr.bf16.mxu0 %v3431
        %3600 = vmatpush1.bf16.msra.mxu0 %v3430
        %3601 = vmatprep.subr.bf16.mxu0 %v3433
        %3602 = vmatpush1.bf16.msra.mxu0 %v3432
        %3603 = vmatprep.subr.bf16.mxu0 %v3435
        %3604 = vmatpush1.bf16.msra.mxu0 %v3434
        %3605 = vmatprep.subr.bf16.mxu0 %v3437
        %3606 = vmatpush1.bf16.msra.mxu0 %v3436
        %3607 = vmatprep.subr.bf16.mxu0 %v3439
        %3608 = vmatpush1.bf16.msra.mxu0 %v3438
        %3609 = vmatprep.subr.bf16.mxu0 %v3441
        %3610 = vmatpush1.bf16.msra.mxu0 %v3440
        %3611 = vmatprep.mubr.bf16.mxu0 %v3157
        %3612 = vmatmul.mubr.bf16.gmra.mrb[0].mxu0 %v3156
        %v3613 = vpop.f32.mrb[0].mxu0
        %v3614 = vadd.f32 %v3541, %v3613
        %v3615 = vpop.f32.mrb[0].mxu0
        %v3616 = vadd.f32 %v3543, %v3615
        %v3617 = vpop.f32.mrb[0].mxu0
        %v3618 = vadd.f32 %v3545, %v3617
        %v3619 = vpop.f32.mrb[0].mxu0
        %v3620 = vadd.f32 %v3547, %v3619
        %3621 = vmatprep.mubr.bf16.mxu0 %v3161
        %3622 = vmatmul.mubr.bf16.gmra.mrb[0].mxu0 %v3160
        %v3623 = vpop.f32.mrb[0].mxu0
        %v3624 = vadd.f32 %v3551, %v3623
        %v3625 = vpop.f32.mrb[0].mxu0
        %v3626 = vadd.f32 %v3553, %v3625
        %v3627 = vpop.f32.mrb[0].mxu0
        %v3628 = vadd.f32 %v3555, %v3627
        %v3629 = vpop.f32.mrb[0].mxu0
        %v3630 = vadd.f32 %v3557, %v3629
        %3631 = vmatprep.mubr.bf16.mxu0 %v3165
        %3632 = vmatmul.mubr.bf16.gmra.mrb[0].mxu0 %v3164
        %v3633 = vpop.f32.mrb[0].mxu0
        %v3634 = vadd.f32 %v3561, %v3633
        %v3635 = vpop.f32.mrb[0].mxu0
        %v3636 = vadd.f32 %v3563, %v3635
        %v3637 = vpop.f32.mrb[0].mxu0
        %v3638 = vadd.f32 %v3565, %v3637
        %v3639 = vpop.f32.mrb[0].mxu0
        %v3640 = vadd.f32 %v3567, %v3639
        %3641 = vmatprep.mubr.bf16.mxu0 %v3169
        %3642 = vmatmul.mubr.bf16.gmra.mrb[0].mxu0 %v3168
        %v3643 = vpop.f32.mrb[0].mxu0
        %v3644 = vadd.f32 %v3571, %v3643
        %v3645 = vpop.f32.mrb[0].mxu0
        %v3646 = vadd.f32 %v3573, %v3645
        %v3647 = vpop.f32.mrb[0].mxu0
        %v3648 = vadd.f32 %v3575, %v3647
        %v3649 = vpop.f32.mrb[0].mxu0
        %v3650 = vadd.f32 %v3577, %v3649
        %3651 = vdwg.mxu0
        %v3652 = vadd.f32 %v768, %v3614
        %v3653 = vadd.f32 %v770, %v3616
        %v3654 = vadd.f32 %v772, %v3618
        %v3655 = vadd.f32 %v774, %v3620
        %v3656 = vadd.f32 %v778, %v3624
        %v3657 = vadd.f32 %v780, %v3626
        %v3658 = vadd.f32 %v782, %v3628
        %v3659 = vadd.f32 %v784, %v3630
        %v3660 = vadd.f32 %v788, %v3634
        %v3661 = vadd.f32 %v790, %v3636
        %v3662 = vadd.f32 %v792, %v3638
        %v3663 = vadd.f32 %v794, %v3640
        %v3664 = vadd.f32 %v798, %v3644
        %v3665 = vadd.f32 %v800, %v3646
        %v3666 = vadd.f32 %v802, %v3648
        %v3667 = vadd.f32 %v804, %v3650
        %s3668 = scalar_lea.vmem [#allocation7], 512
        %v3669 = vld [vmem:[%s3668] sm:$0xff]
        %v3670 = vld [vmem:[%s3668 + $0x8] sm:$0xff]
        %v3671 = vld [vmem:[%s3668 + $0x10] sm:$0xff]
        %v3672 = vld [vmem:[%s3668 + $0x18] sm:$0xff]
        %v3673 = vld [vmem:[%s3668 + $0x20] sm:$0xff]
        %v3674 = vld [vmem:[%s3668 + $0x28] sm:$0xff]
        %v3675 = vld [vmem:[%s3668 + $0x30] sm:$0xff]
        %v3676 = vld [vmem:[%s3668 + $0x38] sm:$0xff]
        %v3677 = vld [vmem:[%s3668 + $0x40] sm:$0xff]
        %v3678 = vld [vmem:[%s3668 + $0x48] sm:$0xff]
        %v3679 = vld [vmem:[%s3668 + $0x50] sm:$0xff]
        %v3680 = vld [vmem:[%s3668 + $0x58] sm:$0xff]
        %v3681 = vld [vmem:[%s3668 + $0x60] sm:$0xff]
        %v3682 = vld [vmem:[%s3668 + $0x68] sm:$0xff]
        %v3683 = vld [vmem:[%s3668 + $0x70] sm:$0xff]
        %v3684 = vld [vmem:[%s3668 + $0x78] sm:$0xff]
        %v3685 = vld [vmem:[%s3668 + $0x80] sm:$0xff]
        %v3686 = vld [vmem:[%s3668 + $0x88] sm:$0xff]
        %v3687 = vld [vmem:[%s3668 + $0x90] sm:$0xff]
        %v3688 = vld [vmem:[%s3668 + $0x98] sm:$0xff]
        %v3689 = vld [vmem:[%s3668 + $0xa0] sm:$0xff]
        %v3690 = vld [vmem:[%s3668 + $0xa8] sm:$0xff]
        %v3691 = vld [vmem:[%s3668 + $0xb0] sm:$0xff]
        %v3692 = vld [vmem:[%s3668 + $0xb8] sm:$0xff]
        %v3693 = vld [vmem:[%s3668 + $0xc0] sm:$0xff]
        %v3694 = vld [vmem:[%s3668 + $0xc8] sm:$0xff]
        %v3695 = vld [vmem:[%s3668 + $0xd0] sm:$0xff]
        %v3696 = vld [vmem:[%s3668 + $0xd8] sm:$0xff]
        %v3697 = vld [vmem:[%s3668 + $0xe0] sm:$0xff]
        %v3698 = vld [vmem:[%s3668 + $0xe8] sm:$0xff]
        %v3699 = vld [vmem:[%s3668 + $0xf0] sm:$0xff]
        %v3700 = vld [vmem:[%s3668 + $0xf8] sm:$0xff]
        %v3701 = vld [vmem:[%s3668 + $0x100] sm:$0xff]
        %v3702 = vld [vmem:[%s3668 + $0x108] sm:$0xff]
        %v3703 = vld [vmem:[%s3668 + $0x110] sm:$0xff]
        %v3704 = vld [vmem:[%s3668 + $0x118] sm:$0xff]
        %v3705 = vld [vmem:[%s3668 + $0x120] sm:$0xff]
        %v3706 = vld [vmem:[%s3668 + $0x128] sm:$0xff]
        %v3707 = vld [vmem:[%s3668 + $0x130] sm:$0xff]
        %v3708 = vld [vmem:[%s3668 + $0x138] sm:$0xff]
        %v3709 = vld [vmem:[%s3668 + $0x140] sm:$0xff]
        %v3710 = vld [vmem:[%s3668 + $0x148] sm:$0xff]
        %v3711 = vld [vmem:[%s3668 + $0x150] sm:$0xff]
        %v3712 = vld [vmem:[%s3668 + $0x158] sm:$0xff]
        %v3713 = vld [vmem:[%s3668 + $0x160] sm:$0xff]
        %v3714 = vld [vmem:[%s3668 + $0x168] sm:$0xff]
        %v3715 = vld [vmem:[%s3668 + $0x170] sm:$0xff]
        %v3716 = vld [vmem:[%s3668 + $0x178] sm:$0xff]
        %v3717 = vld [vmem:[%s3668 + $0x180] sm:$0xff]
        %v3718 = vld [vmem:[%s3668 + $0x188] sm:$0xff]
        %v3719 = vld [vmem:[%s3668 + $0x190] sm:$0xff]
        %v3720 = vld [vmem:[%s3668 + $0x198] sm:$0xff]
        %v3721 = vld [vmem:[%s3668 + $0x1a0] sm:$0xff]
        %v3722 = vld [vmem:[%s3668 + $0x1a8] sm:$0xff]
        %v3723 = vld [vmem:[%s3668 + $0x1b0] sm:$0xff]
        %v3724 = vld [vmem:[%s3668 + $0x1b8] sm:$0xff]
        %v3725 = vld [vmem:[%s3668 + $0x1c0] sm:$0xff]
        %v3726 = vld [vmem:[%s3668 + $0x1c8] sm:$0xff]
        %v3727 = vld [vmem:[%s3668 + $0x1d0] sm:$0xff]
        %v3728 = vld [vmem:[%s3668 + $0x1d8] sm:$0xff]
        %v3729 = vld [vmem:[%s3668 + $0x1e0] sm:$0xff]
        %v3730 = vld [vmem:[%s3668 + $0x1e8] sm:$0xff]
        %v3731 = vld [vmem:[%s3668 + $0x1f0] sm:$0xff]
        %v3732 = vld [vmem:[%s3668 + $0x1f8] sm:$0xff]
        %v3797 = vunpack.c.l.b16 %v3669
        %v3798 = vunpack.c.h.b16 %v3669
        %v3799 = vunpack.c.l.b16 %v3670
        %v3800 = vunpack.c.h.b16 %v3670
        %v3801 = vunpack.c.l.b16 %v3671
        %v3802 = vunpack.c.h.b16 %v3671
        %v3803 = vunpack.c.l.b16 %v3672
        %v3804 = vunpack.c.h.b16 %v3672
        %v3805 = vunpack.c.l.b16 %v3673
        %v3806 = vunpack.c.h.b16 %v3673
        %v3807 = vunpack.c.l.b16 %v3674
        %v3808 = vunpack.c.h.b16 %v3674
        %v3809 = vunpack.c.l.b16 %v3675
        %v3810 = vunpack.c.h.b16 %v3675
        %v3811 = vunpack.c.l.b16 %v3676
        %v3812 = vunpack.c.h.b16 %v3676
        %v3813 = vunpack.c.l.b16 %v3677
        %v3814 = vunpack.c.h.b16 %v3677
        %v3815 = vunpack.c.l.b16 %v3678
        %v3816 = vunpack.c.h.b16 %v3678
        %v3817 = vunpack.c.l.b16 %v3679
        %v3818 = vunpack.c.h.b16 %v3679
        %v3819 = vunpack.c.l.b16 %v3680
        %v3820 = vunpack.c.h.b16 %v3680
        %v3821 = vunpack.c.l.b16 %v3681
        %v3822 = vunpack.c.h.b16 %v3681
        %v3823 = vunpack.c.l.b16 %v3682
        %v3824 = vunpack.c.h.b16 %v3682
        %v3825 = vunpack.c.l.b16 %v3683
        %v3826 = vunpack.c.h.b16 %v3683
        %v3827 = vunpack.c.l.b16 %v3684
        %v3828 = vunpack.c.h.b16 %v3684
        %v3829 = vunpack.c.l.b16 %v3685
        %v3830 = vunpack.c.h.b16 %v3685
        %v3831 = vunpack.c.l.b16 %v3686
        %v3832 = vunpack.c.h.b16 %v3686
        %v3833 = vunpack.c.l.b16 %v3687
        %v3834 = vunpack.c.h.b16 %v3687
        %v3835 = vunpack.c.l.b16 %v3688
        %v3836 = vunpack.c.h.b16 %v3688
        %v3837 = vunpack.c.l.b16 %v3689
        %v3838 = vunpack.c.h.b16 %v3689
        %v3839 = vunpack.c.l.b16 %v3690
        %v3840 = vunpack.c.h.b16 %v3690
        %v3841 = vunpack.c.l.b16 %v3691
        %v3842 = vunpack.c.h.b16 %v3691
        %v3843 = vunpack.c.l.b16 %v3692
        %v3844 = vunpack.c.h.b16 %v3692
        %v3845 = vunpack.c.l.b16 %v3693
        %v3846 = vunpack.c.h.b16 %v3693
        %v3847 = vunpack.c.l.b16 %v3694
        %v3848 = vunpack.c.h.b16 %v3694
        %v3849 = vunpack.c.l.b16 %v3695
        %v3850 = vunpack.c.h.b16 %v3695
        %v3851 = vunpack.c.l.b16 %v3696
        %v3852 = vunpack.c.h.b16 %v3696
        %v3853 = vunpack.c.l.b16 %v3697
        %v3854 = vunpack.c.h.b16 %v3697
        %v3855 = vunpack.c.l.b16 %v3698
        %v3856 = vunpack.c.h.b16 %v3698
        %v3857 = vunpack.c.l.b16 %v3699
        %v3858 = vunpack.c.h.b16 %v3699
        %v3859 = vunpack.c.l.b16 %v3700
        %v3860 = vunpack.c.h.b16 %v3700
        %v3861 = vunpack.c.l.b16 %v3701
        %v3862 = vunpack.c.h.b16 %v3701
        %v3863 = vunpack.c.l.b16 %v3702
        %v3864 = vunpack.c.h.b16 %v3702
        %v3865 = vunpack.c.l.b16 %v3703
        %v3866 = vunpack.c.h.b16 %v3703
        %v3867 = vunpack.c.l.b16 %v3704
        %v3868 = vunpack.c.h.b16 %v3704
        %v3869 = vunpack.c.l.b16 %v3705
        %v3870 = vunpack.c.h.b16 %v3705
        %v3871 = vunpack.c.l.b16 %v3706
        %v3872 = vunpack.c.h.b16 %v3706
        %v3873 = vunpack.c.l.b16 %v3707
        %v3874 = vunpack.c.h.b16 %v3707
        %v3875 = vunpack.c.l.b16 %v3708
        %v3876 = vunpack.c.h.b16 %v3708
        %v3877 = vunpack.c.l.b16 %v3709
        %v3878 = vunpack.c.h.b16 %v3709
        %v3879 = vunpack.c.l.b16 %v3710
        %v3880 = vunpack.c.h.b16 %v3710
        %v3881 = vunpack.c.l.b16 %v3711
        %v3882 = vunpack.c.h.b16 %v3711
        %v3883 = vunpack.c.l.b16 %v3712
        %v3884 = vunpack.c.h.b16 %v3712
        %v3885 = vunpack.c.l.b16 %v3713
        %v3886 = vunpack.c.h.b16 %v3713
        %v3887 = vunpack.c.l.b16 %v3714
        %v3888 = vunpack.c.h.b16 %v3714
        %v3889 = vunpack.c.l.b16 %v3715
        %v3890 = vunpack.c.h.b16 %v3715
        %v3891 = vunpack.c.l.b16 %v3716
        %v3892 = vunpack.c.h.b16 %v3716
        %v3893 = vunpack.c.l.b16 %v3717
        %v3894 = vunpack.c.h.b16 %v3717
        %v3895 = vunpack.c.l.b16 %v3718
        %v3896 = vunpack.c.h.b16 %v3718
        %v3897 = vunpack.c.l.b16 %v3719
        %v3898 = vunpack.c.h.b16 %v3719
        %v3899 = vunpack.c.l.b16 %v3720
        %v3900 = vunpack.c.h.b16 %v3720
        %v3901 = vunpack.c.l.b16 %v3721
        %v3902 = vunpack.c.h.b16 %v3721
        %v3903 = vunpack.c.l.b16 %v3722
        %v3904 = vunpack.c.h.b16 %v3722
        %v3905 = vunpack.c.l.b16 %v3723
        %v3906 = vunpack.c.h.b16 %v3723
        %v3907 = vunpack.c.l.b16 %v3724
        %v3908 = vunpack.c.h.b16 %v3724
        %v3909 = vunpack.c.l.b16 %v3725
        %v3910 = vunpack.c.h.b16 %v3725
        %v3911 = vunpack.c.l.b16 %v3726
        %v3912 = vunpack.c.h.b16 %v3726
        %v3913 = vunpack.c.l.b16 %v3727
        %v3914 = vunpack.c.h.b16 %v3727
        %v3915 = vunpack.c.l.b16 %v3728
        %v3916 = vunpack.c.h.b16 %v3728
        %v3917 = vunpack.c.l.b16 %v3729
        %v3918 = vunpack.c.h.b16 %v3729
        %v3919 = vunpack.c.l.b16 %v3730
        %v3920 = vunpack.c.h.b16 %v3730
        %v3921 = vunpack.c.l.b16 %v3731
        %v3922 = vunpack.c.h.b16 %v3731
        %v3923 = vunpack.c.l.b16 %v3732
        %v3924 = vunpack.c.h.b16 %v3732
        %v3925 = vpack.c.b16 %v3799, %v3797
        %v3926 = vpack.c.b16 %v3800, %v3798
        %v3927 = vpack.c.b16 %v3803, %v3801
        %v3928 = vpack.c.b16 %v3804, %v3802
        %v3929 = vpack.c.b16 %v3807, %v3805
        %v3930 = vpack.c.b16 %v3808, %v3806
        %v3931 = vpack.c.b16 %v3811, %v3809
        %v3932 = vpack.c.b16 %v3812, %v3810
        %v3933 = vpack.c.b16 %v3815, %v3813
        %v3934 = vpack.c.b16 %v3816, %v3814
        %v3935 = vpack.c.b16 %v3819, %v3817
        %v3936 = vpack.c.b16 %v3820, %v3818
        %v3937 = vpack.c.b16 %v3823, %v3821
        %v3938 = vpack.c.b16 %v3824, %v3822
        %v3939 = vpack.c.b16 %v3827, %v3825
        %v3940 = vpack.c.b16 %v3828, %v3826
        %v3941 = vpack.c.b16 %v3831, %v3829
        %v3942 = vpack.c.b16 %v3832, %v3830
        %v3943 = vpack.c.b16 %v3835, %v3833
        %v3944 = vpack.c.b16 %v3836, %v3834
        %v3945 = vpack.c.b16 %v3839, %v3837
        %v3946 = vpack.c.b16 %v3840, %v3838
        %v3947 = vpack.c.b16 %v3843, %v3841
        %v3948 = vpack.c.b16 %v3844, %v3842
        %v3949 = vpack.c.b16 %v3847, %v3845
        %v3950 = vpack.c.b16 %v3848, %v3846
        %v3951 = vpack.c.b16 %v3851, %v3849
        %v3952 = vpack.c.b16 %v3852, %v3850
        %v3953 = vpack.c.b16 %v3855, %v3853
        %v3954 = vpack.c.b16 %v3856, %v3854
        %v3955 = vpack.c.b16 %v3859, %v3857
        %v3956 = vpack.c.b16 %v3860, %v3858
        %v3957 = vpack.c.b16 %v3863, %v3861
        %v3958 = vpack.c.b16 %v3864, %v3862
        %v3959 = vpack.c.b16 %v3867, %v3865
        %v3960 = vpack.c.b16 %v3868, %v3866
        %v3961 = vpack.c.b16 %v3871, %v3869
        %v3962 = vpack.c.b16 %v3872, %v3870
        %v3963 = vpack.c.b16 %v3875, %v3873
        %v3964 = vpack.c.b16 %v3876, %v3874
        %v3965 = vpack.c.b16 %v3879, %v3877
        %v3966 = vpack.c.b16 %v3880, %v3878
        %v3967 = vpack.c.b16 %v3883, %v3881
        %v3968 = vpack.c.b16 %v3884, %v3882
        %v3969 = vpack.c.b16 %v3887, %v3885
        %v3970 = vpack.c.b16 %v3888, %v3886
        %v3971 = vpack.c.b16 %v3891, %v3889
        %v3972 = vpack.c.b16 %v3892, %v3890
        %v3973 = vpack.c.b16 %v3895, %v3893
        %v3974 = vpack.c.b16 %v3896, %v3894
        %v3975 = vpack.c.b16 %v3899, %v3897
        %v3976 = vpack.c.b16 %v3900, %v3898
        %v3977 = vpack.c.b16 %v3903, %v3901
        %v3978 = vpack.c.b16 %v3904, %v3902
        %v3979 = vpack.c.b16 %v3907, %v3905
        %v3980 = vpack.c.b16 %v3908, %v3906
        %v3981 = vpack.c.b16 %v3911, %v3909
        %v3982 = vpack.c.b16 %v3912, %v3910
        %v3983 = vpack.c.b16 %v3915, %v3913
        %v3984 = vpack.c.b16 %v3916, %v3914
        %v3985 = vpack.c.b16 %v3919, %v3917
        %v3986 = vpack.c.b16 %v3920, %v3918
        %v3987 = vpack.c.b16 %v3923, %v3921
        %v3988 = vpack.c.b16 %v3924, %v3922
        %4053 = vmatprep.subr.bf16.mxu0 %v3926
        %4054 = vmatpush1.bf16.msra.mxu0 %v3925
        %4055 = vmatprep.subr.bf16.mxu0 %v3928
        %4056 = vmatpush1.bf16.msra.mxu0 %v3927
        %4057 = vmatprep.subr.bf16.mxu0 %v3930
        %4058 = vmatpush1.bf16.msra.mxu0 %v3929
        %4059 = vmatprep.subr.bf16.mxu0 %v3932
        %4060 = vmatpush1.bf16.msra.mxu0 %v3931
        %4061 = vmatprep.subr.bf16.mxu0 %v3934
        %4062 = vmatpush1.bf16.msra.mxu0 %v3933
        %4063 = vmatprep.subr.bf16.mxu0 %v3936
        %4064 = vmatpush1.bf16.msra.mxu0 %v3935
        %4065 = vmatprep.subr.bf16.mxu0 %v3938
        %4066 = vmatpush1.bf16.msra.mxu0 %v3937
        %4067 = vmatprep.subr.bf16.mxu0 %v3940
        %4068 = vmatpush1.bf16.msra.mxu0 %v3939
        %4069 = vmatprep.subr.bf16.mxu0 %v3942
        %4070 = vmatpush1.bf16.msra.mxu0 %v3941
        %4071 = vmatprep.subr.bf16.mxu0 %v3944
        %4072 = vmatpush1.bf16.msra.mxu0 %v3943
        %4073 = vmatprep.subr.bf16.mxu0 %v3946
        %4074 = vmatpush1.bf16.msra.mxu0 %v3945
        %4075 = vmatprep.subr.bf16.mxu0 %v3948
        %4076 = vmatpush1.bf16.msra.mxu0 %v3947
        %4077 = vmatprep.subr.bf16.mxu0 %v3950
        %4078 = vmatpush1.bf16.msra.mxu0 %v3949
        %4079 = vmatprep.subr.bf16.mxu0 %v3952
        %4080 = vmatpush1.bf16.msra.mxu0 %v3951
        %4081 = vmatprep.subr.bf16.mxu0 %v3954
        %4082 = vmatpush1.bf16.msra.mxu0 %v3953
        %4083 = vmatprep.subr.bf16.mxu0 %v3956
        %4084 = vmatpush1.bf16.msra.mxu0 %v3955
        %4085 = vmatprep.mubr.bf16.mxu0 %v3155
        %4086 = vmatmul.mubr.bf16.gmra.mrb[0].mxu0 %v3154
        %v4087 = vpop.f32.mrb[0].mxu0
        %v4088 = vadd.f32 0.0, %v4087
        %v4089 = vpop.f32.mrb[0].mxu0
        %v4090 = vadd.f32 0.0, %v4089
        %v4091 = vpop.f32.mrb[0].mxu0
        %v4092 = vadd.f32 0.0, %v4091
        %v4093 = vpop.f32.mrb[0].mxu0
        %v4094 = vadd.f32 0.0, %v4093
        %4095 = vmatprep.mubr.bf16.mxu0 %v3159
        %4096 = vmatmul.mubr.bf16.gmra.mrb[0].mxu0 %v3158
        %v4097 = vpop.f32.mrb[0].mxu0
        %v4098 = vadd.f32 0.0, %v4097
        %v4099 = vpop.f32.mrb[0].mxu0
        %v4100 = vadd.f32 0.0, %v4099
        %v4101 = vpop.f32.mrb[0].mxu0
        %v4102 = vadd.f32 0.0, %v4101
        %v4103 = vpop.f32.mrb[0].mxu0
        %v4104 = vadd.f32 0.0, %v4103
        %4105 = vmatprep.mubr.bf16.mxu0 %v3163
        %4106 = vmatmul.mubr.bf16.gmra.mrb[0].mxu0 %v3162
        %v4107 = vpop.f32.mrb[0].mxu0
        %v4108 = vadd.f32 0.0, %v4107
        %v4109 = vpop.f32.mrb[0].mxu0
        %v4110 = vadd.f32 0.0, %v4109
        %v4111 = vpop.f32.mrb[0].mxu0
        %v4112 = vadd.f32 0.0, %v4111
        %v4113 = vpop.f32.mrb[0].mxu0
        %v4114 = vadd.f32 0.0, %v4113
        %4115 = vmatprep.mubr.bf16.mxu0 %v3167
        %4116 = vmatmul.mubr.bf16.gmra.mrb[0].mxu0 %v3166
        %v4117 = vpop.f32.mrb[0].mxu0
        %v4118 = vadd.f32 0.0, %v4117
        %v4119 = vpop.f32.mrb[0].mxu0
        %v4120 = vadd.f32 0.0, %v4119
        %v4121 = vpop.f32.mrb[0].mxu0
        %v4122 = vadd.f32 0.0, %v4121
        %v4123 = vpop.f32.mrb[0].mxu0
        %v4124 = vadd.f32 0.0, %v4123
        %4125 = vdwg.mxu0
        %4126 = vmatprep.subr.bf16.mxu0 %v3958
        %4127 = vmatpush1.bf16.msra.mxu0 %v3957
        %4128 = vmatprep.subr.bf16.mxu0 %v3960
        %4129 = vmatpush1.bf16.msra.mxu0 %v3959
        %4130 = vmatprep.subr.bf16.mxu0 %v3962
        %4131 = vmatpush1.bf16.msra.mxu0 %v3961
        %4132 = vmatprep.subr.bf16.mxu0 %v3964
        %4133 = vmatpush1.bf16.msra.mxu0 %v3963
        %4134 = vmatprep.subr.bf16.mxu0 %v3966
        %4135 = vmatpush1.bf16.msra.mxu0 %v3965
        %4136 = vmatprep.subr.bf16.mxu0 %v3968
        %4137 = vmatpush1.bf16.msra.mxu0 %v3967
        %4138 = vmatprep.subr.bf16.mxu0 %v3970
        %4139 = vmatpush1.bf16.msra.mxu0 %v3969
        %4140 = vmatprep.subr.bf16.mxu0 %v3972
        %4141 = vmatpush1.bf16.msra.mxu0 %v3971
        %4142 = vmatprep.subr.bf16.mxu0 %v3974
        %4143 = vmatpush1.bf16.msra.mxu0 %v3973
        %4144 = vmatprep.subr.bf16.mxu0 %v3976
        %4145 = vmatpush1.bf16.msra.mxu0 %v3975
        %4146 = vmatprep.subr.bf16.mxu0 %v3978
        %4147 = vmatpush1.bf16.msra.mxu0 %v3977
        %4148 = vmatprep.subr.bf16.mxu0 %v3980
        %4149 = vmatpush1.bf16.msra.mxu0 %v3979
        %4150 = vmatprep.subr.bf16.mxu0 %v3982
        %4151 = vmatpush1.bf16.msra.mxu0 %v3981
        %4152 = vmatprep.subr.bf16.mxu0 %v3984
        %4153 = vmatpush1.bf16.msra.mxu0 %v3983
        %4154 = vmatprep.subr.bf16.mxu0 %v3986
        %4155 = vmatpush1.bf16.msra.mxu0 %v3985
        %4156 = vmatprep.subr.bf16.mxu0 %v3988
        %4157 = vmatpush1.bf16.msra.mxu0 %v3987
        %4158 = vmatprep.mubr.bf16.mxu0 %v3157
        %4159 = vmatmul.mubr.bf16.gmra.mrb[0].mxu0 %v3156
        %v4160 = vpop.f32.mrb[0].mxu0
        %v4161 = vadd.f32 %v4088, %v4160
        %v4162 = vpop.f32.mrb[0].mxu0
        %v4163 = vadd.f32 %v4090, %v4162
        %v4164 = vpop.f32.mrb[0].mxu0
        %v4165 = vadd.f32 %v4092, %v4164
        %v4166 = vpop.f32.mrb[0].mxu0
        %v4167 = vadd.f32 %v4094, %v4166
        %4168 = vmatprep.mubr.bf16.mxu0 %v3161
        %4169 = vmatmul.mubr.bf16.gmra.mrb[0].mxu0 %v3160
        %v4170 = vpop.f32.mrb[0].mxu0
        %v4171 = vadd.f32 %v4098, %v4170
        %v4172 = vpop.f32.mrb[0].mxu0
        %v4173 = vadd.f32 %v4100, %v4172
        %v4174 = vpop.f32.mrb[0].mxu0
        %v4175 = vadd.f32 %v4102, %v4174
        %v4176 = vpop.f32.mrb[0].mxu0
        %v4177 = vadd.f32 %v4104, %v4176
        %4178 = vmatprep.mubr.bf16.mxu0 %v3165
        %4179 = vmatmul.mubr.bf16.gmra.mrb[0].mxu0 %v3164
        %v4180 = vpop.f32.mrb[0].mxu0
        %v4181 = vadd.f32 %v4108, %v4180
        %v4182 = vpop.f32.mrb[0].mxu0
        %v4183 = vadd.f32 %v4110, %v4182
        %v4184 = vpop.f32.mrb[0].mxu0
        %v4185 = vadd.f32 %v4112, %v4184
        %v4186 = vpop.f32.mrb[0].mxu0
        %v4187 = vadd.f32 %v4114, %v4186
        %4188 = vmatprep.mubr.bf16.mxu0 %v3169
        %4189 = vmatmul.mubr.bf16.gmra.mrb[0].mxu0 %v3168
        %v4190 = vpop.f32.mrb[0].mxu0
        %v4191 = vadd.f32 %v4118, %v4190
        %v4192 = vpop.f32.mrb[0].mxu0
        %v4193 = vadd.f32 %v4120, %v4192
        %v4194 = vpop.f32.mrb[0].mxu0
        %v4195 = vadd.f32 %v4122, %v4194
        %v4196 = vpop.f32.mrb[0].mxu0
        %v4197 = vadd.f32 %v4124, %v4196
        %4198 = vdwg.mxu0
        %v4215 = vrot.slane %v4161, 1
        %v4216 = vrot.slane %v4163, 1
        %v4217 = vrot.slane %v4165, 1
        %v4218 = vrot.slane %v4167, 1
        %v4219 = vrot.slane %v4171, 1
        %v4220 = vrot.slane %v4173, 1
        %v4221 = vrot.slane %v4175, 1
        %v4222 = vrot.slane %v4177, 1
        %v4223 = vrot.slane %v4181, 1
        %v4224 = vrot.slane %v4183, 1
        %v4225 = vrot.slane %v4185, 1
        %v4226 = vrot.slane %v4187, 1
        %v4227 = vrot.slane %v4191, 1
        %v4228 = vrot.slane %v4193, 1
        %v4229 = vrot.slane %v4195, 1
        %v4230 = vrot.slane %v4197, 1
        %v4247 = vsel %vm528, %v4215, %v4215
        %v4248 = vsel %vm528, %v4216, %v4216
        %v4249 = vsel %vm528, %v4217, %v4217
        %v4250 = vsel %vm528, %v4218, %v4218
        %v4251 = vsel %vm528, %v4219, %v4219
        %v4252 = vsel %vm528, %v4220, %v4220
        %v4253 = vsel %vm528, %v4221, %v4221
        %v4254 = vsel %vm528, %v4222, %v4222
        %v4255 = vsel %vm528, %v4223, %v4223
        %v4256 = vsel %vm528, %v4224, %v4224
        %v4257 = vsel %vm528, %v4225, %v4225
        %v4258 = vsel %vm528, %v4226, %v4226
        %v4259 = vsel %vm528, %v4227, %v4227
        %v4260 = vsel %vm528, %v4228, %v4228
        %v4261 = vsel %vm528, %v4229, %v4229
        %v4262 = vsel %vm528, %v4230, %v4230
        %v4263 = vadd.f32 %v3652, %v4247
        %v4264 = vadd.f32 %v3653, %v4248
        %v4265 = vadd.f32 %v3654, %v4249
        %v4266 = vadd.f32 %v3655, %v4250
        %v4267 = vadd.f32 %v3656, %v4251
        %v4268 = vadd.f32 %v3657, %v4252
        %v4269 = vadd.f32 %v3658, %v4253
        %v4270 = vadd.f32 %v3659, %v4254
        %v4271 = vadd.f32 %v3660, %v4255
        %v4272 = vadd.f32 %v3661, %v4256
        %v4273 = vadd.f32 %v3662, %v4257
        %v4274 = vadd.f32 %v3663, %v4258
        %v4275 = vadd.f32 %v3664, %v4259
        %v4276 = vadd.f32 %v3665, %v4260
        %v4277 = vadd.f32 %v3666, %v4261
        %v4278 = vadd.f32 %v3667, %v4262
        %s4279 = scalar_lea.vmem [#allocation7], 1024
        %v4280 = vld [vmem:[%s4279] sm:$0xff]
        %v4281 = vld [vmem:[%s4279 + $0x8] sm:$0xff]
        %v4282 = vld [vmem:[%s4279 + $0x10] sm:$0xff]
        %v4283 = vld [vmem:[%s4279 + $0x18] sm:$0xff]
        %v4284 = vld [vmem:[%s4279 + $0x20] sm:$0xff]
        %v4285 = vld [vmem:[%s4279 + $0x28] sm:$0xff]
        %v4286 = vld [vmem:[%s4279 + $0x30] sm:$0xff]
        %v4287 = vld [vmem:[%s4279 + $0x38] sm:$0xff]
        %v4288 = vld [vmem:[%s4279 + $0x40] sm:$0xff]
        %v4289 = vld [vmem:[%s4279 + $0x48] sm:$0xff]
        %v4290 = vld [vmem:[%s4279 + $0x50] sm:$0xff]
        %v4291 = vld [vmem:[%s4279 + $0x58] sm:$0xff]
        %v4292 = vld [vmem:[%s4279 + $0x60] sm:$0xff]
        %v4293 = vld [vmem:[%s4279 + $0x68] sm:$0xff]
        %v4294 = vld [vmem:[%s4279 + $0x70] sm:$0xff]
        %v4295 = vld [vmem:[%s4279 + $0x78] sm:$0xff]
        %v4296 = vld [vmem:[%s4279 + $0x80] sm:$0xff]
        %v4297 = vld [vmem:[%s4279 + $0x88] sm:$0xff]
        %v4298 = vld [vmem:[%s4279 + $0x90] sm:$0xff]
        %v4299 = vld [vmem:[%s4279 + $0x98] sm:$0xff]
        %v4300 = vld [vmem:[%s4279 + $0xa0] sm:$0xff]
        %v4301 = vld [vmem:[%s4279 + $0xa8] sm:$0xff]
        %v4302 = vld [vmem:[%s4279 + $0xb0] sm:$0xff]
        %v4303 = vld [vmem:[%s4279 + $0xb8] sm:$0xff]
        %v4304 = vld [vmem:[%s4279 + $0xc0] sm:$0xff]
        %v4305 = vld [vmem:[%s4279 + $0xc8] sm:$0xff]
        %v4306 = vld [vmem:[%s4279 + $0xd0] sm:$0xff]
        %v4307 = vld [vmem:[%s4279 + $0xd8] sm:$0xff]
        %v4308 = vld [vmem:[%s4279 + $0xe0] sm:$0xff]
        %v4309 = vld [vmem:[%s4279 + $0xe8] sm:$0xff]
        %v4310 = vld [vmem:[%s4279 + $0xf0] sm:$0xff]
        %v4311 = vld [vmem:[%s4279 + $0xf8] sm:$0xff]
        %v4312 = vld [vmem:[%s4279 + $0x100] sm:$0xff]
        %v4313 = vld [vmem:[%s4279 + $0x108] sm:$0xff]
        %v4314 = vld [vmem:[%s4279 + $0x110] sm:$0xff]
        %v4315 = vld [vmem:[%s4279 + $0x118] sm:$0xff]
        %v4316 = vld [vmem:[%s4279 + $0x120] sm:$0xff]
        %v4317 = vld [vmem:[%s4279 + $0x128] sm:$0xff]
        %v4318 = vld [vmem:[%s4279 + $0x130] sm:$0xff]
        %v4319 = vld [vmem:[%s4279 + $0x138] sm:$0xff]
        %v4320 = vld [vmem:[%s4279 + $0x140] sm:$0xff]
        %v4321 = vld [vmem:[%s4279 + $0x148] sm:$0xff]
        %v4322 = vld [vmem:[%s4279 + $0x150] sm:$0xff]
        %v4323 = vld [vmem:[%s4279 + $0x158] sm:$0xff]
        %v4324 = vld [vmem:[%s4279 + $0x160] sm:$0xff]
        %v4325 = vld [vmem:[%s4279 + $0x168] sm:$0xff]
        %v4326 = vld [vmem:[%s4279 + $0x170] sm:$0xff]
        %v4327 = vld [vmem:[%s4279 + $0x178] sm:$0xff]
        %v4328 = vld [vmem:[%s4279 + $0x180] sm:$0xff]
        %v4329 = vld [vmem:[%s4279 + $0x188] sm:$0xff]
        %v4330 = vld [vmem:[%s4279 + $0x190] sm:$0xff]
        %v4331 = vld [vmem:[%s4279 + $0x198] sm:$0xff]
        %v4332 = vld [vmem:[%s4279 + $0x1a0] sm:$0xff]
        %v4333 = vld [vmem:[%s4279 + $0x1a8] sm:$0xff]
        %v4334 = vld [vmem:[%s4279 + $0x1b0] sm:$0xff]
        %v4335 = vld [vmem:[%s4279 + $0x1b8] sm:$0xff]
        %v4336 = vld [vmem:[%s4279 + $0x1c0] sm:$0xff]
        %v4337 = vld [vmem:[%s4279 + $0x1c8] sm:$0xff]
        %v4338 = vld [vmem:[%s4279 + $0x1d0] sm:$0xff]
        %v4339 = vld [vmem:[%s4279 + $0x1d8] sm:$0xff]
        %v4340 = vld [vmem:[%s4279 + $0x1e0] sm:$0xff]
        %v4341 = vld [vmem:[%s4279 + $0x1e8] sm:$0xff]
        %v4342 = vld [vmem:[%s4279 + $0x1f0] sm:$0xff]
        %v4343 = vld [vmem:[%s4279 + $0x1f8] sm:$0xff]
        %v4408 = vunpack.c.l.b16 %v4280
        %v4409 = vunpack.c.h.b16 %v4280
        %v4410 = vunpack.c.l.b16 %v4281
        %v4411 = vunpack.c.h.b16 %v4281
        %v4412 = vunpack.c.l.b16 %v4282
        %v4413 = vunpack.c.h.b16 %v4282
        %v4414 = vunpack.c.l.b16 %v4283
        %v4415 = vunpack.c.h.b16 %v4283
        %v4416 = vunpack.c.l.b16 %v4284
        %v4417 = vunpack.c.h.b16 %v4284
        %v4418 = vunpack.c.l.b16 %v4285
        %v4419 = vunpack.c.h.b16 %v4285
        %v4420 = vunpack.c.l.b16 %v4286
        %v4421 = vunpack.c.h.b16 %v4286
        %v4422 = vunpack.c.l.b16 %v4287
        %v4423 = vunpack.c.h.b16 %v4287
        %v4424 = vunpack.c.l.b16 %v4288
        %v4425 = vunpack.c.h.b16 %v4288
        %v4426 = vunpack.c.l.b16 %v4289
        %v4427 = vunpack.c.h.b16 %v4289
        %v4428 = vunpack.c.l.b16 %v4290
        %v4429 = vunpack.c.h.b16 %v4290
        %v4430 = vunpack.c.l.b16 %v4291
        %v4431 = vunpack.c.h.b16 %v4291
        %v4432 = vunpack.c.l.b16 %v4292
        %v4433 = vunpack.c.h.b16 %v4292
        %v4434 = vunpack.c.l.b16 %v4293
        %v4435 = vunpack.c.h.b16 %v4293
        %v4436 = vunpack.c.l.b16 %v4294
        %v4437 = vunpack.c.h.b16 %v4294
        %v4438 = vunpack.c.l.b16 %v4295
        %v4439 = vunpack.c.h.b16 %v4295
        %v4440 = vunpack.c.l.b16 %v4296
        %v4441 = vunpack.c.h.b16 %v4296
        %v4442 = vunpack.c.l.b16 %v4297
        %v4443 = vunpack.c.h.b16 %v4297
        %v4444 = vunpack.c.l.b16 %v4298
        %v4445 = vunpack.c.h.b16 %v4298
        %v4446 = vunpack.c.l.b16 %v4299
        %v4447 = vunpack.c.h.b16 %v4299
        %v4448 = vunpack.c.l.b16 %v4300
        %v4449 = vunpack.c.h.b16 %v4300
        %v4450 = vunpack.c.l.b16 %v4301
        %v4451 = vunpack.c.h.b16 %v4301
        %v4452 = vunpack.c.l.b16 %v4302
        %v4453 = vunpack.c.h.b16 %v4302
        %v4454 = vunpack.c.l.b16 %v4303
        %v4455 = vunpack.c.h.b16 %v4303
        %v4456 = vunpack.c.l.b16 %v4304
        %v4457 = vunpack.c.h.b16 %v4304
        %v4458 = vunpack.c.l.b16 %v4305
        %v4459 = vunpack.c.h.b16 %v4305
        %v4460 = vunpack.c.l.b16 %v4306
        %v4461 = vunpack.c.h.b16 %v4306
        %v4462 = vunpack.c.l.b16 %v4307
        %v4463 = vunpack.c.h.b16 %v4307
        %v4464 = vunpack.c.l.b16 %v4308
        %v4465 = vunpack.c.h.b16 %v4308
        %v4466 = vunpack.c.l.b16 %v4309
        %v4467 = vunpack.c.h.b16 %v4309
        %v4468 = vunpack.c.l.b16 %v4310
        %v4469 = vunpack.c.h.b16 %v4310
        %v4470 = vunpack.c.l.b16 %v4311
        %v4471 = vunpack.c.h.b16 %v4311
        %v4472 = vunpack.c.l.b16 %v4312
        %v4473 = vunpack.c.h.b16 %v4312
        %v4474 = vunpack.c.l.b16 %v4313
        %v4475 = vunpack.c.h.b16 %v4313
        %v4476 = vunpack.c.l.b16 %v4314
        %v4477 = vunpack.c.h.b16 %v4314
        %v4478 = vunpack.c.l.b16 %v4315
        %v4479 = vunpack.c.h.b16 %v4315
        %v4480 = vunpack.c.l.b16 %v4316
        %v4481 = vunpack.c.h.b16 %v4316
        %v4482 = vunpack.c.l.b16 %v4317
        %v4483 = vunpack.c.h.b16 %v4317
        %v4484 = vunpack.c.l.b16 %v4318
        %v4485 = vunpack.c.h.b16 %v4318
        %v4486 = vunpack.c.l.b16 %v4319
        %v4487 = vunpack.c.h.b16 %v4319
        %v4488 = vunpack.c.l.b16 %v4320
        %v4489 = vunpack.c.h.b16 %v4320
        %v4490 = vunpack.c.l.b16 %v4321
        %v4491 = vunpack.c.h.b16 %v4321
        %v4492 = vunpack.c.l.b16 %v4322
        %v4493 = vunpack.c.h.b16 %v4322
        %v4494 = vunpack.c.l.b16 %v4323
        %v4495 = vunpack.c.h.b16 %v4323
        %v4496 = vunpack.c.l.b16 %v4324
        %v4497 = vunpack.c.h.b16 %v4324
        %v4498 = vunpack.c.l.b16 %v4325
        %v4499 = vunpack.c.h.b16 %v4325
        %v4500 = vunpack.c.l.b16 %v4326
        %v4501 = vunpack.c.h.b16 %v4326
        %v4502 = vunpack.c.l.b16 %v4327
        %v4503 = vunpack.c.h.b16 %v4327
        %v4504 = vunpack.c.l.b16 %v4328
        %v4505 = vunpack.c.h.b16 %v4328
        %v4506 = vunpack.c.l.b16 %v4329
        %v4507 = vunpack.c.h.b16 %v4329
        %v4508 = vunpack.c.l.b16 %v4330
        %v4509 = vunpack.c.h.b16 %v4330
        %v4510 = vunpack.c.l.b16 %v4331
        %v4511 = vunpack.c.h.b16 %v4331
        %v4512 = vunpack.c.l.b16 %v4332
        %v4513 = vunpack.c.h.b16 %v4332
        %v4514 = vunpack.c.l.b16 %v4333
        %v4515 = vunpack.c.h.b16 %v4333
        %v4516 = vunpack.c.l.b16 %v4334
        %v4517 = vunpack.c.h.b16 %v4334
        %v4518 = vunpack.c.l.b16 %v4335
        %v4519 = vunpack.c.h.b16 %v4335
        %v4520 = vunpack.c.l.b16 %v4336
        %v4521 = vunpack.c.h.b16 %v4336
        %v4522 = vunpack.c.l.b16 %v4337
        %v4523 = vunpack.c.h.b16 %v4337
        %v4524 = vunpack.c.l.b16 %v4338
        %v4525 = vunpack.c.h.b16 %v4338
        %v4526 = vunpack.c.l.b16 %v4339
        %v4527 = vunpack.c.h.b16 %v4339
        %v4528 = vunpack.c.l.b16 %v4340
        %v4529 = vunpack.c.h.b16 %v4340
        %v4530 = vunpack.c.l.b16 %v4341
        %v4531 = vunpack.c.h.b16 %v4341
        %v4532 = vunpack.c.l.b16 %v4342
        %v4533 = vunpack.c.h.b16 %v4342
        %v4534 = vunpack.c.l.b16 %v4343
        %v4535 = vunpack.c.h.b16 %v4343
        %v4536 = vpack.c.b16 %v4410, %v4408
        %v4537 = vpack.c.b16 %v4411, %v4409
        %v4538 = vpack.c.b16 %v4414, %v4412
        %v4539 = vpack.c.b16 %v4415, %v4413
        %v4540 = vpack.c.b16 %v4418, %v4416
        %v4541 = vpack.c.b16 %v4419, %v4417
        %v4542 = vpack.c.b16 %v4422, %v4420
        %v4543 = vpack.c.b16 %v4423, %v4421
        %v4544 = vpack.c.b16 %v4426, %v4424
        %v4545 = vpack.c.b16 %v4427, %v4425
        %v4546 = vpack.c.b16 %v4430, %v4428
        %v4547 = vpack.c.b16 %v4431, %v4429
        %v4548 = vpack.c.b16 %v4434, %v4432
        %v4549 = vpack.c.b16 %v4435, %v4433
        %v4550 = vpack.c.b16 %v4438, %v4436
        %v4551 = vpack.c.b16 %v4439, %v4437
        %v4552 = vpack.c.b16 %v4442, %v4440
        %v4553 = vpack.c.b16 %v4443, %v4441
        %v4554 = vpack.c.b16 %v4446, %v4444
        %v4555 = vpack.c.b16 %v4447, %v4445
        %v4556 = vpack.c.b16 %v4450, %v4448
        %v4557 = vpack.c.b16 %v4451, %v4449
        %v4558 = vpack.c.b16 %v4454, %v4452
        %v4559 = vpack.c.b16 %v4455, %v4453
        %v4560 = vpack.c.b16 %v4458, %v4456
        %v4561 = vpack.c.b16 %v4459, %v4457
        %v4562 = vpack.c.b16 %v4462, %v4460
        %v4563 = vpack.c.b16 %v4463, %v4461
        %v4564 = vpack.c.b16 %v4466, %v4464
        %v4565 = vpack.c.b16 %v4467, %v4465
        %v4566 = vpack.c.b16 %v4470, %v4468
        %v4567 = vpack.c.b16 %v4471, %v4469
        %v4568 = vpack.c.b16 %v4474, %v4472
        %v4569 = vpack.c.b16 %v4475, %v4473
        %v4570 = vpack.c.b16 %v4478, %v4476
        %v4571 = vpack.c.b16 %v4479, %v4477
        %v4572 = vpack.c.b16 %v4482, %v4480
        %v4573 = vpack.c.b16 %v4483, %v4481
        %v4574 = vpack.c.b16 %v4486, %v4484
        %v4575 = vpack.c.b16 %v4487, %v4485
        %v4576 = vpack.c.b16 %v4490, %v4488
        %v4577 = vpack.c.b16 %v4491, %v4489
        %v4578 = vpack.c.b16 %v4494, %v4492
        %v4579 = vpack.c.b16 %v4495, %v4493
        %v4580 = vpack.c.b16 %v4498, %v4496
        %v4581 = vpack.c.b16 %v4499, %v4497
        %v4582 = vpack.c.b16 %v4502, %v4500
        %v4583 = vpack.c.b16 %v4503, %v4501
        %v4584 = vpack.c.b16 %v4506, %v4504
        %v4585 = vpack.c.b16 %v4507, %v4505
        %v4586 = vpack.c.b16 %v4510, %v4508
        %v4587 = vpack.c.b16 %v4511, %v4509
        %v4588 = vpack.c.b16 %v4514, %v4512
        %v4589 = vpack.c.b16 %v4515, %v4513
        %v4590 = vpack.c.b16 %v4518, %v4516
        %v4591 = vpack.c.b16 %v4519, %v4517
        %v4592 = vpack.c.b16 %v4522, %v4520
        %v4593 = vpack.c.b16 %v4523, %v4521
        %v4594 = vpack.c.b16 %v4526, %v4524
        %v4595 = vpack.c.b16 %v4527, %v4525
        %v4596 = vpack.c.b16 %v4530, %v4528
        %v4597 = vpack.c.b16 %v4531, %v4529
        %v4598 = vpack.c.b16 %v4534, %v4532
        %v4599 = vpack.c.b16 %v4535, %v4533
        %4664 = vmatprep.subr.bf16.mxu0 %v4537
        %4665 = vmatpush1.bf16.msra.mxu0 %v4536
        %4666 = vmatprep.subr.bf16.mxu0 %v4539
        %4667 = vmatpush1.bf16.msra.mxu0 %v4538
        %4668 = vmatprep.subr.bf16.mxu0 %v4541
        %4669 = vmatpush1.bf16.msra.mxu0 %v4540
        %4670 = vmatprep.subr.bf16.mxu0 %v4543
        %4671 = vmatpush1.bf16.msra.mxu0 %v4542
        %4672 = vmatprep.subr.bf16.mxu0 %v4545
        %4673 = vmatpush1.bf16.msra.mxu0 %v4544
        %4674 = vmatprep.subr.bf16.mxu0 %v4547
        %4675 = vmatpush1.bf16.msra.mxu0 %v4546
        %4676 = vmatprep.subr.bf16.mxu0 %v4549
        %4677 = vmatpush1.bf16.msra.mxu0 %v4548
        %4678 = vmatprep.subr.bf16.mxu0 %v4551
        %4679 = vmatpush1.bf16.msra.mxu0 %v4550
        %4680 = vmatprep.subr.bf16.mxu0 %v4553
        %4681 = vmatpush1.bf16.msra.mxu0 %v4552
        %4682 = vmatprep.subr.bf16.mxu0 %v4555
        %4683 = vmatpush1.bf16.msra.mxu0 %v4554
        %4684 = vmatprep.subr.bf16.mxu0 %v4557
        %4685 = vmatpush1.bf16.msra.mxu0 %v4556
        %4686 = vmatprep.subr.bf16.mxu0 %v4559
        %4687 = vmatpush1.bf16.msra.mxu0 %v4558
        %4688 = vmatprep.subr.bf16.mxu0 %v4561
        %4689 = vmatpush1.bf16.msra.mxu0 %v4560
        %4690 = vmatprep.subr.bf16.mxu0 %v4563
        %4691 = vmatpush1.bf16.msra.mxu0 %v4562
        %4692 = vmatprep.subr.bf16.mxu0 %v4565
        %4693 = vmatpush1.bf16.msra.mxu0 %v4564
        %4694 = vmatprep.subr.bf16.mxu0 %v4567
        %4695 = vmatpush1.bf16.msra.mxu0 %v4566
        %4696 = vmatprep.mubr.bf16.mxu0 %v3155
        %4697 = vmatmul.mubr.bf16.gmra.mrb[0].mxu0 %v3154
        %v4698 = vpop.f32.mrb[0].mxu0
        %v4699 = vadd.f32 0.0, %v4698
        %v4700 = vpop.f32.mrb[0].mxu0
        %v4701 = vadd.f32 0.0, %v4700
        %v4702 = vpop.f32.mrb[0].mxu0
        %v4703 = vadd.f32 0.0, %v4702
        %v4704 = vpop.f32.mrb[0].mxu0
        %v4705 = vadd.f32 0.0, %v4704
        %4706 = vmatprep.mubr.bf16.mxu0 %v3159
        %4707 = vmatmul.mubr.bf16.gmra.mrb[0].mxu0 %v3158
        %v4708 = vpop.f32.mrb[0].mxu0
        %v4709 = vadd.f32 0.0, %v4708
        %v4710 = vpop.f32.mrb[0].mxu0
        %v4711 = vadd.f32 0.0, %v4710
        %v4712 = vpop.f32.mrb[0].mxu0
        %v4713 = vadd.f32 0.0, %v4712
        %v4714 = vpop.f32.mrb[0].mxu0
        %v4715 = vadd.f32 0.0, %v4714
        %4716 = vmatprep.mubr.bf16.mxu0 %v3163
        %4717 = vmatmul.mubr.bf16.gmra.mrb[0].mxu0 %v3162
        %v4718 = vpop.f32.mrb[0].mxu0
        %v4719 = vadd.f32 0.0, %v4718
        %v4720 = vpop.f32.mrb[0].mxu0
        %v4721 = vadd.f32 0.0, %v4720
        %v4722 = vpop.f32.mrb[0].mxu0
        %v4723 = vadd.f32 0.0, %v4722
        %v4724 = vpop.f32.mrb[0].mxu0
        %v4725 = vadd.f32 0.0, %v4724
        %4726 = vmatprep.mubr.bf16.mxu0 %v3167
        %4727 = vmatmul.mubr.bf16.gmra.mrb[0].mxu0 %v3166
        %v4728 = vpop.f32.mrb[0].mxu0
        %v4729 = vadd.f32 0.0, %v4728
        %v4730 = vpop.f32.mrb[0].mxu0
        %v4731 = vadd.f32 0.0, %v4730
        %v4732 = vpop.f32.mrb[0].mxu0
        %v4733 = vadd.f32 0.0, %v4732
        %v4734 = vpop.f32.mrb[0].mxu0
        %v4735 = vadd.f32 0.0, %v4734
        %4736 = vdwg.mxu0
        %4737 = vmatprep.subr.bf16.mxu0 %v4569
        %4738 = vmatpush1.bf16.msra.mxu0 %v4568
        %4739 = vmatprep.subr.bf16.mxu0 %v4571
        %4740 = vmatpush1.bf16.msra.mxu0 %v4570
        %4741 = vmatprep.subr.bf16.mxu0 %v4573
        %4742 = vmatpush1.bf16.msra.mxu0 %v4572
        %4743 = vmatprep.subr.bf16.mxu0 %v4575
        %4744 = vmatpush1.bf16.msra.mxu0 %v4574
        %4745 = vmatprep.subr.bf16.mxu0 %v4577
        %4746 = vmatpush1.bf16.msra.mxu0 %v4576
        %4747 = vmatprep.subr.bf16.mxu0 %v4579
        %4748 = vmatpush1.bf16.msra.mxu0 %v4578
        %4749 = vmatprep.subr.bf16.mxu0 %v4581
        %4750 = vmatpush1.bf16.msra.mxu0 %v4580
        %4751 = vmatprep.subr.bf16.mxu0 %v4583
        %4752 = vmatpush1.bf16.msra.mxu0 %v4582
        %4753 = vmatprep.subr.bf16.mxu0 %v4585
        %4754 = vmatpush1.bf16.msra.mxu0 %v4584
        %4755 = vmatprep.subr.bf16.mxu0 %v4587
        %4756 = vmatpush1.bf16.msra.mxu0 %v4586
        %4757 = vmatprep.subr.bf16.mxu0 %v4589
        %4758 = vmatpush1.bf16.msra.mxu0 %v4588
        %4759 = vmatprep.subr.bf16.mxu0 %v4591
        %4760 = vmatpush1.bf16.msra.mxu0 %v4590
        %4761 = vmatprep.subr.bf16.mxu0 %v4593
        %4762 = vmatpush1.bf16.msra.mxu0 %v4592
        %4763 = vmatprep.subr.bf16.mxu0 %v4595
        %4764 = vmatpush1.bf16.msra.mxu0 %v4594
        %4765 = vmatprep.subr.bf16.mxu0 %v4597
        %4766 = vmatpush1.bf16.msra.mxu0 %v4596
        %4767 = vmatprep.subr.bf16.mxu0 %v4599
        %4768 = vmatpush1.bf16.msra.mxu0 %v4598
        %4769 = vmatprep.mubr.bf16.mxu0 %v3157
        %4770 = vmatmul.mubr.bf16.gmra.mrb[0].mxu0 %v3156
        %v4771 = vpop.f32.mrb[0].mxu0
        %v4772 = vadd.f32 %v4699, %v4771
        %v4773 = vpop.f32.mrb[0].mxu0
        %v4774 = vadd.f32 %v4701, %v4773
        %v4775 = vpop.f32.mrb[0].mxu0
        %v4776 = vadd.f32 %v4703, %v4775
        %v4777 = vpop.f32.mrb[0].mxu0
        %v4778 = vadd.f32 %v4705, %v4777
        %4779 = vmatprep.mubr.bf16.mxu0 %v3161
        %4780 = vmatmul.mubr.bf16.gmra.mrb[0].mxu0 %v3160
        %v4781 = vpop.f32.mrb[0].mxu0
        %v4782 = vadd.f32 %v4709, %v4781
        %v4783 = vpop.f32.mrb[0].mxu0
        %v4784 = vadd.f32 %v4711, %v4783
        %v4785 = vpop.f32.mrb[0].mxu0
        %v4786 = vadd.f32 %v4713, %v4785
        %v4787 = vpop.f32.mrb[0].mxu0
        %v4788 = vadd.f32 %v4715, %v4787
        %4789 = vmatprep.mubr.bf16.mxu0 %v3165
        %4790 = vmatmul.mubr.bf16.gmra.mrb[0].mxu0 %v3164
        %v4791 = vpop.f32.mrb[0].mxu0
        %v4792 = vadd.f32 %v4719, %v4791
        %v4793 = vpop.f32.mrb[0].mxu0
        %v4794 = vadd.f32 %v4721, %v4793
        %v4795 = vpop.f32.mrb[0].mxu0
        %v4796 = vadd.f32 %v4723, %v4795
        %v4797 = vpop.f32.mrb[0].mxu0
        %v4798 = vadd.f32 %v4725, %v4797
        %4799 = vmatprep.mubr.bf16.mxu0 %v3169
        %4800 = vmatmul.mubr.bf16.gmra.mrb[0].mxu0 %v3168
        %v4801 = vpop.f32.mrb[0].mxu0
        %v4802 = vadd.f32 %v4729, %v4801
        %v4803 = vpop.f32.mrb[0].mxu0
        %v4804 = vadd.f32 %v4731, %v4803
        %v4805 = vpop.f32.mrb[0].mxu0
        %v4806 = vadd.f32 %v4733, %v4805
        %v4807 = vpop.f32.mrb[0].mxu0
        %v4808 = vadd.f32 %v4735, %v4807
        %4809 = vdwg.mxu0
        %v4826 = vrot.slane %v4772, 7
        %v4827 = vrot.slane %v4774, 7
        %v4828 = vrot.slane %v4776, 7
        %v4829 = vrot.slane %v4778, 7
        %v4830 = vrot.slane %v4782, 7
        %v4831 = vrot.slane %v4784, 7
        %v4832 = vrot.slane %v4786, 7
        %v4833 = vrot.slane %v4788, 7
        %v4834 = vrot.slane %v4792, 7
        %v4835 = vrot.slane %v4794, 7
        %v4836 = vrot.slane %v4796, 7
        %v4837 = vrot.slane %v4798, 7
        %v4838 = vrot.slane %v4802, 7
        %v4839 = vrot.slane %v4804, 7
        %v4840 = vrot.slane %v4806, 7
        %v4841 = vrot.slane %v4808, 7
        %v4858 = vsel %vm553, %v4826, %v4826
        %v4859 = vsel %vm553, %v4827, %v4827
        %v4860 = vsel %vm553, %v4828, %v4828
        %v4861 = vsel %vm553, %v4829, %v4829
        %v4862 = vsel %vm553, %v4830, %v4830
        %v4863 = vsel %vm553, %v4831, %v4831
        %v4864 = vsel %vm553, %v4832, %v4832
        %v4865 = vsel %vm553, %v4833, %v4833
        %v4866 = vsel %vm553, %v4834, %v4834
        %v4867 = vsel %vm553, %v4835, %v4835
        %v4868 = vsel %vm553, %v4836, %v4836
        %v4869 = vsel %vm553, %v4837, %v4837
        %v4870 = vsel %vm553, %v4838, %v4838
        %v4871 = vsel %vm553, %v4839, %v4839
        %v4872 = vsel %vm553, %v4840, %v4840
        %v4873 = vsel %vm553, %v4841, %v4841
        %v4874 = vadd.f32 %v4263, %v4858
        %v4875 = vadd.f32 %v4264, %v4859
        %v4876 = vadd.f32 %v4265, %v4860
        %v4877 = vadd.f32 %v4266, %v4861
        %v4878 = vadd.f32 %v4267, %v4862
        %v4879 = vadd.f32 %v4268, %v4863
        %v4880 = vadd.f32 %v4269, %v4864
        %v4881 = vadd.f32 %v4270, %v4865
        %v4882 = vadd.f32 %v4271, %v4866
        %v4883 = vadd.f32 %v4272, %v4867
        %v4884 = vadd.f32 %v4273, %v4868
        %v4885 = vadd.f32 %v4274, %v4869
        %v4886 = vadd.f32 %v4275, %v4870
        %v4887 = vadd.f32 %v4276, %v4871
        %v4888 = vadd.f32 %v4277, %v4872
        %v4889 = vadd.f32 %v4278, %v4873
        %v4890 = vld [vmem:[%s8] sm:$0x3]
        %v4892 = vlaneseq
        %v4893 = vshrl.u32 %v4892, 7
        %v4894 = vsub.s32 0, %v4893
        %v4895 = vrot.slane %v4890, %v4894
        %v4896 = vlaneseq
        %v4897 = vshrl.u32 %v4896, 7
        %v4898 = vsub.s32 1, %v4897
        %v4899 = vrot.slane %v4890, %v4898
        %v4902 = vmul.f32 %v4874, %v4895
        %v4903 = vmul.f32 %v4875, %v4899
        %v4904 = vmul.f32 %v4876, %v4895
        %v4905 = vmul.f32 %v4877, %v4899
        %v4906 = vmul.f32 %v4878, %v4895
        %v4907 = vmul.f32 %v4879, %v4899
        %v4908 = vmul.f32 %v4880, %v4895
        %v4909 = vmul.f32 %v4881, %v4899
        %v4910 = vmul.f32 %v4882, %v4895
        %v4911 = vmul.f32 %v4883, %v4899
        %v4912 = vmul.f32 %v4884, %v4895
        %v4913 = vmul.f32 %v4885, %v4899
        %v4914 = vmul.f32 %v4886, %v4895
        %v4915 = vmul.f32 %v4887, %v4899
        %v4916 = vmul.f32 %v4888, %v4895
        %v4917 = vmul.f32 %v4889, %v4899
        %v4918 = vld [vmem:[%s9] sm:$0x3]
        %v4920 = vlaneseq
        %v4921 = vshrl.u32 %v4920, 7
        %v4922 = vsub.s32 0, %v4921
        %v4923 = vrot.slane %v4918, %v4922
        %v4924 = vlaneseq
        %v4925 = vshrl.u32 %v4924, 7
        %v4926 = vsub.s32 1, %v4925
        %v4927 = vrot.slane %v4918, %v4926
        %v4930 = vadd.f32 %v4902, %v4923
        %v4931 = vadd.f32 %v4903, %v4927
        %v4932 = vadd.f32 %v4904, %v4923
        %v4933 = vadd.f32 %v4905, %v4927
        %v4934 = vadd.f32 %v4906, %v4923
        %v4935 = vadd.f32 %v4907, %v4927
        %v4936 = vadd.f32 %v4908, %v4923
        %v4937 = vadd.f32 %v4909, %v4927
        %v4938 = vadd.f32 %v4910, %v4923
        %v4939 = vadd.f32 %v4911, %v4927
        %v4940 = vadd.f32 %v4912, %v4923
        %v4941 = vadd.f32 %v4913, %v4927
        %v4942 = vadd.f32 %v4914, %v4923
        %v4943 = vadd.f32 %v4915, %v4927
        %v4944 = vadd.f32 %v4916, %v4923
        %v4945 = vadd.f32 %v4917, %v4927
        %v4946 = vmax.f32 %v4930, 0.0
        %v4947 = vmax.f32 %v4931, 0.0
        %v4948 = vmax.f32 %v4932, 0.0
        %v4949 = vmax.f32 %v4933, 0.0
        %v4950 = vmax.f32 %v4934, 0.0
        %v4951 = vmax.f32 %v4935, 0.0
        %v4952 = vmax.f32 %v4936, 0.0
        %v4953 = vmax.f32 %v4937, 0.0
        %v4954 = vmax.f32 %v4938, 0.0
        %v4955 = vmax.f32 %v4939, 0.0
        %v4956 = vmax.f32 %v4940, 0.0
        %v4957 = vmax.f32 %v4941, 0.0
        %v4958 = vmax.f32 %v4942, 0.0
        %v4959 = vmax.f32 %v4943, 0.0
        %v4960 = vmax.f32 %v4944, 0.0
        %v4961 = vmax.f32 %v4945, 0.0
        %v4962 = vpack.c.bf16 %v4946, %v4946
        %v4963 = vpack.c.bf16 %v4947, %v4947
        %v4964 = vpack.c.bf16 %v4948, %v4948
        %v4965 = vpack.c.bf16 %v4949, %v4949
        %v4966 = vpack.c.bf16 %v4950, %v4950
        %v4967 = vpack.c.bf16 %v4951, %v4951
        %v4968 = vpack.c.bf16 %v4952, %v4952
        %v4969 = vpack.c.bf16 %v4953, %v4953
        %v4970 = vpack.c.bf16 %v4954, %v4954
        %v4971 = vpack.c.bf16 %v4955, %v4955
        %v4972 = vpack.c.bf16 %v4956, %v4956
        %v4973 = vpack.c.bf16 %v4957, %v4957
        %v4974 = vpack.c.bf16 %v4958, %v4958
        %v4975 = vpack.c.bf16 %v4959, %v4959
        %v4976 = vpack.c.bf16 %v4960, %v4960
        %v4977 = vpack.c.bf16 %v4961, %v4961
        %v4994 = vunpack.c.l.b16 %v4962
        %v4995 = vunpack.c.l.b16 %v4963
        %v4996 = vunpack.c.l.b16 %v4964
        %v4997 = vunpack.c.l.b16 %v4965
        %v4998 = vunpack.c.l.b16 %v4966
        %v4999 = vunpack.c.l.b16 %v4967
        %v5000 = vunpack.c.l.b16 %v4968
        %v5001 = vunpack.c.l.b16 %v4969
        %v5002 = vunpack.c.l.b16 %v4970
        %v5003 = vunpack.c.l.b16 %v4971
        %v5004 = vunpack.c.l.b16 %v4972
        %v5005 = vunpack.c.l.b16 %v4973
        %v5006 = vunpack.c.l.b16 %v4974
        %v5007 = vunpack.c.l.b16 %v4975
        %v5008 = vunpack.c.l.b16 %v4976
        %v5009 = vunpack.c.l.b16 %v4977
        %v5010 = vld [vmem:[%s10] sm:$0xf]
        %v5011 = vld [vmem:[%s10 + $0x4] sm:$0xf]
        %v5012 = vld [vmem:[%s10 + $0x8] sm:$0xf]
        %v5013 = vld [vmem:[%s10 + $0xc] sm:$0xf]
        %v5014 = vld [vmem:[%s10 + $0x10] sm:$0xf]
        %v5015 = vld [vmem:[%s10 + $0x14] sm:$0xf]
        %v5016 = vld [vmem:[%s10 + $0x18] sm:$0xf]
        %v5017 = vld [vmem:[%s10 + $0x1c] sm:$0xf]
        %v5018 = vld [vmem:[%s10 + $0x20] sm:$0xf]
        %v5019 = vld [vmem:[%s10 + $0x24] sm:$0xf]
        %v5020 = vld [vmem:[%s10 + $0x28] sm:$0xf]
        %v5021 = vld [vmem:[%s10 + $0x2c] sm:$0xf]
        %v5022 = vld [vmem:[%s10 + $0x30] sm:$0xf]
        %v5023 = vld [vmem:[%s10 + $0x34] sm:$0xf]
        %v5024 = vld [vmem:[%s10 + $0x38] sm:$0xf]
        %v5025 = vld [vmem:[%s10 + $0x3c] sm:$0xf]
        %v5026 = vld [vmem:[%s10 + $0x40] sm:$0xf]
        %v5027 = vld [vmem:[%s10 + $0x44] sm:$0xf]
        %v5028 = vld [vmem:[%s10 + $0x48] sm:$0xf]
        %v5029 = vld [vmem:[%s10 + $0x4c] sm:$0xf]
        %v5030 = vld [vmem:[%s10 + $0x50] sm:$0xf]
        %v5031 = vld [vmem:[%s10 + $0x54] sm:$0xf]
        %v5032 = vld [vmem:[%s10 + $0x58] sm:$0xf]
        %v5033 = vld [vmem:[%s10 + $0x5c] sm:$0xf]
        %v5034 = vld [vmem:[%s10 + $0x60] sm:$0xf]
        %v5035 = vld [vmem:[%s10 + $0x64] sm:$0xf]
        %v5036 = vld [vmem:[%s10 + $0x68] sm:$0xf]
        %v5037 = vld [vmem:[%s10 + $0x6c] sm:$0xf]
        %v5038 = vld [vmem:[%s10 + $0x70] sm:$0xf]
        %v5039 = vld [vmem:[%s10 + $0x74] sm:$0xf]
        %v5040 = vld [vmem:[%s10 + $0x78] sm:$0xf]
        %v5041 = vld [vmem:[%s10 + $0x7c] sm:$0xf]
        %v5042 = vpack.c.b16 %v4996, %v4994
        %v5043 = vpack.c.b16 %v4997, %v4995
        %v5044 = vpack.c.b16 %v5000, %v4998
        %v5045 = vpack.c.b16 %v5001, %v4999
        %v5046 = vpack.c.b16 %v5004, %v5002
        %v5047 = vpack.c.b16 %v5005, %v5003
        %v5048 = vpack.c.b16 %v5008, %v5006
        %v5049 = vpack.c.b16 %v5009, %v5007
        %v5090 = vunpack.c.l.b16 %v5010
        %v5091 = vunpack.c.l.b16 %v5011
        %v5092 = vunpack.c.l.b16 %v5012
        %v5093 = vunpack.c.l.b16 %v5013
        %v5094 = vunpack.c.l.b16 %v5014
        %v5095 = vunpack.c.l.b16 %v5015
        %v5096 = vunpack.c.l.b16 %v5016
        %v5097 = vunpack.c.l.b16 %v5017
        %v5098 = vunpack.c.l.b16 %v5018
        %v5099 = vunpack.c.l.b16 %v5019
        %v5100 = vunpack.c.l.b16 %v5020
        %v5101 = vunpack.c.l.b16 %v5021
        %v5102 = vunpack.c.l.b16 %v5022
        %v5103 = vunpack.c.l.b16 %v5023
        %v5104 = vunpack.c.l.b16 %v5024
        %v5105 = vunpack.c.l.b16 %v5025
        %v5106 = vunpack.c.l.b16 %v5026
        %v5107 = vunpack.c.l.b16 %v5027
        %v5108 = vunpack.c.l.b16 %v5028
        %v5109 = vunpack.c.l.b16 %v5029
        %v5110 = vunpack.c.l.b16 %v5030
        %v5111 = vunpack.c.l.b16 %v5031
        %v5112 = vunpack.c.l.b16 %v5032
        %v5113 = vunpack.c.l.b16 %v5033
        %v5114 = vunpack.c.l.b16 %v5034
        %v5115 = vunpack.c.l.b16 %v5035
        %v5116 = vunpack.c.l.b16 %v5036
        %v5117 = vunpack.c.l.b16 %v5037
        %v5118 = vunpack.c.l.b16 %v5038
        %v5119 = vunpack.c.l.b16 %v5039
        %v5120 = vunpack.c.l.b16 %v5040
        %v5121 = vunpack.c.l.b16 %v5041
        %v5122 = vpack.c.b16 %v5091, %v5090
        %v5123 = vpack.c.b16 %v5093, %v5092
        %v5124 = vpack.c.b16 %v5095, %v5094
        %v5125 = vpack.c.b16 %v5097, %v5096
        %v5126 = vpack.c.b16 %v5099, %v5098
        %v5127 = vpack.c.b16 %v5101, %v5100
        %v5128 = vpack.c.b16 %v5103, %v5102
        %v5129 = vpack.c.b16 %v5105, %v5104
        %v5130 = vpack.c.b16 %v5107, %v5106
        %v5131 = vpack.c.b16 %v5109, %v5108
        %v5132 = vpack.c.b16 %v5111, %v5110
        %v5133 = vpack.c.b16 %v5113, %v5112
        %v5134 = vpack.c.b16 %v5115, %v5114
        %v5135 = vpack.c.b16 %v5117, %v5116
        %v5136 = vpack.c.b16 %v5119, %v5118
        %v5137 = vpack.c.b16 %v5121, %v5120
        %5154 = vmatprep.subr.bf16.mxu0 0
        %5155 = vmatpush1.bf16.msra.mxu0 %v5122
        %5156 = vmatprep.subr.bf16.mxu0 0
        %5157 = vmatpush1.bf16.msra.mxu0 %v5123
        %5158 = vmatprep.subr.bf16.mxu0 0
        %5159 = vmatpush1.bf16.msra.mxu0 %v5124
        %5160 = vmatprep.subr.bf16.mxu0 0
        %5161 = vmatpush1.bf16.msra.mxu0 %v5125
        %5162 = vmatprep.subr.bf16.mxu0 0
        %5163 = vmatpush1.bf16.msra.mxu0 %v5126
        %5164 = vmatprep.subr.bf16.mxu0 0
        %5165 = vmatpush1.bf16.msra.mxu0 %v5127
        %5166 = vmatprep.subr.bf16.mxu0 0
        %5167 = vmatpush1.bf16.msra.mxu0 %v5128
        %5168 = vmatprep.subr.bf16.mxu0 0
        %5169 = vmatpush1.bf16.msra.mxu0 %v5129
        %5170 = vmatprep.subr.bf16.mxu0 0
        %5171 = vmatpush1.bf16.msra.mxu0 %v5130
        %5172 = vmatprep.subr.bf16.mxu0 0
        %5173 = vmatpush1.bf16.msra.mxu0 %v5131
        %5174 = vmatprep.subr.bf16.mxu0 0
        %5175 = vmatpush1.bf16.msra.mxu0 %v5132
        %5176 = vmatprep.subr.bf16.mxu0 0
        %5177 = vmatpush1.bf16.msra.mxu0 %v5133
        %5178 = vmatprep.subr.bf16.mxu0 0
        %5179 = vmatpush1.bf16.msra.mxu0 %v5134
        %5180 = vmatprep.subr.bf16.mxu0 0
        %5181 = vmatpush1.bf16.msra.mxu0 %v5135
        %5182 = vmatprep.subr.bf16.mxu0 0
        %5183 = vmatpush1.bf16.msra.mxu0 %v5136
        %5184 = vmatprep.subr.bf16.mxu0 0
        %5185 = vmatpush1.bf16.msra.mxu0 %v5137
        %5186 = vmatprep.mubr.bf16.mxu0 %v5043
        %5187 = vmatmul.mubr.bf16.gmra.mrb[0].mxu0 %v5042
        %v5188 = vpop.f32.mrb[0].mxu0
        %v5189 = vadd.f32 0.0, %v5188
        %v5190 = vpop.f32.mrb[0].mxu0
        %v5191 = vpop.f32.mrb[0].mxu0
        %v5192 = vadd.f32 0.0, %v5191
        %v5193 = vpop.f32.mrb[0].mxu0
        %5194 = vmatprep.mubr.bf16.mxu0 %v5045
        %5195 = vmatmul.mubr.bf16.gmra.mrb[0].mxu0 %v5044
        %v5196 = vpop.f32.mrb[0].mxu0
        %v5197 = vadd.f32 0.0, %v5196
        %v5198 = vpop.f32.mrb[0].mxu0
        %v5199 = vpop.f32.mrb[0].mxu0
        %v5200 = vadd.f32 0.0, %v5199
        %v5201 = vpop.f32.mrb[0].mxu0
        %5202 = vmatprep.mubr.bf16.mxu0 %v5047
        %5203 = vmatmul.mubr.bf16.gmra.mrb[0].mxu0 %v5046
        %v5204 = vpop.f32.mrb[0].mxu0
        %v5205 = vadd.f32 0.0, %v5204
        %v5206 = vpop.f32.mrb[0].mxu0
        %v5207 = vpop.f32.mrb[0].mxu0
        %v5208 = vadd.f32 0.0, %v5207
        %v5209 = vpop.f32.mrb[0].mxu0
        %5210 = vmatprep.mubr.bf16.mxu0 %v5049
        %5211 = vmatmul.mubr.bf16.gmra.mrb[0].mxu0 %v5048
        %v5212 = vpop.f32.mrb[0].mxu0
        %v5213 = vadd.f32 0.0, %v5212
        %v5214 = vpop.f32.mrb[0].mxu0
        %v5215 = vpop.f32.mrb[0].mxu0
        %v5216 = vadd.f32 0.0, %v5215
        %v5217 = vpop.f32.mrb[0].mxu0
        %5218 = vdwg.mxu0
        %v5219 = vld [vmem:[%s11] sm:$0x1]
        %v5221 = vlaneseq
        %v5222 = vshrl.u32 %v5221, 7
        %v5223 = vsub.s32 0, %v5222
        %v5224 = vrot.slane %v5219, %v5223
        %v5226 = vadd.f32 %v5224, %v5189
        %v5227 = vadd.f32 %v5224, %v5192
        %v5228 = vadd.f32 %v5224, %v5197
        %v5229 = vadd.f32 %v5224, %v5200
        %v5230 = vadd.f32 %v5224, %v5205
        %v5231 = vadd.f32 %v5224, %v5208
        %v5232 = vadd.f32 %v5224, %v5213
        %v5233 = vadd.f32 %v5224, %v5216
        %v5242 = vrot.slane %v5189, 1
        %v5243 = vrot.slane %v5192, 1
        %v5244 = vrot.slane %v5197, 1
        %v5245 = vrot.slane %v5200, 1
        %v5246 = vrot.slane %v5205, 1
        %v5247 = vrot.slane %v5208, 1
        %v5248 = vrot.slane %v5213, 1
        %v5249 = vrot.slane %v5216, 1
        %v5258 = vsel %vm528, %v5242, %v5242
        %v5259 = vsel %vm528, %v5243, %v5243
        %v5260 = vsel %vm528, %v5244, %v5244
        %v5261 = vsel %vm528, %v5245, %v5245
        %v5262 = vsel %vm528, %v5246, %v5246
        %v5263 = vsel %vm528, %v5247, %v5247
        %v5264 = vsel %vm528, %v5248, %v5248
        %v5265 = vsel %vm528, %v5249, %v5249
        %5274 = vrot.lane.b32.xlu0 %v5258, 96
        %v5275 = vpop.permute.xlu0 %5274
        %5276 = vrot.lane.b32.xlu0 %v5259, 96
        %v5277 = vpop.permute.xlu0 %5276
        %5278 = vrot.lane.b32.xlu0 %v5260, 96
        %v5279 = vpop.permute.xlu0 %5278
        %5280 = vrot.lane.b32.xlu0 %v5261, 96
        %v5281 = vpop.permute.xlu0 %5280
        %5282 = vrot.lane.b32.xlu0 %v5262, 96
        %v5283 = vpop.permute.xlu0 %5282
        %5284 = vrot.lane.b32.xlu0 %v5263, 96
        %v5285 = vpop.permute.xlu0 %5284
        %5286 = vrot.lane.b32.xlu0 %v5264, 96
        %v5287 = vpop.permute.xlu0 %5286
        %5288 = vrot.lane.b32.xlu0 %v5265, 96
        %v5289 = vpop.permute.xlu0 %5288
        %v5298 = vadd.f32 %v5226, %v5275
        %v5299 = vadd.f32 %v5227, %v5277
        %v5300 = vadd.f32 %v5228, %v5279
        %v5301 = vadd.f32 %v5229, %v5281
        %v5302 = vadd.f32 %v5230, %v5283
        %v5303 = vadd.f32 %v5231, %v5285
        %v5304 = vadd.f32 %v5232, %v5287
        %v5305 = vadd.f32 %v5233, %v5289
        %v5306 = vrot.slane %v5189, 7
        %v5307 = vrot.slane %v5192, 7
        %v5308 = vrot.slane %v5197, 7
        %v5309 = vrot.slane %v5200, 7
        %v5310 = vrot.slane %v5205, 7
        %v5311 = vrot.slane %v5208, 7
        %v5312 = vrot.slane %v5213, 7
        %v5313 = vrot.slane %v5216, 7
        %v5322 = vsel %vm553, %v5306, %v5306
        %v5323 = vsel %vm553, %v5307, %v5307
        %v5324 = vsel %vm553, %v5308, %v5308
        %v5325 = vsel %vm553, %v5309, %v5309
        %v5326 = vsel %vm553, %v5310, %v5310
        %v5327 = vsel %vm553, %v5311, %v5311
        %v5328 = vsel %vm553, %v5312, %v5312
        %v5329 = vsel %vm553, %v5313, %v5313
        %5338 = vrot.lane.b32.xlu0 %v5322, 64
        %v5339 = vpop.permute.xlu0 %5338
        %5340 = vrot.lane.b32.xlu0 %v5323, 64
        %v5341 = vpop.permute.xlu0 %5340
        %5342 = vrot.lane.b32.xlu0 %v5324, 64
        %v5343 = vpop.permute.xlu0 %5342
        %5344 = vrot.lane.b32.xlu0 %v5325, 64
        %v5345 = vpop.permute.xlu0 %5344
        %5346 = vrot.lane.b32.xlu0 %v5326, 64
        %v5347 = vpop.permute.xlu0 %5346
        %5348 = vrot.lane.b32.xlu0 %v5327, 64
        %v5349 = vpop.permute.xlu0 %5348
        %5350 = vrot.lane.b32.xlu0 %v5328, 64
        %v5351 = vpop.permute.xlu0 %5350
        %5352 = vrot.lane.b32.xlu0 %v5329, 64
        %v5353 = vpop.permute.xlu0 %5352
        %v5362 = vadd.f32 %v5298, %v5339
        %v5363 = vadd.f32 %v5299, %v5341
        %v5364 = vadd.f32 %v5300, %v5343
        %v5365 = vadd.f32 %v5301, %v5345
        %v5366 = vadd.f32 %v5302, %v5347
        %v5367 = vadd.f32 %v5303, %v5349
        %v5368 = vadd.f32 %v5304, %v5351
        %v5369 = vadd.f32 %v5305, %v5353
        %v5370 = vadd.f32 %v5362, %v496
        %v5371 = vadd.f32 %v5363, %v497
        %v5372 = vadd.f32 %v5364, %v498
        %v5373 = vadd.f32 %v5365, %v499
        %v5374 = vadd.f32 %v5366, %v500
        %v5375 = vadd.f32 %v5367, %v501
        %v5376 = vadd.f32 %v5368, %v502
        %v5377 = vadd.f32 %v5369, %v503
        %v5378 = vsel %vm626, %v5370, 0.0
        %v5379 = vrot.slane %v5378, 4
        %v5380 = vadd.f32 %v5378, %v5379
        %v5381 = vrot.slane %v5380, 2
        %v5382 = vadd.f32 %v5380, %v5381
        %v5383 = vrot.slane %v5382, 1
        %v5384 = vadd.f32 %v5382, %v5383
        %v5385 = vsel %vm626, %v5371, 0.0
        %v5386 = vrot.slane %v5385, 4
        %v5387 = vadd.f32 %v5385, %v5386
        %v5388 = vrot.slane %v5387, 2
        %v5389 = vadd.f32 %v5387, %v5388
        %v5390 = vrot.slane %v5389, 1
        %v5391 = vadd.f32 %v5389, %v5390
        %v5392 = vsel %vm626, %v5372, 0.0
        %v5393 = vrot.slane %v5392, 4
        %v5394 = vadd.f32 %v5392, %v5393
        %v5395 = vrot.slane %v5394, 2
        %v5396 = vadd.f32 %v5394, %v5395
        %v5397 = vrot.slane %v5396, 1
        %v5398 = vadd.f32 %v5396, %v5397
        %v5399 = vsel %vm626, %v5373, 0.0
        %v5400 = vrot.slane %v5399, 4
        %v5401 = vadd.f32 %v5399, %v5400
        %v5402 = vrot.slane %v5401, 2
        %v5403 = vadd.f32 %v5401, %v5402
        %v5404 = vrot.slane %v5403, 1
        %v5405 = vadd.f32 %v5403, %v5404
        %v5406 = vsel %vm626, %v5374, 0.0
        %v5407 = vrot.slane %v5406, 4
        %v5408 = vadd.f32 %v5406, %v5407
        %v5409 = vrot.slane %v5408, 2
        %v5410 = vadd.f32 %v5408, %v5409
        %v5411 = vrot.slane %v5410, 1
        %v5412 = vadd.f32 %v5410, %v5411
        %v5413 = vsel %vm626, %v5375, 0.0
        %v5414 = vrot.slane %v5413, 4
        %v5415 = vadd.f32 %v5413, %v5414
        %v5416 = vrot.slane %v5415, 2
        %v5417 = vadd.f32 %v5415, %v5416
        %v5418 = vrot.slane %v5417, 1
        %v5419 = vadd.f32 %v5417, %v5418
        %v5420 = vsel %vm626, %v5376, 0.0
        %v5421 = vrot.slane %v5420, 4
        %v5422 = vadd.f32 %v5420, %v5421
        %v5423 = vrot.slane %v5422, 2
        %v5424 = vadd.f32 %v5422, %v5423
        %v5425 = vrot.slane %v5424, 1
        %v5426 = vadd.f32 %v5424, %v5425
        %v5427 = vsel %vm626, %v5377, 0.0
        %v5428 = vrot.slane %v5427, 4
        %v5429 = vadd.f32 %v5427, %v5428
        %v5430 = vrot.slane %v5429, 2
        %v5431 = vadd.f32 %v5429, %v5430
        %v5432 = vrot.slane %v5431, 1
        %v5433 = vadd.f32 %v5431, %v5432
        %v5434 = vrcp.pop 8.0
        %v5435 = vmul.f32 %v5384, %v5434
        %v5436 = vmul.f32 %v5391, %v5434
        %v5437 = vmul.f32 %v5398, %v5434
        %v5438 = vmul.f32 %v5405, %v5434
        %v5439 = vmul.f32 %v5412, %v5434
        %v5440 = vmul.f32 %v5419, %v5434
        %v5441 = vmul.f32 %v5426, %v5434
        %v5442 = vmul.f32 %v5433, %v5434
        %v5443 = vmul.f32 %v5370, %v5370
        %v5444 = vmul.f32 %v5371, %v5371
        %v5445 = vmul.f32 %v5372, %v5372
        %v5446 = vmul.f32 %v5373, %v5373
        %v5447 = vmul.f32 %v5374, %v5374
        %v5448 = vmul.f32 %v5375, %v5375
        %v5449 = vmul.f32 %v5376, %v5376
        %v5450 = vmul.f32 %v5377, %v5377
        %v5451 = vsel %vm626, %v5443, 0.0
        %5452 = vadd.xlane.f32.xlu0 %v5451
        %v5453 = vpop.xlane.xlu0 %5452
        %v5454 = vsel %vm626, %v5444, 0.0
        %5455 = vadd.xlane.f32.xlu0 %v5454
        %v5456 = vpop.xlane.xlu0 %5455
        %v5457 = vsel %vm626, %v5445, 0.0
        %5458 = vadd.xlane.f32.xlu0 %v5457
        %v5459 = vpop.xlane.xlu0 %5458
        %v5460 = vsel %vm626, %v5446, 0.0
        %5461 = vadd.xlane.f32.xlu0 %v5460
        %v5462 = vpop.xlane.xlu0 %5461
        %v5463 = vsel %vm626, %v5447, 0.0
        %5464 = vadd.xlane.f32.xlu0 %v5463
        %v5465 = vpop.xlane.xlu0 %5464
        %v5466 = vsel %vm626, %v5448, 0.0
        %5467 = vadd.xlane.f32.xlu0 %v5466
        %v5468 = vpop.xlane.xlu0 %5467
        %v5469 = vsel %vm626, %v5449, 0.0
        %5470 = vadd.xlane.f32.xlu0 %v5469
        %v5471 = vpop.xlane.xlu0 %5470
        %v5472 = vsel %vm626, %v5450, 0.0
        %5473 = vadd.xlane.f32.xlu0 %v5472
        %v5474 = vpop.xlane.xlu0 %5473
        %v5475 = vrsqrt.pop %v5453
        %v5476 = vrsqrt.pop %v5456
        %v5477 = vrsqrt.pop %v5459
        %v5478 = vrsqrt.pop %v5462
        %v5479 = vrsqrt.pop %v5465
        %v5480 = vrsqrt.pop %v5468
        %v5481 = vrsqrt.pop %v5471
        %v5482 = vrsqrt.pop %v5474
        %v5483 = vmin.f32 %v5475, 10000.0
        %v5484 = vmin.f32 %v5476, 10000.0
        %v5485 = vmin.f32 %v5477, 10000.0
        %v5486 = vmin.f32 %v5478, 10000.0
        %v5487 = vmin.f32 %v5479, 10000.0
        %v5488 = vmin.f32 %v5480, 10000.0
        %v5489 = vmin.f32 %v5481, 10000.0
        %v5490 = vmin.f32 %v5482, 10000.0
        %v5491 = vmul.f32 %v5370, %v5483
        %v5492 = vmul.f32 %v5371, %v5484
        %v5493 = vmul.f32 %v5372, %v5485
        %v5494 = vmul.f32 %v5373, %v5486
        %v5495 = vmul.f32 %v5374, %v5487
        %v5496 = vmul.f32 %v5375, %v5488
        %v5497 = vmul.f32 %v5376, %v5489
        %v5498 = vmul.f32 %v5377, %v5490
        %5499 = vst.msk [vmem:[%s480] sm:$0xff] %vm626, %v5491
        %5500 = vst.msk [vmem:[%s480 + $0x8] sm:$0xff] %vm626, %v5492
        %5501 = vst.msk [vmem:[%s480 + $0x10] sm:$0xff] %vm626, %v5493
        %5502 = vst.msk [vmem:[%s480 + $0x18] sm:$0xff] %vm626, %v5494
        %5503 = vst.msk [vmem:[%s480 + $0x20] sm:$0xff] %vm626, %v5495
        %5504 = vst.msk [vmem:[%s480 + $0x28] sm:$0xff] %vm626, %v5496
        %5505 = vst.msk [vmem:[%s480 + $0x30] sm:$0xff] %vm626, %v5497
        %5506 = vst.msk [vmem:[%s480 + $0x38] sm:$0xff] %vm626, %v5498
        %v5507 = vmul.f32 %v5435, %v5435
        %v5508 = vmul.f32 %v5436, %v5436
        %v5509 = vmul.f32 %v5437, %v5437
        %v5510 = vmul.f32 %v5438, %v5438
        %v5511 = vmul.f32 %v5439, %v5439
        %v5512 = vmul.f32 %v5440, %v5440
        %v5513 = vmul.f32 %v5441, %v5441
        %v5514 = vmul.f32 %v5442, %v5442
        %vm5523 = vcmask 1041409
        %v5524 = vsel %vm5523, %v5508, %v5507
        %vm5525 = vcmask 1042434
        %v5526 = vsel %vm5525, %v5509, %v5524
        %vm5527 = vcmask 1043459
        %v5528 = vsel %vm5527, %v5510, %v5526
        %vm5529 = vcmask 1044484
        %v5530 = vsel %vm5529, %v5511, %v5528
        %vm5531 = vcmask 1045509
        %v5532 = vsel %vm5531, %v5512, %v5530
        %vm5533 = vcmask 1046534
        %v5534 = vsel %vm5533, %v5513, %v5532
        %vm5535 = vcmask 1047559
        %v5536 = vsel %vm5535, %v5514, %v5534
        %v5538 = vsel %vm626, %v5536, 0.0
        %5539 = vadd.xlane.f32.xlu0 %v5538
        %v5540 = vpop.xlane.xlu0 %5539
        %v5541 = vrsqrt.pop %v5540
        %v5542 = vmin.f32 %v5541, 10000.0
        %v5544 = vrot.slane %v5542, 1
        %v5545 = vrot.slane %v5542, 2
        %v5546 = vrot.slane %v5542, 3
        %v5547 = vrot.slane %v5542, 4
        %v5548 = vrot.slane %v5542, 5
        %v5549 = vrot.slane %v5542, 6
        %v5550 = vrot.slane %v5542, 7
        %v5559 = vmul.f32 %v5435, %v5542
        %v5560 = vmul.f32 %v5436, %v5544
        %v5561 = vmul.f32 %v5437, %v5545
        %v5562 = vmul.f32 %v5438, %v5546
        %v5563 = vmul.f32 %v5439, %v5547
        %v5564 = vmul.f32 %v5440, %v5548
        %v5565 = vmul.f32 %v5441, %v5549
        %v5566 = vmul.f32 %v5442, %v5550
        %v5575 = vrot.slane %v5560, 7
        %v5576 = vsel %vm5523, %v5575, %v5559
        %v5577 = vrot.slane %v5561, 6
        %v5578 = vsel %vm5525, %v5577, %v5576
        %v5579 = vrot.slane %v5562, 5
        %v5580 = vsel %vm5527, %v5579, %v5578
        %v5581 = vrot.slane %v5563, 4
        %v5582 = vsel %vm5529, %v5581, %v5580
        %v5583 = vrot.slane %v5564, 3
        %v5584 = vsel %vm5531, %v5583, %v5582
        %v5585 = vrot.slane %v5565, 2
        %v5586 = vsel %vm5533, %v5585, %v5584
        %v5587 = vrot.slane %v5566, 1
        %v5588 = vsel %vm5535, %v5587, %v5586
        %5590 = vst.msk [vmem:[%s487] sm:$0xff] %vm626, %v5588
        %s5591 = sand.u32 %s298, 1
        %s5592 = scalar_lea.sflag [#allocation4], %s5591
        %s5593 = sand.u32 %s298, 1
        %s5594 = smul.addr %s5593, 64
        %s5595 = scalar_lea.vmem [#allocation8], %s5594
        %s5596 = sand.u32 %s324, 1
        %s5597 = scalar_lea.sflag [#allocation10], %s5596
        %s5598 = sand.u32 %s324, 1
        %s5599 = smul.addr %s5598, 8
        %s5600 = scalar_lea.vmem [#allocation9], %s5599
        // Predicated region
        $region81: #{tpu_custom_call.1} parent=67 // pred_check
          %p5601 = pneg %p308
        $region82: #{tpu_custom_call.1} parent=67 // pred_check_branch
          %5603 = sbr.rel (%p5601) target = $region84
        $region83: #{tpu_custom_call.1} parent=67 // pred_region
          %s5604 = smul.u32 8, %s33
          %s5606 = ssub.s32 1024, 1024
          %5607 = vsyncadd %s5592, %s5606
          %s5608 = smul.addr %s5604, 128
          %s5609 = scalar_lea.hbm %s12, %s5608
          %s5610 = sshll.u32 %s5595, 4
          %s5611 = int_to_ptr.vmem [resolvable:$true] %s5610
          %5616 = dma.vmem_to_hbm [thread:$0]  %s5611, 1024, %s5609, %s5592, 128, 128, 8
        $region84: #{tpu_custom_call.1} parent=67 // pred_fallthru
          _
        // Predicated region
        $region85: #{tpu_custom_call.1} parent=67 // pred_check
          %p5617 = pneg %p334
        $region86: #{tpu_custom_call.1} parent=67 // pred_check_branch
          %5619 = sbr.rel (%p5617) target = $region88
        $region87: #{tpu_custom_call.1} parent=67 // pred_region
          %s5621 = ssub.s32 128, 128
          %5622 = vsyncadd %s5597, %s5621
          %s5623 = smul.addr %s33, 128
          %s5624 = scalar_lea.hbm %s13, %s5623
          %s5626 = sshll.u32 %s5600, 4
          %s5627 = int_to_ptr.vmem [resolvable:$true] %s5626
          %5629 = dma.vmem_to_hbm [thread:$0]  %s5627, 128, %s5624, %s5597
        $region88: #{tpu_custom_call.1} parent=67 // pred_fallthru
          _
      $region68: #{tpu_custom_call.1} parent=5 // pred_fallthru
        _
      %p5630 = scmp.le.s32.totalorder 2, %s28
      // Predicated region
      $region89: #{tpu_custom_call.1} parent=5 // pred_check
        %p5631 = pneg %p5630
      $region90: #{tpu_custom_call.1} parent=5 // pred_check_branch
        %5633 = sbr.rel (%p5631) target = $region92
      $region91: #{tpu_custom_call.1} parent=5 // pred_region
        %s5634 = ssub.s32 %s28, 2
        // Predicated region
        $region93: #{tpu_custom_call.1} parent=91 // pred_check
          %p5635 = pneg %p314
        $region94: #{tpu_custom_call.1} parent=91 // pred_check_branch
          %5637 = sbr.rel (%p5635) target = $region96
        $region95: #{tpu_custom_call.1} parent=91 // pred_region
          %s5638 = sand.u32 %s299, 1
          %s5639 = scalar_lea.sflag [#allocation4], %s5638
          %s5640 = sand.u32 %s299, 1
          %s5641 = smul.addr %s5640, 64
          %s5642 = scalar_lea.vmem [#allocation8], %s5641
          %5643 = dma.done %s5639, 1024
        $region96: #{tpu_custom_call.1} parent=91 // pred_fallthru
          _
        // Predicated region
        $region97: #{tpu_custom_call.1} parent=91 // pred_check
          %p5644 = pneg %p340
        $region98: #{tpu_custom_call.1} parent=91 // pred_check_branch
          %5646 = sbr.rel (%p5644) target = $region100
        $region99: #{tpu_custom_call.1} parent=91 // pred_region
          %s5647 = sand.u32 %s325, 1
          %s5648 = scalar_lea.sflag [#allocation10], %s5647
          %s5649 = sand.u32 %s325, 1
          %s5650 = smul.addr %s5649, 8
          %s5651 = scalar_lea.vmem [#allocation9], %s5650
          %5652 = dma.done %s5648, 128
        $region100: #{tpu_custom_call.1} parent=91 // pred_fallthru
          _
      $region92: #{tpu_custom_call.1} parent=5 // pred_fallthru
        _
    $region6: #{tpu_custom_call.1} parent=1 // loop_footer
      %s32 = sadd.s32 1, %s28
    $region7: #{tpu_custom_call.1} parent=1 // loop_footer_branch
      %27 = sbr.rel target = $region3
    $region8: #{tpu_custom_call.1} parent=1 // loop_exit
      _
    %5653 = vsyncpa [#allocation3], 1
    %s5654 = scalar_lea.sflag [#allocation3], 1
    %5655 = vsyncpa %s5654, 1
    %5656 = vsyncpa [#allocation6], 1
    %5657 = vsyncpa [#allocation4], 1
    %s5658 = scalar_lea.sflag [#allocation4], 1
    %5659 = vsyncpa %s5658, 1
    %5660 = vsyncpa [#allocation10], 1
    %s5661 = scalar_lea.sflag [#allocation10], 1
    %5662 = vsyncpa %s5661, 1

</llo_original>
